<compile_context>
chip_gen: v7x
topology: tpu7x:2x2x1
jax: 0.10.0
libtpu: 0.0.40
codegen_flags: <defaults>
</compile_context>

<pallas_src>
import jax
import jax.numpy as jnp
from jax.experimental import pallas as pl
from jax.experimental.pallas import tpu as pltpu


# ---------------------------------------------------------------------------
# Pallas kernels
# ---------------------------------------------------------------------------
def _stage1_kernel(p_ref, w_ref, b_ref, o_ref):
    """conv1 + bias + ReLU + 2x2 maxpool, all fused.

    p_ref: (4, K1, M1)  phase-shifted im2col patches (K = C*kh*kw rows,
                        M = B*14*14 pooled-output columns)
    w_ref: (OC1, K1)    flattened conv1 weight
    b_ref: (OC1, 1)     conv1 bias (broadcast over lanes)
    o_ref: (OC1, M1)    pooled+ReLU'd activations, channel-major (lane-dense)
    """
    w = w_ref[...]
    acc = jnp.dot(w, p_ref[0], preferred_element_type=jnp.float32)
    for ph in range(1, p_ref.shape[0]):
        acc = jnp.maximum(
            acc, jnp.dot(w, p_ref[ph], preferred_element_type=jnp.float32))
    # max(relu(x+b)) over the 4 pool phases == relu(max(x)+b)  (relu monotone)
    o_ref[...] = jnp.maximum(acc + b_ref[...], 0.0).astype(o_ref.dtype)


def _stage2_kernel(p_ref, cw_ref, cb_ref, f1w_ref, f1b_ref,
                   f2w_ref, f2b_ref, f3w_ref, f3b_ref, o_ref, y_sc):
    """conv2 + bias + ReLU + 2x2 maxpool + fc1 + fc2 + fc3, all fused.

    p_ref : (4, 25*B, K2)   phase-shifted conv2 im2col patches, rows = (pos, b)
    cw_ref: (K2, OC2)       flattened conv2 weight
    cb_ref: (1, OC2)        conv2 bias
    f1w_ref: (25, OC2, 120) fc1 weight permuted per spatial position
    f1b_ref: (1, 120) / f2w_ref: (120, 84) / f2b_ref: (1, 84)
    f3w_ref: (84, out) / f3b_ref: (1, out)
    o_ref : (B, out)
    y_sc  : VMEM scratch (25*B, OC2) for the pooled conv2 activations
    """
    cw = cw_ref[...]
    acc = jnp.dot(p_ref[0], cw, preferred_element_type=jnp.float32)
    for ph in range(1, p_ref.shape[0]):
        acc = jnp.maximum(
            acc, jnp.dot(p_ref[ph], cw, preferred_element_type=jnp.float32))
    y_sc[...] = jnp.maximum(acc + cb_ref[...], 0.0)      # (25*B, OC2)

    batch = o_ref.shape[0]
    n_pos = f1w_ref.shape[0]                             # 25 spatial positions
    # fc1 == torch.flatten + Linear, computed as a sum over spatial positions
    # (fc1 weights were permuted accordingly at init).
    h = jnp.dot(y_sc[0:batch, :], f1w_ref[0], preferred_element_type=jnp.float32)
    for p in range(1, n_pos):
        h = h + jnp.dot(y_sc[p * batch:(p + 1) * batch, :], f1w_ref[p],
                        preferred_element_type=jnp.float32)
    h = jnp.maximum(h + f1b_ref[...], 0.0)               # (B, 120)
    h = jnp.maximum(
        jnp.dot(h, f2w_ref[...], preferred_element_type=jnp.float32)
        + f2b_ref[...], 0.0)                             # (B, 84)
    o_ref[...] = (jnp.dot(h, f3w_ref[...], preferred_element_type=jnp.float32)
                  + f3b_ref[...]).astype(o_ref.dtype)    # (B, out)


# ---------------------------------------------------------------------------
# pallas_call wrappers (no grid: the whole problem fits a single VMEM block)
# ---------------------------------------------------------------------------
def _full_spec(shape):
    shape = tuple(int(s) for s in shape)
    return pl.BlockSpec(shape, lambda shape=shape: (0,) * len(shape))


def _fused_conv1_pool(p1, w1f, b1):
    oc, m = w1f.shape[0], p1.shape[2]
    return pl.pallas_call(
        _stage1_kernel,
        out_shape=jax.ShapeDtypeStruct((oc, m), jnp.float32),
        in_specs=[_full_spec(p1.shape), _full_spec(w1f.shape),
                  _full_spec(b1.shape)],
        out_specs=_full_spec((oc, m)),
    )(p1, w1f, b1)


def _fused_conv2_pool_fc(p2, kp, batch, out_size):
    args = (p2, kp["w2f"], kp["b2"], kp["fc1_w"], kp["fc1_b"],
            kp["fc2_w"], kp["fc2_b"], kp["fc3_w"], kp["fc3_b"])
    m2, oc2 = p2.shape[1], kp["w2f"].shape[1]
    return pl.pallas_call(
        _stage2_kernel,
        out_shape=jax.ShapeDtypeStruct((batch, out_size), jnp.float32),
        in_specs=[_full_spec(a.shape) for a in args],
        out_specs=_full_spec((batch, out_size)),
        scratch_shapes=[pltpu.VMEM((m2, oc2), jnp.float32)],
    )(*args)


# ---------------------------------------------------------------------------
# XLA glue: phase-shifted im2col (one patch matrix per 2x2 pool phase)
# ---------------------------------------------------------------------------
def _patches_conv1(x, kh=5, kw=5):
    """x: (B, C, H, W) -> (4, C*kh*kw, B*PH*PW), columns ordered (b, ph, pw),
    rows ordered (c, i, j) to match conv1_w.reshape(OC, -1)."""
    B, C, H, W = x.shape
    PH, PW = (H - kh + 1) // 2, (W - kw + 1) // 2
    phases = []
    for px in range(2):
        for py in range(2):
            cols = []
            for i in range(kh):
                for j in range(kw):
                    cols.append(x[:, :, px + i:px + i + 2 * PH:2,
                                        py + j:py + j + 2 * PW:2])  # (B,C,PH,PW)
            pk = jnp.stack(cols, axis=0)            # (kh*kw, B, C, PH, PW)
            pk = pk.transpose(2, 0, 1, 3, 4)        # (C, kh*kw, B, PH, PW)
            phases.append(pk.reshape(C * kh * kw, B * PH * PW))
    return jnp.stack(phases, axis=0)


def _patches_conv2(h1_t, batch, kh=5, kw=5):
    """h1_t: (C, B*S*S) channel-major pooled conv1 output ->
    (4, PH*PW*B, C*kh*kw), rows ordered (ph, pw, b), cols ordered (c, i, j)."""
    C = h1_t.shape[0]
    s = int(round((h1_t.shape[1] // batch) ** 0.5))     # 14
    h = h1_t.reshape(C, batch, s, s)
    PH = PW = (s - kh + 1) // 2                         # 5
    phases = []
    for px in range(2):
        for py in range(2):
            cols = []
            for i in range(kh):
                for j in range(kw):
                    cols.append(h[:, :, px + i:px + i + 2 * PH:2,
                                        py + j:py + j + 2 * PW:2])  # (C,B,PH,PW)
            pk = jnp.stack(cols, axis=0)            # (kh*kw, C, B, PH, PW)
            pk = pk.transpose(3, 4, 2, 1, 0)        # (PH, PW, B, C, kh*kw)
            phases.append(pk.reshape(PH * PW * batch, C * kh * kw))
    return jnp.stack(phases, axis=0)


# ---------------------------------------------------------------------------
# Forward pass
# ---------------------------------------------------------------------------
def conv_model_forward(x, kp):
    """x: (B, 3, 32, 32) NCHW, kp: prepare_params() output -> (B, out_size)."""
    B = x.shape[0]
    p1 = _patches_conv1(x)                              # (4, 75, B*196)
    h1_t = _fused_conv1_pool(p1, kp["w1f"], kp["b1"])   # (6, B*196)
    p2 = _patches_conv2(h1_t, B)                        # (4, 25*B, 150)
    out_size = kp["fc3_b"].shape[1]
    return _fused_conv2_pool_fc(p2, kp, B, out_size)    # (B, out_size)


# ---------------------------------------------------------------------------
# Parameters (raw PyTorch layout) and one-time kernel-layout preparation
# ---------------------------------------------------------------------------
def init_params(key, out_size):
    ks = jax.random.split(key, 10)
    scale = 0.1
    return {
        "conv1_w": scale * jax.random.normal(ks[0], (6, 3, 5, 5), jnp.float32),
        "conv1_b": scale * jax.random.normal(ks[1], (6,), jnp.float32),
        "conv2_w": scale * jax.random.normal(ks[2], (16, 6, 5, 5), jnp.float32),
        "conv2_b": scale * jax.random.normal(ks[3], (16,), jnp.float32),
        "fc1_w": scale * jax.random.normal(ks[4], (120, 16 * 5 * 5), jnp.float32),
        "fc1_b": scale * jax.random.normal(ks[5], (120,), jnp.float32),
        "fc2_w": scale * jax.random.normal(ks[6], (84, 120), jnp.float32),
        "fc2_b": scale * jax.random.normal(ks[7], (84,), jnp.float32),
        "fc3_w": scale * jax.random.normal(ks[8], (out_size, 84), jnp.float32),
        "fc3_b": scale * jax.random.normal(ks[9], (out_size,), jnp.float32),
    }


def prepare_params(p):
    """One-time re-layout of PyTorch-style params into kernel-ready operands."""
    oc1 = p["conv1_w"].shape[0]
    oc2 = p["conv2_w"].shape[0]
    n_pos = p["fc1_w"].shape[1] // oc2          # 5*5 = 25 spatial positions
    out_size = p["fc3_w"].shape[0]
    return {
        "w1f": p["conv1_w"].reshape(oc1, -1),                       # (6, 75)
        "b1": p["conv1_b"].reshape(oc1, 1),                         # (6, 1)
        "w2f": p["conv2_w"].reshape(oc2, -1).T,                     # (150, 16)
        "b2": p["conv2_b"].reshape(1, oc2),                         # (1, 16)
        # fc1_w[n, c*25 + p] -> fc1_w_perm[p, c, n]
        "fc1_w": p["fc1_w"].reshape(-1, oc2, n_pos).transpose(2, 1, 0),
        "fc1_b": p["fc1_b"].reshape(1, -1),
        "fc2_w": p["fc2_w"].T,                                      # (120, 84)
        "fc2_b": p["fc2_b"].reshape(1, -1),
        "fc3_w": p["fc3_w"].T,                                      # (84, out)
        "fc3_b": p["fc3_b"].reshape(1, out_size),
    }


# ---------------------------------------------------------------------------
# Pure-JAX reference (for numerical validation)
# ---------------------------------------------------------------------------
def _reference_forward(x, p):
    dn = ("NCHW", "OIHW", "NCHW")
    y = jax.lax.conv_general_dilated(x, p["conv1_w"], (1, 1), "VALID",
                                     dimension_numbers=dn)
    y = jnp.maximum(y + p["conv1_b"][None, :, None, None], 0.0)
    B, C, H, W = y.shape
    y = y.reshape(B, C, H // 2, 2, W // 2, 2).max(axis=(3, 5))
    y = jax.lax.conv_general_dilated(y, p["conv2_w"], (1, 1), "VALID",
                                     dimension_numbers=dn)
    y = jnp.maximum(y + p["conv2_b"][None, :, None, None], 0.0)
    B, C, H, W = y.shape
    y = y.reshape(B, C, H // 2, 2, W // 2, 2).max(axis=(3, 5))
    y = y.reshape(B, -1)
    y = jnp.maximum(y @ p["fc1_w"].T + p["fc1_b"], 0.0)
    y = jnp.maximum(y @ p["fc2_w"].T + p["fc2_b"], 0.0)
    return y @ p["fc3_w"].T + p["fc3_b"]


if __name__ == "__main__":
    key = jax.random.PRNGKey(0)
    k_params, k_input = jax.random.split(key)

    out_size = 10
    raw = init_params(k_params, out_size)
    params = prepare_params(raw)            # done once, outside jit

    # Architecture implies 32x32 spatial input (16*5*5 after two conv+pool).
    x = jax.random.normal(k_input, (2, 3, 32, 32), jnp.float32)

    fwd = jax.jit(conv_model_forward)
    out = jax.block_until_ready(fwd(x, params))
    assert out.shape == (2, out_size), out.shape

    ref = _reference_forward(x, raw)
    assert jnp.allclose(out, ref, atol=1e-3, rtol=1e-3), \
        float(jnp.max(jnp.abs(out - ref)))

    print("KERNEL_OK")
</pallas_src>

<mosaic_0001>
module attributes {stable_mosaic.version = 11 : i64} {
  func.func @_stage1_kernel(%arg0: memref<4x75x392xf32, #tpu.memory_space<vmem>>, %arg1: memref<6x75xf32, #tpu.memory_space<vmem>>, %arg2: memref<6x1xf32, #tpu.memory_space<vmem>>, %arg3: memref<6x392xf32, #tpu.memory_space<vmem>>) attributes {dimension_semantics = [], scalar_prefetch = 0 : i64, scratch_operands = 0 : i64, tpu.core_type = #tpu.core_type<tc>} {
    %c0 = arith.constant 0 : index
    %c0_0 = arith.constant 0 : index
    %0 = vector.load %arg1[%c0, %c0_0] : memref<6x75xf32, #tpu.memory_space<vmem>>, vector<6x75xf32>
    %c0_1 = arith.constant 0 : index
    %c0_2 = arith.constant 0 : index
    %c0_3 = arith.constant 0 : index
    %1 = vector.load %arg0[%c0_1, %c0_2, %c0_3] : memref<4x75x392xf32, #tpu.memory_space<vmem>>, vector<1x75x392xf32>
    %2 = vector.shape_cast %1 : vector<1x75x392xf32> to vector<75x392xf32>
    %cst = arith.constant dense<0.000000e+00> : vector<6x392xf32>
    %3 = tpu.matmul %0, %2, %cst {dimension_numbers = #tpu.dot_dimension_numbers<[1], [0], [0], [1], [0, 0, 1, 1], [], []>} : vector<6x75xf32>, vector<75x392xf32>, vector<6x392xf32> -> vector<6x392xf32>
    %c1 = arith.constant 1 : index
    %c0_4 = arith.constant 0 : index
    %c0_5 = arith.constant 0 : index
    %4 = vector.load %arg0[%c1, %c0_4, %c0_5] : memref<4x75x392xf32, #tpu.memory_space<vmem>>, vector<1x75x392xf32>
    %5 = vector.shape_cast %4 : vector<1x75x392xf32> to vector<75x392xf32>
    %cst_6 = arith.constant dense<0.000000e+00> : vector<6x392xf32>
    %6 = tpu.matmul %0, %5, %cst_6 {dimension_numbers = #tpu.dot_dimension_numbers<[1], [0], [0], [1], [0, 0, 1, 1], [], []>} : vector<6x75xf32>, vector<75x392xf32>, vector<6x392xf32> -> vector<6x392xf32>
    %7 = arith.maximumf %3, %6 : vector<6x392xf32>
    %c2 = arith.constant 2 : index
    %c0_7 = arith.constant 0 : index
    %c0_8 = arith.constant 0 : index
    %8 = vector.load %arg0[%c2, %c0_7, %c0_8] : memref<4x75x392xf32, #tpu.memory_space<vmem>>, vector<1x75x392xf32>
    %9 = vector.shape_cast %8 : vector<1x75x392xf32> to vector<75x392xf32>
    %cst_9 = arith.constant dense<0.000000e+00> : vector<6x392xf32>
    %10 = tpu.matmul %0, %9, %cst_9 {dimension_numbers = #tpu.dot_dimension_numbers<[1], [0], [0], [1], [0, 0, 1, 1], [], []>} : vector<6x75xf32>, vector<75x392xf32>, vector<6x392xf32> -> vector<6x392xf32>
    %11 = arith.maximumf %7, %10 : vector<6x392xf32>
    %c3 = arith.constant 3 : index
    %c0_10 = arith.constant 0 : index
    %c0_11 = arith.constant 0 : index
    %12 = vector.load %arg0[%c3, %c0_10, %c0_11] : memref<4x75x392xf32, #tpu.memory_space<vmem>>, vector<1x75x392xf32>
    %13 = vector.shape_cast %12 : vector<1x75x392xf32> to vector<75x392xf32>
    %cst_12 = arith.constant dense<0.000000e+00> : vector<6x392xf32>
    %14 = tpu.matmul %0, %13, %cst_12 {dimension_numbers = #tpu.dot_dimension_numbers<[1], [0], [0], [1], [0, 0, 1, 1], [], []>} : vector<6x75xf32>, vector<75x392xf32>, vector<6x392xf32> -> vector<6x392xf32>
    %15 = arith.maximumf %11, %14 : vector<6x392xf32>
    %c0_13 = arith.constant 0 : index
    %c0_14 = arith.constant 0 : index
    %16 = vector.load %arg2[%c0_13, %c0_14] : memref<6x1xf32, #tpu.memory_space<vmem>>, vector<6x1xf32>
    %17 = vector.broadcast %16 : vector<6x1xf32> to vector<6x392xf32>
    %18 = arith.addf %15, %17 : vector<6x392xf32>
    %cst_15 = arith.constant 0.000000e+00 : f32
    %19 = vector.broadcast %cst_15 : f32 to vector<6x392xf32>
    %20 = arith.maximumf %18, %19 : vector<6x392xf32>
    %c0_16 = arith.constant 0 : index
    %c0_17 = arith.constant 0 : index
    %21 = vector.load %arg3[%c0_16, %c0_17] : memref<6x392xf32, #tpu.memory_space<vmem>>, vector<6x392xf32>
    tpu.vector_store %arg3[%c0_16, %c0_17], %20 {strides = array<i32>} : memref<6x392xf32, #tpu.memory_space<vmem>>, vector<6x392xf32>,
    return
  }
}

module attributes {stable_mosaic.version = 11 : i64} {
  func.func @_stage2_kernel(%arg0: memref<4x50x150xf32, #tpu.memory_space<vmem>>, %arg1: memref<150x16xf32, #tpu.memory_space<vmem>>, %arg2: memref<1x16xf32, #tpu.memory_space<vmem>>, %arg3: memref<25x16x120xf32, #tpu.memory_space<vmem>>, %arg4: memref<1x120xf32, #tpu.memory_space<vmem>>, %arg5: memref<120x84xf32, #tpu.memory_space<vmem>>, %arg6: memref<1x84xf32, #tpu.memory_space<vmem>>, %arg7: memref<84x10xf32, #tpu.memory_space<vmem>>, %arg8: memref<1x10xf32, #tpu.memory_space<vmem>>, %arg9: memref<2x10xf32, #tpu.memory_space<vmem>>, %arg10: memref<50x16xf32, #tpu.memory_space<vmem>>) attributes {dimension_semantics = [], scalar_prefetch = 0 : i64, scratch_operands = 1 : i64, tpu.core_type = #tpu.core_type<tc>} {
    %c0 = arith.constant 0 : index
    %c0_0 = arith.constant 0 : index
    %0 = vector.load %arg1[%c0, %c0_0] : memref<150x16xf32, #tpu.memory_space<vmem>>, vector<150x16xf32>
    %c0_1 = arith.constant 0 : index
    %c0_2 = arith.constant 0 : index
    %c0_3 = arith.constant 0 : index
    %1 = vector.load %arg0[%c0_1, %c0_2, %c0_3] : memref<4x50x150xf32, #tpu.memory_space<vmem>>, vector<1x50x150xf32>
    %2 = vector.shape_cast %1 : vector<1x50x150xf32> to vector<50x150xf32>
    %cst = arith.constant dense<0.000000e+00> : vector<50x16xf32>
    %3 = tpu.matmul %2, %0, %cst {dimension_numbers = #tpu.dot_dimension_numbers<[1], [0], [0], [1], [0, 0, 1, 1], [], []>} : vector<50x150xf32>, vector<150x16xf32>, vector<50x16xf32> -> vector<50x16xf32>
    %c1 = arith.constant 1 : index
    %c0_4 = arith.constant 0 : index
    %c0_5 = arith.constant 0 : index
    %4 = vector.load %arg0[%c1, %c0_4, %c0_5] : memref<4x50x150xf32, #tpu.memory_space<vmem>>, vector<1x50x150xf32>
    %5 = vector.shape_cast %4 : vector<1x50x150xf32> to vector<50x150xf32>
    %cst_6 = arith.constant dense<0.000000e+00> : vector<50x16xf32>
    %6 = tpu.matmul %5, %0, %cst_6 {dimension_numbers = #tpu.dot_dimension_numbers<[1], [0], [0], [1], [0, 0, 1, 1], [], []>} : vector<50x150xf32>, vector<150x16xf32>, vector<50x16xf32> -> vector<50x16xf32>
    %7 = arith.maximumf %3, %6 : vector<50x16xf32>
    %c2 = arith.constant 2 : index
    %c0_7 = arith.constant 0 : index
    %c0_8 = arith.constant 0 : index
    %8 = vector.load %arg0[%c2, %c0_7, %c0_8] : memref<4x50x150xf32, #tpu.memory_space<vmem>>, vector<1x50x150xf32>
    %9 = vector.shape_cast %8 : vector<1x50x150xf32> to vector<50x150xf32>
    %cst_9 = arith.constant dense<0.000000e+00> : vector<50x16xf32>
    %10 = tpu.matmul %9, %0, %cst_9 {dimension_numbers = #tpu.dot_dimension_numbers<[1], [0], [0], [1], [0, 0, 1, 1], [], []>} : vector<50x150xf32>, vector<150x16xf32>, vector<50x16xf32> -> vector<50x16xf32>
    %11 = arith.maximumf %7, %10 : vector<50x16xf32>
    %c3 = arith.constant 3 : index
    %c0_10 = arith.constant 0 : index
    %c0_11 = arith.constant 0 : index
    %12 = vector.load %arg0[%c3, %c0_10, %c0_11] : memref<4x50x150xf32, #tpu.memory_space<vmem>>, vector<1x50x150xf32>
    %13 = vector.shape_cast %12 : vector<1x50x150xf32> to vector<50x150xf32>
    %cst_12 = arith.constant dense<0.000000e+00> : vector<50x16xf32>
    %14 = tpu.matmul %13, %0, %cst_12 {dimension_numbers = #tpu.dot_dimension_numbers<[1], [0], [0], [1], [0, 0, 1, 1], [], []>} : vector<50x150xf32>, vector<150x16xf32>, vector<50x16xf32> -> vector<50x16xf32>
    %15 = arith.maximumf %11, %14 : vector<50x16xf32>
    %c0_13 = arith.constant 0 : index
    %c0_14 = arith.constant 0 : index
    %16 = vector.load %arg2[%c0_13, %c0_14] : memref<1x16xf32, #tpu.memory_space<vmem>>, vector<1x16xf32>
    %17 = vector.broadcast %16 : vector<1x16xf32> to vector<50x16xf32>
    %18 = arith.addf %15, %17 : vector<50x16xf32>
    %cst_15 = arith.constant 0.000000e+00 : f32
    %19 = vector.broadcast %cst_15 : f32 to vector<50x16xf32>
    %20 = arith.maximumf %18, %19 : vector<50x16xf32>
    %c0_16 = arith.constant 0 : index
    %c0_17 = arith.constant 0 : index
    %21 = vector.load %arg10[%c0_16, %c0_17] : memref<50x16xf32, #tpu.memory_space<vmem>>, vector<50x16xf32>
    tpu.vector_store %arg10[%c0_16, %c0_17], %20 {strides = array<i32>} : memref<50x16xf32, #tpu.memory_space<vmem>>, vector<50x16xf32>,
    %c0_18 = arith.constant 0 : index
    %c0_19 = arith.constant 0 : index
    %22 = vector.load %arg10[%c0_18, %c0_19] : memref<50x16xf32, #tpu.memory_space<vmem>>, vector<2x16xf32>
    %c0_20 = arith.constant 0 : index
    %c0_21 = arith.constant 0 : index
    %c0_22 = arith.constant 0 : index
    %23 = vector.load %arg3[%c0_20, %c0_21, %c0_22] : memref<25x16x120xf32, #tpu.memory_space<vmem>>, vector<1x16x120xf32>
    %24 = vector.shape_cast %23 : vector<1x16x120xf32> to vector<16x120xf32>
    %cst_23 = arith.constant dense<0.000000e+00> : vector<2x120xf32>
    %25 = tpu.matmul %22, %24, %cst_23 {dimension_numbers = #tpu.dot_dimension_numbers<[1], [0], [0], [1], [0, 0, 1, 1], [], []>} : vector<2x16xf32>, vector<16x120xf32>, vector<2x120xf32> -> vector<2x120xf32>
    %c2_24 = arith.constant 2 : index
    %c0_25 = arith.constant 0 : index
    %26 = vector.load %arg10[%c2_24, %c0_25] : memref<50x16xf32, #tpu.memory_space<vmem>>, vector<2x16xf32>
    %c1_26 = arith.constant 1 : index
    %c0_27 = arith.constant 0 : index
    %c0_28 = arith.constant 0 : index
    %27 = vector.load %arg3[%c1_26, %c0_27, %c0_28] : memref<25x16x120xf32, #tpu.memory_space<vmem>>, vector<1x16x120xf32>
    %28 = vector.shape_cast %27 : vector<1x16x120xf32> to vector<16x120xf32>
    %cst_29 = arith.constant dense<0.000000e+00> : vector<2x120xf32>
    %29 = tpu.matmul %26, %28, %cst_29 {dimension_numbers = #tpu.dot_dimension_numbers<[1], [0], [0], [1], [0, 0, 1, 1], [], []>} : vector<2x16xf32>, vector<16x120xf32>, vector<2x120xf32> -> vector<2x120xf32>
    %30 = arith.addf %25, %29 : vector<2x120xf32>
    %c4 = arith.constant 4 : index
    %c0_30 = arith.constant 0 : index
    %31 = vector.load %arg10[%c4, %c0_30] : memref<50x16xf32, #tpu.memory_space<vmem>>, vector<2x16xf32>
    %c2_31 = arith.constant 2 : index
    %c0_32 = arith.constant 0 : index
    %c0_33 = arith.constant 0 : index
    %32 = vector.load %arg3[%c2_31, %c0_32, %c0_33] : memref<25x16x120xf32, #tpu.memory_space<vmem>>, vector<1x16x120xf32>
    %33 = vector.shape_cast %32 : vector<1x16x120xf32> to vector<16x120xf32>
    %cst_34 = arith.constant dense<0.000000e+00> : vector<2x120xf32>
    %34 = tpu.matmul %31, %33, %cst_34 {dimension_numbers = #tpu.dot_dimension_numbers<[1], [0], [0], [1], [0, 0, 1, 1], [], []>} : vector<2x16xf32>, vector<16x120xf32>, vector<2x120xf32> -> vector<2x120xf32>
    %35 = arith.addf %30, %34 : vector<2x120xf32>
    %c6 = arith.constant 6 : index
    %c0_35 = arith.constant 0 : index
    %36 = vector.load %arg10[%c6, %c0_35] : memref<50x16xf32, #tpu.memory_space<vmem>>, vector<2x16xf32>
    %c3_36 = arith.constant 3 : index
    %c0_37 = arith.constant 0 : index
    %c0_38 = arith.constant 0 : index
    %37 = vector.load %arg3[%c3_36, %c0_37, %c0_38] : memref<25x16x120xf32, #tpu.memory_space<vmem>>, vector<1x16x120xf32>
    %38 = vector.shape_cast %37 : vector<1x16x120xf32> to vector<16x120xf32>
    %cst_39 = arith.constant dense<0.000000e+00> : vector<2x120xf32>
    %39 = tpu.matmul %36, %38, %cst_39 {dimension_numbers = #tpu.dot_dimension_numbers<[1], [0], [0], [1], [0, 0, 1, 1], [], []>} : vector<2x16xf32>, vector<16x120xf32>, vector<2x120xf32> -> vector<2x120xf32>
    %40 = arith.addf %35, %39 : vector<2x120xf32>
    %c8 = arith.constant 8 : index
    %c0_40 = arith.constant 0 : index
    %41 = vector.load %arg10[%c8, %c0_40] : memref<50x16xf32, #tpu.memory_space<vmem>>, vector<2x16xf32>
    %c4_41 = arith.constant 4 : index
    %c0_42 = arith.constant 0 : index
    %c0_43 = arith.constant 0 : index
    %42 = vector.load %arg3[%c4_41, %c0_42, %c0_43] : memref<25x16x120xf32, #tpu.memory_space<vmem>>, vector<1x16x120xf32>
    %43 = vector.shape_cast %42 : vector<1x16x120xf32> to vector<16x120xf32>
    %cst_44 = arith.constant dense<0.000000e+00> : vector<2x120xf32>
    %44 = tpu.matmul %41, %43, %cst_44 {dimension_numbers = #tpu.dot_dimension_numbers<[1], [0], [0], [1], [0, 0, 1, 1], [], []>} : vector<2x16xf32>, vector<16x120xf32>, vector<2x120xf32> -> vector<2x120xf32>
    %45 = arith.addf %40, %44 : vector<2x120xf32>
    %c10 = arith.constant 10 : index
    %c0_45 = arith.constant 0 : index
    %46 = vector.load %arg10[%c10, %c0_45] : memref<50x16xf32, #tpu.memory_space<vmem>>, vector<2x16xf32>
    %c5 = arith.constant 5 : index
    %c0_46 = arith.constant 0 : index
    %c0_47 = arith.constant 0 : index
    %47 = vector.load %arg3[%c5, %c0_46, %c0_47] : memref<25x16x120xf32, #tpu.memory_space<vmem>>, vector<1x16x120xf32>
    %48 = vector.shape_cast %47 : vector<1x16x120xf32> to vector<16x120xf32>
    %cst_48 = arith.constant dense<0.000000e+00> : vector<2x120xf32>
    %49 = tpu.matmul %46, %48, %cst_48 {dimension_numbers = #tpu.dot_dimension_numbers<[1], [0], [0], [1], [0, 0, 1, 1], [], []>} : vector<2x16xf32>, vector<16x120xf32>, vector<2x120xf32> -> vector<2x120xf32>
    %50 = arith.addf %45, %49 : vector<2x120xf32>
    %c12 = arith.constant 12 : index
    %c0_49 = arith.constant 0 : index
    %51 = vector.load %arg10[%c12, %c0_49] : memref<50x16xf32, #tpu.memory_space<vmem>>, vector<2x16xf32>
    %c6_50 = arith.constant 6 : index
    %c0_51 = arith.constant 0 : index
    %c0_52 = arith.constant 0 : index
    %52 = vector.load %arg3[%c6_50, %c0_51, %c0_52] : memref<25x16x120xf32, #tpu.memory_space<vmem>>, vector<1x16x120xf32>
    %53 = vector.shape_cast %52 : vector<1x16x120xf32> to vector<16x120xf32>
    %cst_53 = arith.constant dense<0.000000e+00> : vector<2x120xf32>
    %54 = tpu.matmul %51, %53, %cst_53 {dimension_numbers = #tpu.dot_dimension_numbers<[1], [0], [0], [1], [0, 0, 1, 1], [], []>} : vector<2x16xf32>, vector<16x120xf32>, vector<2x120xf32> -> vector<2x120xf32>
    %55 = arith.addf %50, %54 : vector<2x120xf32>
    %c14 = arith.constant 14 : index
    %c0_54 = arith.constant 0 : index
    %56 = vector.load %arg10[%c14, %c0_54] : memref<50x16xf32, #tpu.memory_space<vmem>>, vector<2x16xf32>
    %c7 = arith.constant 7 : index
    %c0_55 = arith.constant 0 : index
    %c0_56 = arith.constant 0 : index
    %57 = vector.load %arg3[%c7, %c0_55, %c0_56] : memref<25x16x120xf32, #tpu.memory_space<vmem>>, vector<1x16x120xf32>
    %58 = vector.shape_cast %57 : vector<1x16x120xf32> to vector<16x120xf32>
    %cst_57 = arith.constant dense<0.000000e+00> : vector<2x120xf32>
    %59 = tpu.matmul %56, %58, %cst_57 {dimension_numbers = #tpu.dot_dimension_numbers<[1], [0], [0], [1], [0, 0, 1, 1], [], []>} : vector<2x16xf32>, vector<16x120xf32>, vector<2x120xf32> -> vector<2x120xf32>
    %60 = arith.addf %55, %59 : vector<2x120xf32>
    %c16 = arith.constant 16 : index
    %c0_58 = arith.constant 0 : index
    %61 = vector.load %arg10[%c16, %c0_58] : memref<50x16xf32, #tpu.memory_space<vmem>>, vector<2x16xf32>
    %c8_59 = arith.constant 8 : index
    %c0_60 = arith.constant 0 : index
    %c0_61 = arith.constant 0 : index
    %62 = vector.load %arg3[%c8_59, %c0_60, %c0_61] : memref<25x16x120xf32, #tpu.memory_space<vmem>>, vector<1x16x120xf32>
    %63 = vector.shape_cast %62 : vector<1x16x120xf32> to vector<16x120xf32>
    %cst_62 = arith.constant dense<0.000000e+00> : vector<2x120xf32>
    %64 = tpu.matmul %61, %63, %cst_62 {dimension_numbers = #tpu.dot_dimension_numbers<[1], [0], [0], [1], [0, 0, 1, 1], [], []>} : vector<2x16xf32>, vector<16x120xf32>, vector<2x120xf32> -> vector<2x120xf32>
    %65 = arith.addf %60, %64 : vector<2x120xf32>
    %c18 = arith.constant 18 : index
    %c0_63 = arith.constant 0 : index
    %66 = vector.load %arg10[%c18, %c0_63] : memref<50x16xf32, #tpu.memory_space<vmem>>, vector<2x16xf32>
    %c9 = arith.constant 9 : index
    %c0_64 = arith.constant 0 : index
    %c0_65 = arith.constant 0 : index
    %67 = vector.load %arg3[%c9, %c0_64, %c0_65] : memref<25x16x120xf32, #tpu.memory_space<vmem>>, vector<1x16x120xf32>
    %68 = vector.shape_cast %67 : vector<1x16x120xf32> to vector<16x120xf32>
    %cst_66 = arith.constant dense<0.000000e+00> : vector<2x120xf32>
    %69 = tpu.matmul %66, %68, %cst_66 {dimension_numbers = #tpu.dot_dimension_numbers<[1], [0], [0], [1], [0, 0, 1, 1], [], []>} : vector<2x16xf32>, vector<16x120xf32>, vector<2x120xf32> -> vector<2x120xf32>
    %70 = arith.addf %65, %69 : vector<2x120xf32>
    %c20 = arith.constant 20 : index
    %c0_67 = arith.constant 0 : index
    %71 = vector.load %arg10[%c20, %c0_67] : memref<50x16xf32, #tpu.memory_space<vmem>>, vector<2x16xf32>
    %c10_68 = arith.constant 10 : index
    %c0_69 = arith.constant 0 : index
    %c0_70 = arith.constant 0 : index
    %72 = vector.load %arg3[%c10_68, %c0_69, %c0_70] : memref<25x16x120xf32, #tpu.memory_space<vmem>>, vector<1x16x120xf32>
    %73 = vector.shape_cast %72 : vector<1x16x120xf32> to vector<16x120xf32>
    %cst_71 = arith.constant dense<0.000000e+00> : vector<2x120xf32>
    %74 = tpu.matmul %71, %73, %cst_71 {dimension_numbers = #tpu.dot_dimension_numbers<[1], [0], [0], [1], [0, 0, 1, 1], [], []>} : vector<2x16xf32>, vector<16x120xf32>, vector<2x120xf32> -> vector<2x120xf32>
    %75 = arith.addf %70, %74 : vector<2x120xf32>
    %c22 = arith.constant 22 : index
    %c0_72 = arith.constant 0 : index
    %76 = vector.load %arg10[%c22, %c0_72] : memref<50x16xf32, #tpu.memory_space<vmem>>, vector<2x16xf32>
    %c11 = arith.constant 11 : index
    %c0_73 = arith.constant 0 : index
    %c0_74 = arith.constant 0 : index
    %77 = vector.load %arg3[%c11, %c0_73, %c0_74] : memref<25x16x120xf32, #tpu.memory_space<vmem>>, vector<1x16x120xf32>
    %78 = vector.shape_cast %77 : vector<1x16x120xf32> to vector<16x120xf32>
    %cst_75 = arith.constant dense<0.000000e+00> : vector<2x120xf32>
    %79 = tpu.matmul %76, %78, %cst_75 {dimension_numbers = #tpu.dot_dimension_numbers<[1], [0], [0], [1], [0, 0, 1, 1], [], []>} : vector<2x16xf32>, vector<16x120xf32>, vector<2x120xf32> -> vector<2x120xf32>
    %80 = arith.addf %75, %79 : vector<2x120xf32>
    %c24 = arith.constant 24 : index
    %c0_76 = arith.constant 0 : index
    %81 = vector.load %arg10[%c24, %c0_76] : memref<50x16xf32, #tpu.memory_space<vmem>>, vector<2x16xf32>
    %c12_77 = arith.constant 12 : index
    %c0_78 = arith.constant 0 : index
    %c0_79 = arith.constant 0 : index
    %82 = vector.load %arg3[%c12_77, %c0_78, %c0_79] : memref<25x16x120xf32, #tpu.memory_space<vmem>>, vector<1x16x120xf32>
    %83 = vector.shape_cast %82 : vector<1x16x120xf32> to vector<16x120xf32>
    %cst_80 = arith.constant dense<0.000000e+00> : vector<2x120xf32>
    %84 = tpu.matmul %81, %83, %cst_80 {dimension_numbers = #tpu.dot_dimension_numbers<[1], [0], [0], [1], [0, 0, 1, 1], [], []>} : vector<2x16xf32>, vector<16x120xf32>, vector<2x120xf32> -> vector<2x120xf32>
    %85 = arith.addf %80, %84 : vector<2x120xf32>
    %c26 = arith.constant 26 : index
    %c0_81 = arith.constant 0 : index
    %86 = vector.load %arg10[%c26, %c0_81] : memref<50x16xf32, #tpu.memory_space<vmem>>, vector<2x16xf32>
    %c13 = arith.constant 13 : index
    %c0_82 = arith.constant 0 : index
    %c0_83 = arith.constant 0 : index
    %87 = vector.load %arg3[%c13, %c0_82, %c0_83] : memref<25x16x120xf32, #tpu.memory_space<vmem>>, vector<1x16x120xf32>
    %88 = vector.shape_cast %87 : vector<1x16x120xf32> to vector<16x120xf32>
    %cst_84 = arith.constant dense<0.000000e+00> : vector<2x120xf32>
    %89 = tpu.matmul %86, %88, %cst_84 {dimension_numbers = #tpu.dot_dimension_numbers<[1], [0], [0], [1], [0, 0, 1, 1], [], []>} : vector<2x16xf32>, vector<16x120xf32>, vector<2x120xf32> -> vector<2x120xf32>
    %90 = arith.addf %85, %89 : vector<2x120xf32>
    %c28 = arith.constant 28 : index
    %c0_85 = arith.constant 0 : index
    %91 = vector.load %arg10[%c28, %c0_85] : memref<50x16xf32, #tpu.memory_space<vmem>>, vector<2x16xf32>
    %c14_86 = arith.constant 14 : index
    %c0_87 = arith.constant 0 : index
    %c0_88 = arith.constant 0 : index
    %92 = vector.load %arg3[%c14_86, %c0_87, %c0_88] : memref<25x16x120xf32, #tpu.memory_space<vmem>>, vector<1x16x120xf32>
    %93 = vector.shape_cast %92 : vector<1x16x120xf32> to vector<16x120xf32>
    %cst_89 = arith.constant dense<0.000000e+00> : vector<2x120xf32>
    %94 = tpu.matmul %91, %93, %cst_89 {dimension_numbers = #tpu.dot_dimension_numbers<[1], [0], [0], [1], [0, 0, 1, 1], [], []>} : vector<2x16xf32>, vector<16x120xf32>, vector<2x120xf32> -> vector<2x120xf32>
    %95 = arith.addf %90, %94 : vector<2x120xf32>
    %c30 = arith.constant 30 : index
    %c0_90 = arith.constant 0 : index
    %96 = vector.load %arg10[%c30, %c0_90] : memref<50x16xf32, #tpu.memory_space<vmem>>, vector<2x16xf32>
    %c15 = arith.constant 15 : index
    %c0_91 = arith.constant 0 : index
    %c0_92 = arith.constant 0 : index
    %97 = vector.load %arg3[%c15, %c0_91, %c0_92] : memref<25x16x120xf32, #tpu.memory_space<vmem>>, vector<1x16x120xf32>
    %98 = vector.shape_cast %97 : vector<1x16x120xf32> to vector<16x120xf32>
    %cst_93 = arith.constant dense<0.000000e+00> : vector<2x120xf32>
    %99 = tpu.matmul %96, %98, %cst_93 {dimension_numbers = #tpu.dot_dimension_numbers<[1], [0], [0], [1], [0, 0, 1, 1], [], []>} : vector<2x16xf32>, vector<16x120xf32>, vector<2x120xf32> -> vector<2x120xf32>
    %100 = arith.addf %95, %99 : vector<2x120xf32>
    %c32 = arith.constant 32 : index
    %c0_94 = arith.constant 0 : index
    %101 = vector.load %arg10[%c32, %c0_94] : memref<50x16xf32, #tpu.memory_space<vmem>>, vector<2x16xf32>
    %c16_95 = arith.constant 16 : index
    %c0_96 = arith.constant 0 : index
    %c0_97 = arith.constant 0 : index
    %102 = vector.load %arg3[%c16_95, %c0_96, %c0_97] : memref<25x16x120xf32, #tpu.memory_space<vmem>>, vector<1x16x120xf32>
    %103 = vector.shape_cast %102 : vector<1x16x120xf32> to vector<16x120xf32>
    %cst_98 = arith.constant dense<0.000000e+00> : vector<2x120xf32>
    %104 = tpu.matmul %101, %103, %cst_98 {dimension_numbers = #tpu.dot_dimension_numbers<[1], [0], [0], [1], [0, 0, 1, 1], [], []>} : vector<2x16xf32>, vector<16x120xf32>, vector<2x120xf32> -> vector<2x120xf32>
    %105 = arith.addf %100, %104 : vector<2x120xf32>
    %c34 = arith.constant 34 : index
    %c0_99 = arith.constant 0 : index
    %106 = vector.load %arg10[%c34, %c0_99] : memref<50x16xf32, #tpu.memory_space<vmem>>, vector<2x16xf32>
    %c17 = arith.constant 17 : index
    %c0_100 = arith.constant 0 : index
    %c0_101 = arith.constant 0 : index
    %107 = vector.load %arg3[%c17, %c0_100, %c0_101] : memref<25x16x120xf32, #tpu.memory_space<vmem>>, vector<1x16x120xf32>
    %108 = vector.shape_cast %107 : vector<1x16x120xf32> to vector<16x120xf32>
    %cst_102 = arith.constant dense<0.000000e+00> : vector<2x120xf32>
    %109 = tpu.matmul %106, %108, %cst_102 {dimension_numbers = #tpu.dot_dimension_numbers<[1], [0], [0], [1], [0, 0, 1, 1], [], []>} : vector<2x16xf32>, vector<16x120xf32>, vector<2x120xf32> -> vector<2x120xf32>
    %110 = arith.addf %105, %109 : vector<2x120xf32>
    %c36 = arith.constant 36 : index
    %c0_103 = arith.constant 0 : index
    %111 = vector.load %arg10[%c36, %c0_103] : memref<50x16xf32, #tpu.memory_space<vmem>>, vector<2x16xf32>
    %c18_104 = arith.constant 18 : index
    %c0_105 = arith.constant 0 : index
    %c0_106 = arith.constant 0 : index
    %112 = vector.load %arg3[%c18_104, %c0_105, %c0_106] : memref<25x16x120xf32, #tpu.memory_space<vmem>>, vector<1x16x120xf32>
    %113 = vector.shape_cast %112 : vector<1x16x120xf32> to vector<16x120xf32>
    %cst_107 = arith.constant dense<0.000000e+00> : vector<2x120xf32>
    %114 = tpu.matmul %111, %113, %cst_107 {dimension_numbers = #tpu.dot_dimension_numbers<[1], [0], [0], [1], [0, 0, 1, 1], [], []>} : vector<2x16xf32>, vector<16x120xf32>, vector<2x120xf32> -> vector<2x120xf32>
    %115 = arith.addf %110, %114 : vector<2x120xf32>
    %c38 = arith.constant 38 : index
    %c0_108 = arith.constant 0 : index
    %116 = vector.load %arg10[%c38, %c0_108] : memref<50x16xf32, #tpu.memory_space<vmem>>, vector<2x16xf32>
    %c19 = arith.constant 19 : index
    %c0_109 = arith.constant 0 : index
    %c0_110 = arith.constant 0 : index
    %117 = vector.load %arg3[%c19, %c0_109, %c0_110] : memref<25x16x120xf32, #tpu.memory_space<vmem>>, vector<1x16x120xf32>
    %118 = vector.shape_cast %117 : vector<1x16x120xf32> to vector<16x120xf32>
    %cst_111 = arith.constant dense<0.000000e+00> : vector<2x120xf32>
    %119 = tpu.matmul %116, %118, %cst_111 {dimension_numbers = #tpu.dot_dimension_numbers<[1], [0], [0], [1], [0, 0, 1, 1], [], []>} : vector<2x16xf32>, vector<16x120xf32>, vector<2x120xf32> -> vector<2x120xf32>
    %120 = arith.addf %115, %119 : vector<2x120xf32>
    %c40 = arith.constant 40 : index
    %c0_112 = arith.constant 0 : index
    %121 = vector.load %arg10[%c40, %c0_112] : memref<50x16xf32, #tpu.memory_space<vmem>>, vector<2x16xf32>
    %c20_113 = arith.constant 20 : index
    %c0_114 = arith.constant 0 : index
    %c0_115 = arith.constant 0 : index
    %122 = vector.load %arg3[%c20_113, %c0_114, %c0_115] : memref<25x16x120xf32, #tpu.memory_space<vmem>>, vector<1x16x120xf32>
    %123 = vector.shape_cast %122 : vector<1x16x120xf32> to vector<16x120xf32>
    %cst_116 = arith.constant dense<0.000000e+00> : vector<2x120xf32>
    %124 = tpu.matmul %121, %123, %cst_116 {dimension_numbers = #tpu.dot_dimension_numbers<[1], [0], [0], [1], [0, 0, 1, 1], [], []>} : vector<2x16xf32>, vector<16x120xf32>, vector<2x120xf32> -> vector<2x120xf32>
    %125 = arith.addf %120, %124 : vector<2x120xf32>
    %c42 = arith.constant 42 : index
    %c0_117 = arith.constant 0 : index
    %126 = vector.load %arg10[%c42, %c0_117] : memref<50x16xf32, #tpu.memory_space<vmem>>, vector<2x16xf32>
    %c21 = arith.constant 21 : index
    %c0_118 = arith.constant 0 : index
    %c0_119 = arith.constant 0 : index
    %127 = vector.load %arg3[%c21, %c0_118, %c0_119] : memref<25x16x120xf32, #tpu.memory_space<vmem>>, vector<1x16x120xf32>
    %128 = vector.shape_cast %127 : vector<1x16x120xf32> to vector<16x120xf32>
    %cst_120 = arith.constant dense<0.000000e+00> : vector<2x120xf32>
    %129 = tpu.matmul %126, %128, %cst_120 {dimension_numbers = #tpu.dot_dimension_numbers<[1], [0], [0], [1], [0, 0, 1, 1], [], []>} : vector<2x16xf32>, vector<16x120xf32>, vector<2x120xf32> -> vector<2x120xf32>
    %130 = arith.addf %125, %129 : vector<2x120xf32>
    %c44 = arith.constant 44 : index
    %c0_121 = arith.constant 0 : index
    %131 = vector.load %arg10[%c44, %c0_121] : memref<50x16xf32, #tpu.memory_space<vmem>>, vector<2x16xf32>
    %c22_122 = arith.constant 22 : index
    %c0_123 = arith.constant 0 : index
    %c0_124 = arith.constant 0 : index
    %132 = vector.load %arg3[%c22_122, %c0_123, %c0_124] : memref<25x16x120xf32, #tpu.memory_space<vmem>>, vector<1x16x120xf32>
    %133 = vector.shape_cast %132 : vector<1x16x120xf32> to vector<16x120xf32>
    %cst_125 = arith.constant dense<0.000000e+00> : vector<2x120xf32>
    %134 = tpu.matmul %131, %133, %cst_125 {dimension_numbers = #tpu.dot_dimension_numbers<[1], [0], [0], [1], [0, 0, 1, 1], [], []>} : vector<2x16xf32>, vector<16x120xf32>, vector<2x120xf32> -> vector<2x120xf32>
    %135 = arith.addf %130, %134 : vector<2x120xf32>
    %c46 = arith.constant 46 : index
    %c0_126 = arith.constant 0 : index
    %136 = vector.load %arg10[%c46, %c0_126] : memref<50x16xf32, #tpu.memory_space<vmem>>, vector<2x16xf32>
    %c23 = arith.constant 23 : index
    %c0_127 = arith.constant 0 : index
    %c0_128 = arith.constant 0 : index
    %137 = vector.load %arg3[%c23, %c0_127, %c0_128] : memref<25x16x120xf32, #tpu.memory_space<vmem>>, vector<1x16x120xf32>
    %138 = vector.shape_cast %137 : vector<1x16x120xf32> to vector<16x120xf32>
    %cst_129 = arith.constant dense<0.000000e+00> : vector<2x120xf32>
    %139 = tpu.matmul %136, %138, %cst_129 {dimension_numbers = #tpu.dot_dimension_numbers<[1], [0], [0], [1], [0, 0, 1, 1], [], []>} : vector<2x16xf32>, vector<16x120xf32>, vector<2x120xf32> -> vector<2x120xf32>
    %140 = arith.addf %135, %139 : vector<2x120xf32>
    %c48 = arith.constant 48 : index
    %c0_130 = arith.constant 0 : index
    %141 = vector.load %arg10[%c48, %c0_130] : memref<50x16xf32, #tpu.memory_space<vmem>>, vector<2x16xf32>
    %c24_131 = arith.constant 24 : index
    %c0_132 = arith.constant 0 : index
    %c0_133 = arith.constant 0 : index
    %142 = vector.load %arg3[%c24_131, %c0_132, %c0_133] : memref<25x16x120xf32, #tpu.memory_space<vmem>>, vector<1x16x120xf32>
    %143 = vector.shape_cast %142 : vector<1x16x120xf32> to vector<16x120xf32>
    %cst_134 = arith.constant dense<0.000000e+00> : vector<2x120xf32>
    %144 = tpu.matmul %141, %143, %cst_134 {dimension_numbers = #tpu.dot_dimension_numbers<[1], [0], [0], [1], [0, 0, 1, 1], [], []>} : vector<2x16xf32>, vector<16x120xf32>, vector<2x120xf32> -> vector<2x120xf32>
    %145 = arith.addf %140, %144 : vector<2x120xf32>
    %c0_135 = arith.constant 0 : index
    %c0_136 = arith.constant 0 : index
    %146 = vector.load %arg4[%c0_135, %c0_136] : memref<1x120xf32, #tpu.memory_space<vmem>>, vector<1x120xf32>
    %147 = vector.broadcast %146 : vector<1x120xf32> to vector<2x120xf32>
    %148 = arith.addf %145, %147 : vector<2x120xf32>
    %cst_137 = arith.constant 0.000000e+00 : f32
    %149 = vector.broadcast %cst_137 : f32 to vector<2x120xf32>
    %150 = arith.maximumf %148, %149 : vector<2x120xf32>
    %c0_138 = arith.constant 0 : index
    %c0_139 = arith.constant 0 : index
    %151 = vector.load %arg5[%c0_138, %c0_139] : memref<120x84xf32, #tpu.memory_space<vmem>>, vector<120x84xf32>
    %cst_140 = arith.constant dense<0.000000e+00> : vector<2x84xf32>
    %152 = tpu.matmul %150, %151, %cst_140 {dimension_numbers = #tpu.dot_dimension_numbers<[1], [0], [0], [1], [0, 0, 1, 1], [], []>} : vector<2x120xf32>, vector<120x84xf32>, vector<2x84xf32> -> vector<2x84xf32>
    %c0_141 = arith.constant 0 : index
    %c0_142 = arith.constant 0 : index
    %153 = vector.load %arg6[%c0_141, %c0_142] : memref<1x84xf32, #tpu.memory_space<vmem>>, vector<1x84xf32>
    %154 = vector.broadcast %153 : vector<1x84xf32> to vector<2x84xf32>
    %155 = arith.addf %152, %154 : vector<2x84xf32>
    %cst_143 = arith.constant 0.000000e+00 : f32
    %156 = vector.broadcast %cst_143 : f32 to vector<2x84xf32>
    %157 = arith.maximumf %155, %156 : vector<2x84xf32>
    %c0_144 = arith.constant 0 : index
    %c0_145 = arith.constant 0 : index
    %158 = vector.load %arg7[%c0_144, %c0_145] : memref<84x10xf32, #tpu.memory_space<vmem>>, vector<84x10xf32>
    %cst_146 = arith.constant dense<0.000000e+00> : vector<2x10xf32>
    %159 = tpu.matmul %157, %158, %cst_146 {dimension_numbers = #tpu.dot_dimension_numbers<[1], [0], [0], [1], [0, 0, 1, 1], [], []>} : vector<2x84xf32>, vector<84x10xf32>, vector<2x10xf32> -> vector<2x10xf32>
    %c0_147 = arith.constant 0 : index
    %c0_148 = arith.constant 0 : index
    %160 = vector.load %arg8[%c0_147, %c0_148] : memref<1x10xf32, #tpu.memory_space<vmem>>, vector<1x10xf32>
    %161 = vector.broadcast %160 : vector<1x10xf32> to vector<2x10xf32>
    %162 = arith.addf %159, %161 : vector<2x10xf32>
    %c0_149 = arith.constant 0 : index
    %c0_150 = arith.constant 0 : index
    %163 = vector.load %arg9[%c0_149, %c0_150] : memref<2x10xf32, #tpu.memory_space<vmem>>, vector<2x10xf32>
    tpu.vector_store %arg9[%c0_149, %c0_150], %162 {strides = array<i32>} : memref<2x10xf32, #tpu.memory_space<vmem>>, vector<2x10xf32>,
    return
  }
}

</mosaic_0001>

<llo_original>
// kernel: conv_model_forward.2
$region0: #{conv_model_forward.2}
  #allocation0 [shape = 'u32[]', space=smem, size = 0x4, offset = 0x4, fixed_abs, tag = 'smem constant byte address 0x4 - core index']
  #allocation1 [shape = 'u32[144,128]{1,0:T(1,128)}', space=vmem, size = 0x12000, scoped, tag = 'internal scratch']
  %s0 = inlined_call_operand.vmem [shape: f32[4,75,392], index: 0, kind: input, shape index: {}]
  %s1 = inlined_call_operand.vmem [shape: f32[6,75], index: 1, kind: input, shape index: {}]
  %s2 = inlined_call_operand.vmem [shape: f32[6,1], index: 2, kind: input, shape index: {}]
  %s3 = inlined_call_operand.vmem [shape: f32[6,392], index: 3, kind: output, shape index: {}]
  %s4 = sld [smem:[#allocation0]]
  $region22: #{conv_model_forward.2} parent=0
    _
  %s6 = ssub.s32 1, %s4
  %s7 = scalar_select 0, %s6, %s4
  // Predicated region
  $region2: #{conv_model_forward.2} parent=0 // pred_check
    _
  $region3: #{conv_model_forward.2} parent=0 // pred_check_branch
    %9 = sbr.rel (0) target = $region5
  $region4: #{conv_model_forward.2} parent=0 // pred_region
    _
  $region5: #{conv_model_forward.2} parent=0 // pred_fallthru
    _
  // Predicated region
  $region6: #{conv_model_forward.2} parent=0 // pred_check
    _
  $region7: #{conv_model_forward.2} parent=0 // pred_check_branch
    %11 = sbr.rel (0) target = $region9
  $region8: #{conv_model_forward.2} parent=0 // pred_region
    _
  $region9: #{conv_model_forward.2} parent=0 // pred_fallthru
    _
  // Predicated region
  $region10: #{conv_model_forward.2} parent=0 // pred_check
    _
  $region11: #{conv_model_forward.2} parent=0 // pred_check_branch
    %13 = sbr.rel (0) target = $region13
  $region12: #{conv_model_forward.2} parent=0 // pred_region
    _
  $region13: #{conv_model_forward.2} parent=0 // pred_fallthru
    _
  %v14 = vld [vmem:[%s1] sm:$0x3f]
  %v15 = vld [vmem:[%s0] sm:$0xff]
  %v16 = vld [vmem:[%s0 + $0x8] sm:$0xff]
  %v17 = vld [vmem:[%s0 + $0x10] sm:$0xff]
  %v18 = vld [vmem:[%s0 + $0x18] sm:$0xff]
  %v19 = vld [vmem:[%s0 + $0x20] sm:$0xff]
  %v20 = vld [vmem:[%s0 + $0x28] sm:$0xff]
  %v21 = vld [vmem:[%s0 + $0x30] sm:$0xff]
  %v22 = vld [vmem:[%s0 + $0x38] sm:$0xff]
  %v23 = vld [vmem:[%s0 + $0x40] sm:$0xff]
  %v24 = vld [vmem:[%s0 + $0x48] sm:$0xff]
  %v25 = vld [vmem:[%s0 + $0x50] sm:$0xff]
  %v26 = vld [vmem:[%s0 + $0x58] sm:$0xff]
  %v27 = vld [vmem:[%s0 + $0x60] sm:$0xff]
  %v28 = vld [vmem:[%s0 + $0x68] sm:$0xff]
  %v29 = vld [vmem:[%s0 + $0x70] sm:$0xff]
  %v30 = vld [vmem:[%s0 + $0x78] sm:$0xff]
  %v31 = vld [vmem:[%s0 + $0x80] sm:$0xff]
  %v32 = vld [vmem:[%s0 + $0x88] sm:$0xff]
  %v33 = vld [vmem:[%s0 + $0x90] sm:$0xff]
  %v34 = vld [vmem:[%s0 + $0x98] sm:$0xff]
  %v35 = vld [vmem:[%s0 + $0xa0] sm:$0xff]
  %v36 = vld [vmem:[%s0 + $0xa8] sm:$0xff]
  %v37 = vld [vmem:[%s0 + $0xb0] sm:$0xff]
  %v38 = vld [vmem:[%s0 + $0xb8] sm:$0xff]
  %v39 = vld [vmem:[%s0 + $0xc0] sm:$0xff]
  %v40 = vld [vmem:[%s0 + $0xc8] sm:$0xff]
  %v41 = vld [vmem:[%s0 + $0xd0] sm:$0xff]
  %v42 = vld [vmem:[%s0 + $0xd8] sm:$0xff]
  %v43 = vld [vmem:[%s0 + $0xe0] sm:$0xff]
  %v44 = vld [vmem:[%s0 + $0xe8] sm:$0xff]
  %v45 = vld [vmem:[%s0 + $0xf0] sm:$0xff]
  %v46 = vld [vmem:[%s0 + $0xf8] sm:$0xff]
  %v47 = vld [vmem:[%s0 + $0x100] sm:$0xff]
  %v48 = vld [vmem:[%s0 + $0x108] sm:$0xff]
  %v49 = vld [vmem:[%s0 + $0x110] sm:$0xff]
  %v50 = vld [vmem:[%s0 + $0x118] sm:$0xff]
  %v51 = vld [vmem:[%s0 + $0x120] sm:$0x7]
  %v52 = vld [vmem:[%s0 + $0x128] sm:$0x7]
  %v53 = vld [vmem:[%s0 + $0x130] sm:$0x7]
  %v54 = vld [vmem:[%s0 + $0x138] sm:$0x7]
  %vm55 = vcmask 613376
  %v57 = vsel %vm55, %v14, 0
  %vm59 = vcmask 1042432
  %v61 = vsel %vm59, %v51, 0
  %v64 = vsel %vm59, %v52, 0
  %v67 = vsel %vm59, %v53, 0
  %v70 = vsel %vm59, %v54, 0
  %72 = vmatprep.subr.mxu0 %v16
  %73 = vmatpush1.msra.mxu0 %v15
  %74 = vmatprep.subr.mxu0 %v20
  %75 = vmatpush1.msra.mxu0 %v19
  %76 = vmatprep.subr.mxu0 %v24
  %77 = vmatpush1.msra.mxu0 %v23
  %78 = vmatprep.subr.mxu0 %v28
  %79 = vmatpush1.msra.mxu0 %v27
  %80 = vmatprep.subr.mxu0 %v32
  %81 = vmatpush1.msra.mxu0 %v31
  %82 = vmatprep.subr.mxu0 %v36
  %83 = vmatpush1.msra.mxu0 %v35
  %84 = vmatprep.subr.mxu0 %v40
  %85 = vmatpush1.msra.mxu0 %v39
  %86 = vmatprep.subr.mxu0 %v44
  %87 = vmatpush1.msra.mxu0 %v43
  %88 = vmatprep.subr.mxu0 %v48
  %89 = vmatpush1.msra.mxu0 %v47
  %90 = vmatprep.subr.mxu0 %v64
  %91 = vmatpush1.msra.mxu0 %v61
  %92 = vmatprep.subr.mxu0 0.0
  %93 = vmatpush1.msra.mxu0 0.0
  %94 = vmatprep.subr.mxu0 0.0
  %95 = vmatpush1.msra.mxu0 0.0
  %96 = vmatprep.subr.mxu0 0.0
  %97 = vmatpush1.msra.mxu0 0.0
  %98 = vmatprep.subr.mxu0 0.0
  %99 = vmatpush1.msra.mxu0 0.0
  %100 = vmatprep.subr.mxu0 0.0
  %101 = vmatpush1.msra.mxu0 0.0
  %102 = vmatprep.subr.mxu0 0.0
  %103 = vmatpush1.msra.mxu0 0.0
  %104 = vmatprep.subr.mxu0 0.0
  %105 = vmatpush1.msra.mxu0 0.0
  %106 = vmatprep.subr.mxu0 0.0
  %107 = vmatpush1.msra.mxu0 0.0
  %108 = vmatprep.subr.mxu0 0.0
  %109 = vmatpush1.msra.mxu0 0.0
  %110 = vmatprep.subr.mxu0 0.0
  %111 = vmatpush1.msra.mxu0 0.0
  %112 = vmatprep.subr.mxu0 0.0
  %113 = vmatpush1.msra.mxu0 0.0
  %114 = vmatprep.subr.mxu0 0.0
  %115 = vmatpush1.msra.mxu0 0.0
  %116 = vmatprep.subr.mxu0 0.0
  %117 = vmatpush1.msra.mxu0 0.0
  %118 = vmatprep.subr.mxu0 0.0
  %119 = vmatpush1.msra.mxu0 0.0
  %120 = vmatprep.subr.mxu0 0.0
  %121 = vmatpush1.msra.mxu0 0.0
  %122 = vmatprep.subr.mxu0 0.0
  %123 = vmatpush1.msra.mxu0 0.0
  %124 = vmatprep.subr.mxu0 0.0
  %125 = vmatpush1.msra.mxu0 0.0
  %126 = vmatprep.subr.mxu0 0.0
  %127 = vmatpush1.msra.mxu0 0.0
  %128 = vmatprep.subr.mxu0 0.0
  %129 = vmatpush1.msra.mxu0 0.0
  %130 = vmatprep.subr.mxu0 0.0
  %131 = vmatpush1.msra.mxu0 0.0
  %132 = vmatprep.subr.mxu0 0.0
  %133 = vmatpush1.msra.mxu0 0.0
  %134 = vmatprep.subr.mxu0 0.0
  %135 = vmatpush1.msra.mxu0 0.0
  %136 = vmatprep.mubr.f32.mxu0 0.0
  %137 = vmatmul.mubr.f32.gmra.mrb[0].mxu0 %v57
  %v138 = vpop.f32.mrb[0].mxu0
  %v139 = vadd.f32 0.0, %v138
  %v140 = vpop.f32.mrb[0].mxu0
  %v141 = vadd.f32 0.0, %v140
  %142 = vdwg.mxu0
  %143 = vmatprep.subr.mxu0 %v18
  %144 = vmatpush1.msra.mxu0 %v17
  %145 = vmatprep.subr.mxu0 %v22
  %146 = vmatpush1.msra.mxu0 %v21
  %147 = vmatprep.subr.mxu0 %v26
  %148 = vmatpush1.msra.mxu0 %v25
  %149 = vmatprep.subr.mxu0 %v30
  %150 = vmatpush1.msra.mxu0 %v29
  %151 = vmatprep.subr.mxu0 %v34
  %152 = vmatpush1.msra.mxu0 %v33
  %153 = vmatprep.subr.mxu0 %v38
  %154 = vmatpush1.msra.mxu0 %v37
  %155 = vmatprep.subr.mxu0 %v42
  %156 = vmatpush1.msra.mxu0 %v41
  %157 = vmatprep.subr.mxu0 %v46
  %158 = vmatpush1.msra.mxu0 %v45
  %159 = vmatprep.subr.mxu0 %v50
  %160 = vmatpush1.msra.mxu0 %v49
  %161 = vmatprep.subr.mxu0 %v70
  %162 = vmatpush1.msra.mxu0 %v67
  %163 = vmatprep.subr.mxu0 0.0
  %164 = vmatpush1.msra.mxu0 0.0
  %165 = vmatprep.subr.mxu0 0.0
  %166 = vmatpush1.msra.mxu0 0.0
  %167 = vmatprep.subr.mxu0 0.0
  %168 = vmatpush1.msra.mxu0 0.0
  %169 = vmatprep.subr.mxu0 0.0
  %170 = vmatpush1.msra.mxu0 0.0
  %171 = vmatprep.subr.mxu0 0.0
  %172 = vmatpush1.msra.mxu0 0.0
  %173 = vmatprep.subr.mxu0 0.0
  %174 = vmatpush1.msra.mxu0 0.0
  %175 = vmatprep.subr.mxu0 0.0
  %176 = vmatpush1.msra.mxu0 0.0
  %177 = vmatprep.subr.mxu0 0.0
  %178 = vmatpush1.msra.mxu0 0.0
  %179 = vmatprep.subr.mxu0 0.0
  %180 = vmatpush1.msra.mxu0 0.0
  %181 = vmatprep.subr.mxu0 0.0
  %182 = vmatpush1.msra.mxu0 0.0
  %183 = vmatprep.subr.mxu0 0.0
  %184 = vmatpush1.msra.mxu0 0.0
  %185 = vmatprep.subr.mxu0 0.0
  %186 = vmatpush1.msra.mxu0 0.0
  %187 = vmatprep.subr.mxu0 0.0
  %188 = vmatpush1.msra.mxu0 0.0
  %189 = vmatprep.subr.mxu0 0.0
  %190 = vmatpush1.msra.mxu0 0.0
  %191 = vmatprep.subr.mxu0 0.0
  %192 = vmatpush1.msra.mxu0 0.0
  %193 = vmatprep.subr.mxu0 0.0
  %194 = vmatpush1.msra.mxu0 0.0
  %195 = vmatprep.subr.mxu0 0.0
  %196 = vmatpush1.msra.mxu0 0.0
  %197 = vmatprep.subr.mxu0 0.0
  %198 = vmatpush1.msra.mxu0 0.0
  %199 = vmatprep.subr.mxu0 0.0
  %200 = vmatpush1.msra.mxu0 0.0
  %201 = vmatprep.subr.mxu0 0.0
  %202 = vmatpush1.msra.mxu0 0.0
  %203 = vmatprep.subr.mxu0 0.0
  %204 = vmatpush1.msra.mxu0 0.0
  %205 = vmatprep.subr.mxu0 0.0
  %206 = vmatpush1.msra.mxu0 0.0
  %207 = vmatprep.mubr.f32.mxu0 0.0
  %208 = vmatmul.mubr.f32.gmra.mrb[0].mxu0 %v57
  %v209 = vpop.f32.mrb[0].mxu0
  %v210 = vadd.f32 0.0, %v209
  %v211 = vpop.f32.mrb[0].mxu0
  %v212 = vadd.f32 0.0, %v211
  %213 = vdwg.mxu0
  %s214 = scalar_lea.vmem %s0, 320
  %v215 = vld [vmem:[%s214] sm:$0xff]
  %v216 = vld [vmem:[%s214 + $0x8] sm:$0xff]
  %v217 = vld [vmem:[%s214 + $0x10] sm:$0xff]
  %v218 = vld [vmem:[%s214 + $0x18] sm:$0xff]
  %v219 = vld [vmem:[%s214 + $0x20] sm:$0xff]
  %v220 = vld [vmem:[%s214 + $0x28] sm:$0xff]
  %v221 = vld [vmem:[%s214 + $0x30] sm:$0xff]
  %v222 = vld [vmem:[%s214 + $0x38] sm:$0xff]
  %v223 = vld [vmem:[%s214 + $0x40] sm:$0xff]
  %v224 = vld [vmem:[%s214 + $0x48] sm:$0xff]
  %v225 = vld [vmem:[%s214 + $0x50] sm:$0xff]
  %v226 = vld [vmem:[%s214 + $0x58] sm:$0xff]
  %v227 = vld [vmem:[%s214 + $0x60] sm:$0xff]
  %v228 = vld [vmem:[%s214 + $0x68] sm:$0xff]
  %v229 = vld [vmem:[%s214 + $0x70] sm:$0xff]
  %v230 = vld [vmem:[%s214 + $0x78] sm:$0xff]
  %v231 = vld [vmem:[%s214 + $0x80] sm:$0xff]
  %v232 = vld [vmem:[%s214 + $0x88] sm:$0xff]
  %v233 = vld [vmem:[%s214 + $0x90] sm:$0xff]
  %v234 = vld [vmem:[%s214 + $0x98] sm:$0xff]
  %v235 = vld [vmem:[%s214 + $0xa0] sm:$0xff]
  %v236 = vld [vmem:[%s214 + $0xa8] sm:$0xff]
  %v237 = vld [vmem:[%s214 + $0xb0] sm:$0xff]
  %v238 = vld [vmem:[%s214 + $0xb8] sm:$0xff]
  %v239 = vld [vmem:[%s214 + $0xc0] sm:$0xff]
  %v240 = vld [vmem:[%s214 + $0xc8] sm:$0xff]
  %v241 = vld [vmem:[%s214 + $0xd0] sm:$0xff]
  %v242 = vld [vmem:[%s214 + $0xd8] sm:$0xff]
  %v243 = vld [vmem:[%s214 + $0xe0] sm:$0xff]
  %v244 = vld [vmem:[%s214 + $0xe8] sm:$0xff]
  %v245 = vld [vmem:[%s214 + $0xf0] sm:$0xff]
  %v246 = vld [vmem:[%s214 + $0xf8] sm:$0xff]
  %v247 = vld [vmem:[%s214 + $0x100] sm:$0xff]
  %v248 = vld [vmem:[%s214 + $0x108] sm:$0xff]
  %v249 = vld [vmem:[%s214 + $0x110] sm:$0xff]
  %v250 = vld [vmem:[%s214 + $0x118] sm:$0xff]
  %v251 = vld [vmem:[%s214 + $0x120] sm:$0x7]
  %v252 = vld [vmem:[%s214 + $0x128] sm:$0x7]
  %v253 = vld [vmem:[%s214 + $0x130] sm:$0x7]
  %v254 = vld [vmem:[%s214 + $0x138] sm:$0x7]
  %v256 = vsel %vm59, %v251, 0
  %v259 = vsel %vm59, %v252, 0
  %v262 = vsel %vm59, %v253, 0
  %v265 = vsel %vm59, %v254, 0
  %267 = vmatprep.subr.mxu0 %v216
  %268 = vmatpush1.msra.mxu0 %v215
  %269 = vmatprep.subr.mxu0 %v220
  %270 = vmatpush1.msra.mxu0 %v219
  %271 = vmatprep.subr.mxu0 %v224
  %272 = vmatpush1.msra.mxu0 %v223
  %273 = vmatprep.subr.mxu0 %v228
  %274 = vmatpush1.msra.mxu0 %v227
  %275 = vmatprep.subr.mxu0 %v232
  %276 = vmatpush1.msra.mxu0 %v231
  %277 = vmatprep.subr.mxu0 %v236
  %278 = vmatpush1.msra.mxu0 %v235
  %279 = vmatprep.subr.mxu0 %v240
  %280 = vmatpush1.msra.mxu0 %v239
  %281 = vmatprep.subr.mxu0 %v244
  %282 = vmatpush1.msra.mxu0 %v243
  %283 = vmatprep.subr.mxu0 %v248
  %284 = vmatpush1.msra.mxu0 %v247
  %285 = vmatprep.subr.mxu0 %v259
  %286 = vmatpush1.msra.mxu0 %v256
  %287 = vmatprep.subr.mxu0 0.0
  %288 = vmatpush1.msra.mxu0 0.0
  %289 = vmatprep.subr.mxu0 0.0
  %290 = vmatpush1.msra.mxu0 0.0
  %291 = vmatprep.subr.mxu0 0.0
  %292 = vmatpush1.msra.mxu0 0.0
  %293 = vmatprep.subr.mxu0 0.0
  %294 = vmatpush1.msra.mxu0 0.0
  %295 = vmatprep.subr.mxu0 0.0
  %296 = vmatpush1.msra.mxu0 0.0
  %297 = vmatprep.subr.mxu0 0.0
  %298 = vmatpush1.msra.mxu0 0.0
  %299 = vmatprep.subr.mxu0 0.0
  %300 = vmatpush1.msra.mxu0 0.0
  %301 = vmatprep.subr.mxu0 0.0
  %302 = vmatpush1.msra.mxu0 0.0
  %303 = vmatprep.subr.mxu0 0.0
  %304 = vmatpush1.msra.mxu0 0.0
  %305 = vmatprep.subr.mxu0 0.0
  %306 = vmatpush1.msra.mxu0 0.0
  %307 = vmatprep.subr.mxu0 0.0
  %308 = vmatpush1.msra.mxu0 0.0
  %309 = vmatprep.subr.mxu0 0.0
  %310 = vmatpush1.msra.mxu0 0.0
  %311 = vmatprep.subr.mxu0 0.0
  %312 = vmatpush1.msra.mxu0 0.0
  %313 = vmatprep.subr.mxu0 0.0
  %314 = vmatpush1.msra.mxu0 0.0
  %315 = vmatprep.subr.mxu0 0.0
  %316 = vmatpush1.msra.mxu0 0.0
  %317 = vmatprep.subr.mxu0 0.0
  %318 = vmatpush1.msra.mxu0 0.0
  %319 = vmatprep.subr.mxu0 0.0
  %320 = vmatpush1.msra.mxu0 0.0
  %321 = vmatprep.subr.mxu0 0.0
  %322 = vmatpush1.msra.mxu0 0.0
  %323 = vmatprep.subr.mxu0 0.0
  %324 = vmatpush1.msra.mxu0 0.0
  %325 = vmatprep.subr.mxu0 0.0
  %326 = vmatpush1.msra.mxu0 0.0
  %327 = vmatprep.subr.mxu0 0.0
  %328 = vmatpush1.msra.mxu0 0.0
  %329 = vmatprep.subr.mxu0 0.0
  %330 = vmatpush1.msra.mxu0 0.0
  %331 = vmatprep.mubr.f32.mxu0 0.0
  %332 = vmatmul.mubr.f32.gmra.mrb[0].mxu0 %v57
  %v333 = vpop.f32.mrb[0].mxu0
  %v334 = vadd.f32 0.0, %v333
  %v335 = vpop.f32.mrb[0].mxu0
  %v336 = vadd.f32 0.0, %v335
  %337 = vdwg.mxu0
  %338 = vmatprep.subr.mxu0 %v218
  %339 = vmatpush1.msra.mxu0 %v217
  %340 = vmatprep.subr.mxu0 %v222
  %341 = vmatpush1.msra.mxu0 %v221
  %342 = vmatprep.subr.mxu0 %v226
  %343 = vmatpush1.msra.mxu0 %v225
  %344 = vmatprep.subr.mxu0 %v230
  %345 = vmatpush1.msra.mxu0 %v229
  %346 = vmatprep.subr.mxu0 %v234
  %347 = vmatpush1.msra.mxu0 %v233
  %348 = vmatprep.subr.mxu0 %v238
  %349 = vmatpush1.msra.mxu0 %v237
  %350 = vmatprep.subr.mxu0 %v242
  %351 = vmatpush1.msra.mxu0 %v241
  %352 = vmatprep.subr.mxu0 %v246
  %353 = vmatpush1.msra.mxu0 %v245
  %354 = vmatprep.subr.mxu0 %v250
  %355 = vmatpush1.msra.mxu0 %v249
  %356 = vmatprep.subr.mxu0 %v265
  %357 = vmatpush1.msra.mxu0 %v262
  %358 = vmatprep.subr.mxu0 0.0
  %359 = vmatpush1.msra.mxu0 0.0
  %360 = vmatprep.subr.mxu0 0.0
  %361 = vmatpush1.msra.mxu0 0.0
  %362 = vmatprep.subr.mxu0 0.0
  %363 = vmatpush1.msra.mxu0 0.0
  %364 = vmatprep.subr.mxu0 0.0
  %365 = vmatpush1.msra.mxu0 0.0
  %366 = vmatprep.subr.mxu0 0.0
  %367 = vmatpush1.msra.mxu0 0.0
  %368 = vmatprep.subr.mxu0 0.0
  %369 = vmatpush1.msra.mxu0 0.0
  %370 = vmatprep.subr.mxu0 0.0
  %371 = vmatpush1.msra.mxu0 0.0
  %372 = vmatprep.subr.mxu0 0.0
  %373 = vmatpush1.msra.mxu0 0.0
  %374 = vmatprep.subr.mxu0 0.0
  %375 = vmatpush1.msra.mxu0 0.0
  %376 = vmatprep.subr.mxu0 0.0
  %377 = vmatpush1.msra.mxu0 0.0
  %378 = vmatprep.subr.mxu0 0.0
  %379 = vmatpush1.msra.mxu0 0.0
  %380 = vmatprep.subr.mxu0 0.0
  %381 = vmatpush1.msra.mxu0 0.0
  %382 = vmatprep.subr.mxu0 0.0
  %383 = vmatpush1.msra.mxu0 0.0
  %384 = vmatprep.subr.mxu0 0.0
  %385 = vmatpush1.msra.mxu0 0.0
  %386 = vmatprep.subr.mxu0 0.0
  %387 = vmatpush1.msra.mxu0 0.0
  %388 = vmatprep.subr.mxu0 0.0
  %389 = vmatpush1.msra.mxu0 0.0
  %390 = vmatprep.subr.mxu0 0.0
  %391 = vmatpush1.msra.mxu0 0.0
  %392 = vmatprep.subr.mxu0 0.0
  %393 = vmatpush1.msra.mxu0 0.0
  %394 = vmatprep.subr.mxu0 0.0
  %395 = vmatpush1.msra.mxu0 0.0
  %396 = vmatprep.subr.mxu0 0.0
  %397 = vmatpush1.msra.mxu0 0.0
  %398 = vmatprep.subr.mxu0 0.0
  %399 = vmatpush1.msra.mxu0 0.0
  %400 = vmatprep.subr.mxu0 0.0
  %401 = vmatpush1.msra.mxu0 0.0
  %402 = vmatprep.mubr.f32.mxu0 0.0
  %403 = vmatmul.mubr.f32.gmra.mrb[0].mxu0 %v57
  %v404 = vpop.f32.mrb[0].mxu0
  %v405 = vadd.f32 0.0, %v404
  %v406 = vpop.f32.mrb[0].mxu0
  %v407 = vadd.f32 0.0, %v406
  %408 = vdwg.mxu0
  %v409 = vmax.f32 %v139, %v334
  %v410 = vmax.f32 %v141, %v336
  %v411 = vmax.f32 %v210, %v405
  %v412 = vmax.f32 %v212, %v407
  %s413 = scalar_lea.vmem %s0, 640
  %v414 = vld [vmem:[%s413] sm:$0xff]
  %v415 = vld [vmem:[%s413 + $0x8] sm:$0xff]
  %v416 = vld [vmem:[%s413 + $0x10] sm:$0xff]
  %v417 = vld [vmem:[%s413 + $0x18] sm:$0xff]
  %v418 = vld [vmem:[%s413 + $0x20] sm:$0xff]
  %v419 = vld [vmem:[%s413 + $0x28] sm:$0xff]
  %v420 = vld [vmem:[%s413 + $0x30] sm:$0xff]
  %v421 = vld [vmem:[%s413 + $0x38] sm:$0xff]
  %v422 = vld [vmem:[%s413 + $0x40] sm:$0xff]
  %v423 = vld [vmem:[%s413 + $0x48] sm:$0xff]
  %v424 = vld [vmem:[%s413 + $0x50] sm:$0xff]
  %v425 = vld [vmem:[%s413 + $0x58] sm:$0xff]
  %v426 = vld [vmem:[%s413 + $0x60] sm:$0xff]
  %v427 = vld [vmem:[%s413 + $0x68] sm:$0xff]
  %v428 = vld [vmem:[%s413 + $0x70] sm:$0xff]
  %v429 = vld [vmem:[%s413 + $0x78] sm:$0xff]
  %v430 = vld [vmem:[%s413 + $0x80] sm:$0xff]
  %v431 = vld [vmem:[%s413 + $0x88] sm:$0xff]
  %v432 = vld [vmem:[%s413 + $0x90] sm:$0xff]
  %v433 = vld [vmem:[%s413 + $0x98] sm:$0xff]
  %v434 = vld [vmem:[%s413 + $0xa0] sm:$0xff]
  %v435 = vld [vmem:[%s413 + $0xa8] sm:$0xff]
  %v436 = vld [vmem:[%s413 + $0xb0] sm:$0xff]
  %v437 = vld [vmem:[%s413 + $0xb8] sm:$0xff]
  %v438 = vld [vmem:[%s413 + $0xc0] sm:$0xff]
  %v439 = vld [vmem:[%s413 + $0xc8] sm:$0xff]
  %v440 = vld [vmem:[%s413 + $0xd0] sm:$0xff]
  %v441 = vld [vmem:[%s413 + $0xd8] sm:$0xff]
  %v442 = vld [vmem:[%s413 + $0xe0] sm:$0xff]
  %v443 = vld [vmem:[%s413 + $0xe8] sm:$0xff]
  %v444 = vld [vmem:[%s413 + $0xf0] sm:$0xff]
  %v445 = vld [vmem:[%s413 + $0xf8] sm:$0xff]
  %v446 = vld [vmem:[%s413 + $0x100] sm:$0xff]
  %v447 = vld [vmem:[%s413 + $0x108] sm:$0xff]
  %v448 = vld [vmem:[%s413 + $0x110] sm:$0xff]
  %v449 = vld [vmem:[%s413 + $0x118] sm:$0xff]
  %v450 = vld [vmem:[%s413 + $0x120] sm:$0x7]
  %v451 = vld [vmem:[%s413 + $0x128] sm:$0x7]
  %v452 = vld [vmem:[%s413 + $0x130] sm:$0x7]
  %v453 = vld [vmem:[%s413 + $0x138] sm:$0x7]
  %v455 = vsel %vm59, %v450, 0
  %v458 = vsel %vm59, %v451, 0
  %v461 = vsel %vm59, %v452, 0
  %v464 = vsel %vm59, %v453, 0
  %466 = vmatprep.subr.mxu0 %v415
  %467 = vmatpush1.msra.mxu0 %v414
  %468 = vmatprep.subr.mxu0 %v419
  %469 = vmatpush1.msra.mxu0 %v418
  %470 = vmatprep.subr.mxu0 %v423
  %471 = vmatpush1.msra.mxu0 %v422
  %472 = vmatprep.subr.mxu0 %v427
  %473 = vmatpush1.msra.mxu0 %v426
  %474 = vmatprep.subr.mxu0 %v431
  %475 = vmatpush1.msra.mxu0 %v430
  %476 = vmatprep.subr.mxu0 %v435
  %477 = vmatpush1.msra.mxu0 %v434
  %478 = vmatprep.subr.mxu0 %v439
  %479 = vmatpush1.msra.mxu0 %v438
  %480 = vmatprep.subr.mxu0 %v443
  %481 = vmatpush1.msra.mxu0 %v442
  %482 = vmatprep.subr.mxu0 %v447
  %483 = vmatpush1.msra.mxu0 %v446
  %484 = vmatprep.subr.mxu0 %v458
  %485 = vmatpush1.msra.mxu0 %v455
  %486 = vmatprep.subr.mxu0 0.0
  %487 = vmatpush1.msra.mxu0 0.0
  %488 = vmatprep.subr.mxu0 0.0
  %489 = vmatpush1.msra.mxu0 0.0
  %490 = vmatprep.subr.mxu0 0.0
  %491 = vmatpush1.msra.mxu0 0.0
  %492 = vmatprep.subr.mxu0 0.0
  %493 = vmatpush1.msra.mxu0 0.0
  %494 = vmatprep.subr.mxu0 0.0
  %495 = vmatpush1.msra.mxu0 0.0
  %496 = vmatprep.subr.mxu0 0.0
  %497 = vmatpush1.msra.mxu0 0.0
  %498 = vmatprep.subr.mxu0 0.0
  %499 = vmatpush1.msra.mxu0 0.0
  %500 = vmatprep.subr.mxu0 0.0
  %501 = vmatpush1.msra.mxu0 0.0
  %502 = vmatprep.subr.mxu0 0.0
  %503 = vmatpush1.msra.mxu0 0.0
  %504 = vmatprep.subr.mxu0 0.0
  %505 = vmatpush1.msra.mxu0 0.0
  %506 = vmatprep.subr.mxu0 0.0
  %507 = vmatpush1.msra.mxu0 0.0
  %508 = vmatprep.subr.mxu0 0.0
  %509 = vmatpush1.msra.mxu0 0.0
  %510 = vmatprep.subr.mxu0 0.0
  %511 = vmatpush1.msra.mxu0 0.0
  %512 = vmatprep.subr.mxu0 0.0
  %513 = vmatpush1.msra.mxu0 0.0
  %514 = vmatprep.subr.mxu0 0.0
  %515 = vmatpush1.msra.mxu0 0.0
  %516 = vmatprep.subr.mxu0 0.0
  %517 = vmatpush1.msra.mxu0 0.0
  %518 = vmatprep.subr.mxu0 0.0
  %519 = vmatpush1.msra.mxu0 0.0
  %520 = vmatprep.subr.mxu0 0.0
  %521 = vmatpush1.msra.mxu0 0.0
  %522 = vmatprep.subr.mxu0 0.0
  %523 = vmatpush1.msra.mxu0 0.0
  %524 = vmatprep.subr.mxu0 0.0
  %525 = vmatpush1.msra.mxu0 0.0
  %526 = vmatprep.subr.mxu0 0.0
  %527 = vmatpush1.msra.mxu0 0.0
  %528 = vmatprep.subr.mxu0 0.0
  %529 = vmatpush1.msra.mxu0 0.0
  %530 = vmatprep.mubr.f32.mxu0 0.0
  %531 = vmatmul.mubr.f32.gmra.mrb[0].mxu0 %v57
  %v532 = vpop.f32.mrb[0].mxu0
  %v533 = vadd.f32 0.0, %v532
  %v534 = vpop.f32.mrb[0].mxu0
  %v535 = vadd.f32 0.0, %v534
  %536 = vdwg.mxu0
  %537 = vmatprep.subr.mxu0 %v417
  %538 = vmatpush1.msra.mxu0 %v416
  %539 = vmatprep.subr.mxu0 %v421
  %540 = vmatpush1.msra.mxu0 %v420
  %541 = vmatprep.subr.mxu0 %v425
  %542 = vmatpush1.msra.mxu0 %v424
  %543 = vmatprep.subr.mxu0 %v429
  %544 = vmatpush1.msra.mxu0 %v428
  %545 = vmatprep.subr.mxu0 %v433
  %546 = vmatpush1.msra.mxu0 %v432
  %547 = vmatprep.subr.mxu0 %v437
  %548 = vmatpush1.msra.mxu0 %v436
  %549 = vmatprep.subr.mxu0 %v441
  %550 = vmatpush1.msra.mxu0 %v440
  %551 = vmatprep.subr.mxu0 %v445
  %552 = vmatpush1.msra.mxu0 %v444
  %553 = vmatprep.subr.mxu0 %v449
  %554 = vmatpush1.msra.mxu0 %v448
  %555 = vmatprep.subr.mxu0 %v464
  %556 = vmatpush1.msra.mxu0 %v461
  %557 = vmatprep.subr.mxu0 0.0
  %558 = vmatpush1.msra.mxu0 0.0
  %559 = vmatprep.subr.mxu0 0.0
  %560 = vmatpush1.msra.mxu0 0.0
  %561 = vmatprep.subr.mxu0 0.0
  %562 = vmatpush1.msra.mxu0 0.0
  %563 = vmatprep.subr.mxu0 0.0
  %564 = vmatpush1.msra.mxu0 0.0
  %565 = vmatprep.subr.mxu0 0.0
  %566 = vmatpush1.msra.mxu0 0.0
  %567 = vmatprep.subr.mxu0 0.0
  %568 = vmatpush1.msra.mxu0 0.0
  %569 = vmatprep.subr.mxu0 0.0
  %570 = vmatpush1.msra.mxu0 0.0
  %571 = vmatprep.subr.mxu0 0.0
  %572 = vmatpush1.msra.mxu0 0.0
  %573 = vmatprep.subr.mxu0 0.0
  %574 = vmatpush1.msra.mxu0 0.0
  %575 = vmatprep.subr.mxu0 0.0
  %576 = vmatpush1.msra.mxu0 0.0
  %577 = vmatprep.subr.mxu0 0.0
  %578 = vmatpush1.msra.mxu0 0.0
  %579 = vmatprep.subr.mxu0 0.0
  %580 = vmatpush1.msra.mxu0 0.0
  %581 = vmatprep.subr.mxu0 0.0
  %582 = vmatpush1.msra.mxu0 0.0
  %583 = vmatprep.subr.mxu0 0.0
  %584 = vmatpush1.msra.mxu0 0.0
  %585 = vmatprep.subr.mxu0 0.0
  %586 = vmatpush1.msra.mxu0 0.0
  %587 = vmatprep.subr.mxu0 0.0
  %588 = vmatpush1.msra.mxu0 0.0
  %589 = vmatprep.subr.mxu0 0.0
  %590 = vmatpush1.msra.mxu0 0.0
  %591 = vmatprep.subr.mxu0 0.0
  %592 = vmatpush1.msra.mxu0 0.0
  %593 = vmatprep.subr.mxu0 0.0
  %594 = vmatpush1.msra.mxu0 0.0
  %595 = vmatprep.subr.mxu0 0.0
  %596 = vmatpush1.msra.mxu0 0.0
  %597 = vmatprep.subr.mxu0 0.0
  %598 = vmatpush1.msra.mxu0 0.0
  %599 = vmatprep.subr.mxu0 0.0
  %600 = vmatpush1.msra.mxu0 0.0
  %601 = vmatprep.mubr.f32.mxu0 0.0
  %602 = vmatmul.mubr.f32.gmra.mrb[0].mxu0 %v57
  %v603 = vpop.f32.mrb[0].mxu0
  %v604 = vadd.f32 0.0, %v603
  %v605 = vpop.f32.mrb[0].mxu0
  %v606 = vadd.f32 0.0, %v605
  %607 = vdwg.mxu0
  %v608 = vmax.f32 %v409, %v533
  %v609 = vmax.f32 %v410, %v535
  %v610 = vmax.f32 %v411, %v604
  %v611 = vmax.f32 %v412, %v606
  %s612 = scalar_lea.vmem %s0, 960
  %v613 = vld [vmem:[%s612] sm:$0xff]
  %v614 = vld [vmem:[%s612 + $0x8] sm:$0xff]
  %v615 = vld [vmem:[%s612 + $0x10] sm:$0xff]
  %v616 = vld [vmem:[%s612 + $0x18] sm:$0xff]
  %v617 = vld [vmem:[%s612 + $0x20] sm:$0xff]
  %v618 = vld [vmem:[%s612 + $0x28] sm:$0xff]
  %v619 = vld [vmem:[%s612 + $0x30] sm:$0xff]
  %v620 = vld [vmem:[%s612 + $0x38] sm:$0xff]
  %v621 = vld [vmem:[%s612 + $0x40] sm:$0xff]
  %v622 = vld [vmem:[%s612 + $0x48] sm:$0xff]
  %v623 = vld [vmem:[%s612 + $0x50] sm:$0xff]
  %v624 = vld [vmem:[%s612 + $0x58] sm:$0xff]
  %v625 = vld [vmem:[%s612 + $0x60] sm:$0xff]
  %v626 = vld [vmem:[%s612 + $0x68] sm:$0xff]
  %v627 = vld [vmem:[%s612 + $0x70] sm:$0xff]
  %v628 = vld [vmem:[%s612 + $0x78] sm:$0xff]
  %v629 = vld [vmem:[%s612 + $0x80] sm:$0xff]
  %v630 = vld [vmem:[%s612 + $0x88] sm:$0xff]
  %v631 = vld [vmem:[%s612 + $0x90] sm:$0xff]
  %v632 = vld [vmem:[%s612 + $0x98] sm:$0xff]
  %v633 = vld [vmem:[%s612 + $0xa0] sm:$0xff]
  %v634 = vld [vmem:[%s612 + $0xa8] sm:$0xff]
  %v635 = vld [vmem:[%s612 + $0xb0] sm:$0xff]
  %v636 = vld [vmem:[%s612 + $0xb8] sm:$0xff]
  %v637 = vld [vmem:[%s612 + $0xc0] sm:$0xff]
  %v638 = vld [vmem:[%s612 + $0xc8] sm:$0xff]
  %v639 = vld [vmem:[%s612 + $0xd0] sm:$0xff]
  %v640 = vld [vmem:[%s612 + $0xd8] sm:$0xff]
  %v641 = vld [vmem:[%s612 + $0xe0] sm:$0xff]
  %v642 = vld [vmem:[%s612 + $0xe8] sm:$0xff]
  %v643 = vld [vmem:[%s612 + $0xf0] sm:$0xff]
  %v644 = vld [vmem:[%s612 + $0xf8] sm:$0xff]
  %v645 = vld [vmem:[%s612 + $0x100] sm:$0xff]
  %v646 = vld [vmem:[%s612 + $0x108] sm:$0xff]
  %v647 = vld [vmem:[%s612 + $0x110] sm:$0xff]
  %v648 = vld [vmem:[%s612 + $0x118] sm:$0xff]
  %v649 = vld [vmem:[%s612 + $0x120] sm:$0x7]
  %v650 = vld [vmem:[%s612 + $0x128] sm:$0x7]
  %v651 = vld [vmem:[%s612 + $0x130] sm:$0x7]
  %v652 = vld [vmem:[%s612 + $0x138] sm:$0x7]
  %v654 = vsel %vm59, %v649, 0
  %v657 = vsel %vm59, %v650, 0
  %v660 = vsel %vm59, %v651, 0
  %v663 = vsel %vm59, %v652, 0
  %665 = vmatprep.subr.mxu0 %v614
  %666 = vmatpush1.msra.mxu0 %v613
  %667 = vmatprep.subr.mxu0 %v618
  %668 = vmatpush1.msra.mxu0 %v617
  %669 = vmatprep.subr.mxu0 %v622
  %670 = vmatpush1.msra.mxu0 %v621
  %671 = vmatprep.subr.mxu0 %v626
  %672 = vmatpush1.msra.mxu0 %v625
  %673 = vmatprep.subr.mxu0 %v630
  %674 = vmatpush1.msra.mxu0 %v629
  %675 = vmatprep.subr.mxu0 %v634
  %676 = vmatpush1.msra.mxu0 %v633
  %677 = vmatprep.subr.mxu0 %v638
  %678 = vmatpush1.msra.mxu0 %v637
  %679 = vmatprep.subr.mxu0 %v642
  %680 = vmatpush1.msra.mxu0 %v641
  %681 = vmatprep.subr.mxu0 %v646
  %682 = vmatpush1.msra.mxu0 %v645
  %683 = vmatprep.subr.mxu0 %v657
  %684 = vmatpush1.msra.mxu0 %v654
  %685 = vmatprep.subr.mxu0 0.0
  %686 = vmatpush1.msra.mxu0 0.0
  %687 = vmatprep.subr.mxu0 0.0
  %688 = vmatpush1.msra.mxu0 0.0
  %689 = vmatprep.subr.mxu0 0.0
  %690 = vmatpush1.msra.mxu0 0.0
  %691 = vmatprep.subr.mxu0 0.0
  %692 = vmatpush1.msra.mxu0 0.0
  %693 = vmatprep.subr.mxu0 0.0
  %694 = vmatpush1.msra.mxu0 0.0
  %695 = vmatprep.subr.mxu0 0.0
  %696 = vmatpush1.msra.mxu0 0.0
  %697 = vmatprep.subr.mxu0 0.0
  %698 = vmatpush1.msra.mxu0 0.0
  %699 = vmatprep.subr.mxu0 0.0
  %700 = vmatpush1.msra.mxu0 0.0
  %701 = vmatprep.subr.mxu0 0.0
  %702 = vmatpush1.msra.mxu0 0.0
  %703 = vmatprep.subr.mxu0 0.0
  %704 = vmatpush1.msra.mxu0 0.0
  %705 = vmatprep.subr.mxu0 0.0
  %706 = vmatpush1.msra.mxu0 0.0
  %707 = vmatprep.subr.mxu0 0.0
  %708 = vmatpush1.msra.mxu0 0.0
  %709 = vmatprep.subr.mxu0 0.0
  %710 = vmatpush1.msra.mxu0 0.0
  %711 = vmatprep.subr.mxu0 0.0
  %712 = vmatpush1.msra.mxu0 0.0
  %713 = vmatprep.subr.mxu0 0.0
  %714 = vmatpush1.msra.mxu0 0.0
  %715 = vmatprep.subr.mxu0 0.0
  %716 = vmatpush1.msra.mxu0 0.0
  %717 = vmatprep.subr.mxu0 0.0
  %718 = vmatpush1.msra.mxu0 0.0
  %719 = vmatprep.subr.mxu0 0.0
  %720 = vmatpush1.msra.mxu0 0.0
  %721 = vmatprep.subr.mxu0 0.0
  %722 = vmatpush1.msra.mxu0 0.0
  %723 = vmatprep.subr.mxu0 0.0
  %724 = vmatpush1.msra.mxu0 0.0
  %725 = vmatprep.subr.mxu0 0.0
  %726 = vmatpush1.msra.mxu0 0.0
  %727 = vmatprep.subr.mxu0 0.0
  %728 = vmatpush1.msra.mxu0 0.0
  %729 = vmatprep.mubr.f32.mxu0 0.0
  %730 = vmatmul.mubr.f32.gmra.mrb[0].mxu0 %v57
  %v731 = vpop.f32.mrb[0].mxu0
  %v732 = vadd.f32 0.0, %v731
  %v733 = vpop.f32.mrb[0].mxu0
  %v734 = vadd.f32 0.0, %v733
  %735 = vdwg.mxu0
  %736 = vmatprep.subr.mxu0 %v616
  %737 = vmatpush1.msra.mxu0 %v615
  %738 = vmatprep.subr.mxu0 %v620
  %739 = vmatpush1.msra.mxu0 %v619
  %740 = vmatprep.subr.mxu0 %v624
  %741 = vmatpush1.msra.mxu0 %v623
  %742 = vmatprep.subr.mxu0 %v628
  %743 = vmatpush1.msra.mxu0 %v627
  %744 = vmatprep.subr.mxu0 %v632
  %745 = vmatpush1.msra.mxu0 %v631
  %746 = vmatprep.subr.mxu0 %v636
  %747 = vmatpush1.msra.mxu0 %v635
  %748 = vmatprep.subr.mxu0 %v640
  %749 = vmatpush1.msra.mxu0 %v639
  %750 = vmatprep.subr.mxu0 %v644
  %751 = vmatpush1.msra.mxu0 %v643
  %752 = vmatprep.subr.mxu0 %v648
  %753 = vmatpush1.msra.mxu0 %v647
  %754 = vmatprep.subr.mxu0 %v663
  %755 = vmatpush1.msra.mxu0 %v660
  %756 = vmatprep.subr.mxu0 0.0
  %757 = vmatpush1.msra.mxu0 0.0
  %758 = vmatprep.subr.mxu0 0.0
  %759 = vmatpush1.msra.mxu0 0.0
  %760 = vmatprep.subr.mxu0 0.0
  %761 = vmatpush1.msra.mxu0 0.0
  %762 = vmatprep.subr.mxu0 0.0
  %763 = vmatpush1.msra.mxu0 0.0
  %764 = vmatprep.subr.mxu0 0.0
  %765 = vmatpush1.msra.mxu0 0.0
  %766 = vmatprep.subr.mxu0 0.0
  %767 = vmatpush1.msra.mxu0 0.0
  %768 = vmatprep.subr.mxu0 0.0
  %769 = vmatpush1.msra.mxu0 0.0
  %770 = vmatprep.subr.mxu0 0.0
  %771 = vmatpush1.msra.mxu0 0.0
  %772 = vmatprep.subr.mxu0 0.0
  %773 = vmatpush1.msra.mxu0 0.0
  %774 = vmatprep.subr.mxu0 0.0
  %775 = vmatpush1.msra.mxu0 0.0
  %776 = vmatprep.subr.mxu0 0.0
  %777 = vmatpush1.msra.mxu0 0.0
  %778 = vmatprep.subr.mxu0 0.0
  %779 = vmatpush1.msra.mxu0 0.0
  %780 = vmatprep.subr.mxu0 0.0
  %781 = vmatpush1.msra.mxu0 0.0
  %782 = vmatprep.subr.mxu0 0.0
  %783 = vmatpush1.msra.mxu0 0.0
  %784 = vmatprep.subr.mxu0 0.0
  %785 = vmatpush1.msra.mxu0 0.0
  %786 = vmatprep.subr.mxu0 0.0
  %787 = vmatpush1.msra.mxu0 0.0
  %788 = vmatprep.subr.mxu0 0.0
  %789 = vmatpush1.msra.mxu0 0.0
  %790 = vmatprep.subr.mxu0 0.0
  %791 = vmatpush1.msra.mxu0 0.0
  %792 = vmatprep.subr.mxu0 0.0
  %793 = vmatpush1.msra.mxu0 0.0
  %794 = vmatprep.subr.mxu0 0.0
  %795 = vmatpush1.msra.mxu0 0.0
  %796 = vmatprep.subr.mxu0 0.0
  %797 = vmatpush1.msra.mxu0 0.0
  %798 = vmatprep.subr.mxu0 0.0
  %799 = vmatpush1.msra.mxu0 0.0
  %800 = vmatprep.mubr.f32.mxu0 0.0
  %801 = vmatmul.mubr.f32.gmra.mrb[0].mxu0 %v57
  %v802 = vpop.f32.mrb[0].mxu0
  %v803 = vadd.f32 0.0, %v802
  %v804 = vpop.f32.mrb[0].mxu0
  %v805 = vadd.f32 0.0, %v804
  %806 = vdwg.mxu0
  %v807 = vmax.f32 %v608, %v732
  %v808 = vmax.f32 %v609, %v734
  %v809 = vmax.f32 %v610, %v803
  %v810 = vmax.f32 %v611, %v805
  %v811 = vld [vmem:[%s2] sm:$0x3f]
  %813 = vset.pattern.permute.xlu0 0
  %814 = vperm.xlu0 %813, %v811
  %v815 = vpop.permute.xlu0 %814
  %v817 = vadd.f32 %v807, %v815
  %v818 = vadd.f32 %v808, %v815
  %v819 = vadd.f32 %v809, %v815
  %v820 = vadd.f32 %v810, %v815
  %v821 = vmax.f32 %v817, 0.0
  %v822 = vmax.f32 %v818, 0.0
  %v823 = vmax.f32 %v819, 0.0
  %v824 = vmax.f32 %v820, 0.0
  %825 = vst [vmem:[%s3] sm:$0x3f] %v821
  %826 = vst [vmem:[%s3 + $0x8] sm:$0x3f] %v822
  %827 = vst [vmem:[%s3 + $0x10] sm:$0x3f] %v823
  %vm828 = vcmask 62464
  %829 = vst.msk [vmem:[%s3 + $0x18] sm:$0x3f] %vm828, %v824
  // Predicated region
  $region14: #{conv_model_forward.2} parent=0 // pred_check
    _
  $region15: #{conv_model_forward.2} parent=0 // pred_check_branch
    %831 = sbr.rel (0) target = $region17
  $region16: #{conv_model_forward.2} parent=0 // pred_region
    _
  $region17: #{conv_model_forward.2} parent=0 // pred_fallthru
    _
  // Predicated region
  $region18: #{conv_model_forward.2} parent=0 // pred_check
    _
  $region19: #{conv_model_forward.2} parent=0 // pred_check_branch
    %833 = sbr.rel (0) target = $region21
  $region20: #{conv_model_forward.2} parent=0 // pred_region
    _
  $region21: #{conv_model_forward.2} parent=0 // pred_fallthru
    _

// kernel: conv_model_forward.3
$region0: #{conv_model_forward.3}
  #allocation0 [shape = 'u32[]', space=smem, size = 0x4, offset = 0x4, fixed_abs, tag = 'smem constant byte address 0x4 - core index']
  #allocation1 [shape = 'u32[144,128]{1,0:T(1,128)}', space=vmem, size = 0x12000, scoped, tag = 'internal scratch']
  #allocation2 [shape = 'f32[50,16]{1,0:T(8,128)}', space=vmem, size = 0x7000, scoped, tag = 'scratch operand']
  %s0 = inlined_call_operand.vmem [shape: f32[4,50,150], index: 0, kind: input, shape index: {}]
  %s1 = inlined_call_operand.vmem [shape: f32[150,16], index: 1, kind: input, shape index: {}]
  %s2 = inlined_call_operand.vmem [shape: f32[1,16], index: 2, kind: input, shape index: {}]
  %s3 = inlined_call_operand.vmem [shape: f32[25,16,120], index: 3, kind: input, shape index: {}]
  %s4 = inlined_call_operand.vmem [shape: f32[1,120], index: 4, kind: input, shape index: {}]
  %s5 = inlined_call_operand.vmem [shape: f32[120,84], index: 5, kind: input, shape index: {}]
  %s6 = inlined_call_operand.vmem [shape: f32[1,84], index: 6, kind: input, shape index: {}]
  %s7 = inlined_call_operand.vmem [shape: f32[84,10], index: 7, kind: input, shape index: {}]
  %s8 = inlined_call_operand.vmem [shape: f32[1,10], index: 8, kind: input, shape index: {}]
  %s9 = inlined_call_operand.hbm [shape: f32[2,10], index: 9, kind: output, shape index: {}]
  %s10 = sld [smem:[#allocation0]]
  $region46: #{conv_model_forward.3} parent=0
    _
  %s12 = ssub.s32 1, %s10
  %s13 = scalar_select 0, %s12, %s10
  $region1: #{conv_model_forward.3} parent=0
    #allocation3 [shape = 'u8[1024]{0}', space=vmem, size = 0x400, scoped, tag = 'output window, operand 0, single buffered']
    #allocation4 [shape = 's32[1]{0}', space=sflag, size = 0x4, scoped, tag = 'scoped memory for conv_model_forward.3']
    %14 = vsyncpa [#allocation4], 0
    // Predicated region
    $region2: #{conv_model_forward.3} parent=1 // pred_check
      _
    $region3: #{conv_model_forward.3} parent=1 // pred_check_branch
      %16 = sbr.rel (0) target = $region5
    $region4: #{conv_model_forward.3} parent=1 // pred_region
      _
    $region5: #{conv_model_forward.3} parent=1 // pred_fallthru
      _
    // Predicated region
    $region6: #{conv_model_forward.3} parent=1 // pred_check
      _
    $region7: #{conv_model_forward.3} parent=1 // pred_check_branch
      %18 = sbr.rel (0) target = $region9
    $region8: #{conv_model_forward.3} parent=1 // pred_region
      _
    $region9: #{conv_model_forward.3} parent=1 // pred_fallthru
      _
    // Predicated region
    $region10: #{conv_model_forward.3} parent=1 // pred_check
      _
    $region11: #{conv_model_forward.3} parent=1 // pred_check_branch
      %20 = sbr.rel (0) target = $region13
    $region12: #{conv_model_forward.3} parent=1 // pred_region
      _
    $region13: #{conv_model_forward.3} parent=1 // pred_fallthru
      _
    // Predicated region
    $region14: #{conv_model_forward.3} parent=1 // pred_check
      _
    $region15: #{conv_model_forward.3} parent=1 // pred_check_branch
      %22 = sbr.rel (0) target = $region17
    $region16: #{conv_model_forward.3} parent=1 // pred_region
      _
    $region17: #{conv_model_forward.3} parent=1 // pred_fallthru
      _
    // Predicated region
    $region18: #{conv_model_forward.3} parent=1 // pred_check
      _
    $region19: #{conv_model_forward.3} parent=1 // pred_check_branch
      %24 = sbr.rel (0) target = $region21
    $region20: #{conv_model_forward.3} parent=1 // pred_region
      _
    $region21: #{conv_model_forward.3} parent=1 // pred_fallthru
      _
    // Predicated region
    $region22: #{conv_model_forward.3} parent=1 // pred_check
      _
    $region23: #{conv_model_forward.3} parent=1 // pred_check_branch
      %26 = sbr.rel (0) target = $region25
    $region24: #{conv_model_forward.3} parent=1 // pred_region
      _
    $region25: #{conv_model_forward.3} parent=1 // pred_fallthru
      _
    // Predicated region
    $region26: #{conv_model_forward.3} parent=1 // pred_check
      _
    $region27: #{conv_model_forward.3} parent=1 // pred_check_branch
      %28 = sbr.rel (0) target = $region29
    $region28: #{conv_model_forward.3} parent=1 // pred_region
      _
    $region29: #{conv_model_forward.3} parent=1 // pred_fallthru
      _
    // Predicated region
    $region30: #{conv_model_forward.3} parent=1 // pred_check
      _
    $region31: #{conv_model_forward.3} parent=1 // pred_check_branch
      %30 = sbr.rel (0) target = $region33
    $region32: #{conv_model_forward.3} parent=1 // pred_region
      _
    $region33: #{conv_model_forward.3} parent=1 // pred_fallthru
      _
    // Predicated region
    $region34: #{conv_model_forward.3} parent=1 // pred_check
      _
    $region35: #{conv_model_forward.3} parent=1 // pred_check_branch
      %32 = sbr.rel (0) target = $region37
    $region36: #{conv_model_forward.3} parent=1 // pred_region
      _
    $region37: #{conv_model_forward.3} parent=1 // pred_fallthru
      _
    %v33 = vld [vmem:[%s1] sm:$0xff]
    %v34 = vld [vmem:[%s1 + $0x8] sm:$0xff]
    %v35 = vld [vmem:[%s1 + $0x10] sm:$0xff]
    %v36 = vld [vmem:[%s1 + $0x18] sm:$0xff]
    %v37 = vld [vmem:[%s1 + $0x20] sm:$0xff]
    %v38 = vld [vmem:[%s1 + $0x28] sm:$0xff]
    %v39 = vld [vmem:[%s1 + $0x30] sm:$0xff]
    %v40 = vld [vmem:[%s1 + $0x38] sm:$0xff]
    %v41 = vld [vmem:[%s1 + $0x40] sm:$0xff]
    %v42 = vld [vmem:[%s1 + $0x48] sm:$0xff]
    %v43 = vld [vmem:[%s1 + $0x50] sm:$0xff]
    %v44 = vld [vmem:[%s1 + $0x58] sm:$0xff]
    %v45 = vld [vmem:[%s1 + $0x60] sm:$0xff]
    %v46 = vld [vmem:[%s1 + $0x68] sm:$0xff]
    %v47 = vld [vmem:[%s1 + $0x70] sm:$0xff]
    %v48 = vld [vmem:[%s1 + $0x78] sm:$0xff]
    %v49 = vld [vmem:[%s1 + $0x80] sm:$0xff]
    %v50 = vld [vmem:[%s1 + $0x88] sm:$0xff]
    %v51 = vld [vmem:[%s1 + $0x90] sm:$0x3f]
    %v52 = vld [vmem:[%s0] sm:$0xff]
    %v53 = vld [vmem:[%s0 + $0x8] sm:$0xff]
    %v54 = vld [vmem:[%s0 + $0x10] sm:$0xff]
    %v55 = vld [vmem:[%s0 + $0x18] sm:$0xff]
    %v56 = vld [vmem:[%s0 + $0x20] sm:$0xff]
    %v57 = vld [vmem:[%s0 + $0x28] sm:$0xff]
    %v58 = vld [vmem:[%s0 + $0x30] sm:$0xff]
    %v59 = vld [vmem:[%s0 + $0x38] sm:$0xff]
    %v60 = vld [vmem:[%s0 + $0x40] sm:$0xff]
    %v61 = vld [vmem:[%s0 + $0x48] sm:$0xff]
    %v62 = vld [vmem:[%s0 + $0x50] sm:$0xff]
    %v63 = vld [vmem:[%s0 + $0x58] sm:$0xff]
    %v64 = vld [vmem:[%s0 + $0x60] sm:$0x3]
    %v65 = vld [vmem:[%s0 + $0x68] sm:$0x3]
    %vm66 = vcmask 179200
    %v68 = vsel %vm66, %v53, 0
    %v71 = vsel %vm66, %v55, 0
    %v74 = vsel %vm66, %v57, 0
    %v77 = vsel %vm66, %v59, 0
    %v80 = vsel %vm66, %v61, 0
    %v83 = vsel %vm66, %v63, 0
    %v86 = vsel %vm66, %v65, 0
    %vm88 = vcmask 1045504
    %v90 = vsel %vm88, %v51, 0
    %92 = vmatprep.subr.mxu0 0.0
    %93 = vmatpush1.msra.mxu0 %v33
    %94 = vmatprep.subr.mxu0 0.0
    %95 = vmatpush1.msra.mxu0 %v34
    %96 = vmatprep.subr.mxu0 0.0
    %97 = vmatpush1.msra.mxu0 %v35
    %98 = vmatprep.subr.mxu0 0.0
    %99 = vmatpush1.msra.mxu0 %v36
    %100 = vmatprep.subr.mxu0 0.0
    %101 = vmatpush1.msra.mxu0 %v37
    %102 = vmatprep.subr.mxu0 0.0
    %103 = vmatpush1.msra.mxu0 %v38
    %104 = vmatprep.subr.mxu0 0.0
    %105 = vmatpush1.msra.mxu0 %v39
    %106 = vmatprep.subr.mxu0 0.0
    %107 = vmatpush1.msra.mxu0 %v40
    %108 = vmatprep.subr.mxu0 0.0
    %109 = vmatpush1.msra.mxu0 %v41
    %110 = vmatprep.subr.mxu0 0.0
    %111 = vmatpush1.msra.mxu0 %v42
    %112 = vmatprep.subr.mxu0 0.0
    %113 = vmatpush1.msra.mxu0 %v43
    %114 = vmatprep.subr.mxu0 0.0
    %115 = vmatpush1.msra.mxu0 %v44
    %116 = vmatprep.subr.mxu0 0.0
    %117 = vmatpush1.msra.mxu0 %v45
    %118 = vmatprep.subr.mxu0 0.0
    %119 = vmatpush1.msra.mxu0 %v46
    %120 = vmatprep.subr.mxu0 0.0
    %121 = vmatpush1.msra.mxu0 %v47
    %122 = vmatprep.subr.mxu0 0.0
    %123 = vmatpush1.msra.mxu0 %v48
    %124 = vmatprep.subr.mxu0 0.0
    %125 = vmatpush1.msra.mxu0 %v49
    %126 = vmatprep.subr.mxu0 0.0
    %127 = vmatpush1.msra.mxu0 %v50
    %128 = vmatprep.subr.mxu0 0.0
    %129 = vmatpush1.msra.mxu0 %v90
    %130 = vmatprep.subr.mxu0 0.0
    %131 = vmatpush1.msra.mxu0 0.0
    %132 = vmatprep.subr.mxu0 0.0
    %133 = vmatpush1.msra.mxu0 0.0
    %134 = vmatprep.subr.mxu0 0.0
    %135 = vmatpush1.msra.mxu0 0.0
    %136 = vmatprep.subr.mxu0 0.0
    %137 = vmatpush1.msra.mxu0 0.0
    %138 = vmatprep.subr.mxu0 0.0
    %139 = vmatpush1.msra.mxu0 0.0
    %140 = vmatprep.subr.mxu0 0.0
    %141 = vmatpush1.msra.mxu0 0.0
    %142 = vmatprep.subr.mxu0 0.0
    %143 = vmatpush1.msra.mxu0 0.0
    %144 = vmatprep.subr.mxu0 0.0
    %145 = vmatpush1.msra.mxu0 0.0
    %146 = vmatprep.subr.mxu0 0.0
    %147 = vmatpush1.msra.mxu0 0.0
    %148 = vmatprep.subr.mxu0 0.0
    %149 = vmatpush1.msra.mxu0 0.0
    %150 = vmatprep.subr.mxu0 0.0
    %151 = vmatpush1.msra.mxu0 0.0
    %152 = vmatprep.subr.mxu0 0.0
    %153 = vmatpush1.msra.mxu0 0.0
    %154 = vmatprep.subr.mxu0 0.0
    %155 = vmatpush1.msra.mxu0 0.0
    %156 = vmatprep.mubr.f32.mxu0 %v68
    %157 = vmatmul.mubr.f32.gmra.mrb[0].mxu0 %v52
    %v158 = vpop.f32.mrb[0].mxu0
    %v159 = vadd.f32 0.0, %v158
    %v160 = vpop.f32.mrb[0].mxu0
    %161 = vmatprep.mubr.f32.mxu0 %v71
    %162 = vmatmul.mubr.f32.gmra.mrb[0].mxu0 %v54
    %v163 = vpop.f32.mrb[0].mxu0
    %v164 = vadd.f32 0.0, %v163
    %v165 = vpop.f32.mrb[0].mxu0
    %166 = vmatprep.mubr.f32.mxu0 %v74
    %167 = vmatmul.mubr.f32.gmra.mrb[0].mxu0 %v56
    %v168 = vpop.f32.mrb[0].mxu0
    %v169 = vadd.f32 0.0, %v168
    %v170 = vpop.f32.mrb[0].mxu0
    %171 = vmatprep.mubr.f32.mxu0 %v77
    %172 = vmatmul.mubr.f32.gmra.mrb[0].mxu0 %v58
    %v173 = vpop.f32.mrb[0].mxu0
    %v174 = vadd.f32 0.0, %v173
    %v175 = vpop.f32.mrb[0].mxu0
    %176 = vmatprep.mubr.f32.mxu0 %v80
    %177 = vmatmul.mubr.f32.gmra.mrb[0].mxu0 %v60
    %v178 = vpop.f32.mrb[0].mxu0
    %v179 = vadd.f32 0.0, %v178
    %v180 = vpop.f32.mrb[0].mxu0
    %181 = vmatprep.mubr.f32.mxu0 %v83
    %182 = vmatmul.mubr.f32.gmra.mrb[0].mxu0 %v62
    %v183 = vpop.f32.mrb[0].mxu0
    %v184 = vadd.f32 0.0, %v183
    %v185 = vpop.f32.mrb[0].mxu0
    %186 = vmatprep.mubr.f32.mxu0 %v86
    %187 = vmatmul.mubr.f32.gmra.mrb[0].mxu0 %v64
    %v188 = vpop.f32.mrb[0].mxu0
    %v189 = vadd.f32 0.0, %v188
    %v190 = vpop.f32.mrb[0].mxu0
    %191 = vdwg.mxu0
    %s192 = scalar_lea.vmem %s0, 112
    %v193 = vld [vmem:[%s192] sm:$0xff]
    %v194 = vld [vmem:[%s192 + $0x8] sm:$0xff]
    %v195 = vld [vmem:[%s192 + $0x10] sm:$0xff]
    %v196 = vld [vmem:[%s192 + $0x18] sm:$0xff]
    %v197 = vld [vmem:[%s192 + $0x20] sm:$0xff]
    %v198 = vld [vmem:[%s192 + $0x28] sm:$0xff]
    %v199 = vld [vmem:[%s192 + $0x30] sm:$0xff]
    %v200 = vld [vmem:[%s192 + $0x38] sm:$0xff]
    %v201 = vld [vmem:[%s192 + $0x40] sm:$0xff]
    %v202 = vld [vmem:[%s192 + $0x48] sm:$0xff]
    %v203 = vld [vmem:[%s192 + $0x50] sm:$0xff]
    %v204 = vld [vmem:[%s192 + $0x58] sm:$0xff]
    %v205 = vld [vmem:[%s192 + $0x60] sm:$0x3]
    %v206 = vld [vmem:[%s192 + $0x68] sm:$0x3]
    %v208 = vsel %vm66, %v194, 0
    %v211 = vsel %vm66, %v196, 0
    %v214 = vsel %vm66, %v198, 0
    %v217 = vsel %vm66, %v200, 0
    %v220 = vsel %vm66, %v202, 0
    %v223 = vsel %vm66, %v204, 0
    %v226 = vsel %vm66, %v206, 0
    %228 = vmatprep.subr.mxu0 0.0
    %229 = vmatpush1.msra.mxu0 %v33
    %230 = vmatprep.subr.mxu0 0.0
    %231 = vmatpush1.msra.mxu0 %v34
    %232 = vmatprep.subr.mxu0 0.0
    %233 = vmatpush1.msra.mxu0 %v35
    %234 = vmatprep.subr.mxu0 0.0
    %235 = vmatpush1.msra.mxu0 %v36
    %236 = vmatprep.subr.mxu0 0.0
    %237 = vmatpush1.msra.mxu0 %v37
    %238 = vmatprep.subr.mxu0 0.0
    %239 = vmatpush1.msra.mxu0 %v38
    %240 = vmatprep.subr.mxu0 0.0
    %241 = vmatpush1.msra.mxu0 %v39
    %242 = vmatprep.subr.mxu0 0.0
    %243 = vmatpush1.msra.mxu0 %v40
    %244 = vmatprep.subr.mxu0 0.0
    %245 = vmatpush1.msra.mxu0 %v41
    %246 = vmatprep.subr.mxu0 0.0
    %247 = vmatpush1.msra.mxu0 %v42
    %248 = vmatprep.subr.mxu0 0.0
    %249 = vmatpush1.msra.mxu0 %v43
    %250 = vmatprep.subr.mxu0 0.0
    %251 = vmatpush1.msra.mxu0 %v44
    %252 = vmatprep.subr.mxu0 0.0
    %253 = vmatpush1.msra.mxu0 %v45
    %254 = vmatprep.subr.mxu0 0.0
    %255 = vmatpush1.msra.mxu0 %v46
    %256 = vmatprep.subr.mxu0 0.0
    %257 = vmatpush1.msra.mxu0 %v47
    %258 = vmatprep.subr.mxu0 0.0
    %259 = vmatpush1.msra.mxu0 %v48
    %260 = vmatprep.subr.mxu0 0.0
    %261 = vmatpush1.msra.mxu0 %v49
    %262 = vmatprep.subr.mxu0 0.0
    %263 = vmatpush1.msra.mxu0 %v50
    %264 = vmatprep.subr.mxu0 0.0
    %265 = vmatpush1.msra.mxu0 %v90
    %266 = vmatprep.subr.mxu0 0.0
    %267 = vmatpush1.msra.mxu0 0.0
    %268 = vmatprep.subr.mxu0 0.0
    %269 = vmatpush1.msra.mxu0 0.0
    %270 = vmatprep.subr.mxu0 0.0
    %271 = vmatpush1.msra.mxu0 0.0
    %272 = vmatprep.subr.mxu0 0.0
    %273 = vmatpush1.msra.mxu0 0.0
    %274 = vmatprep.subr.mxu0 0.0
    %275 = vmatpush1.msra.mxu0 0.0
    %276 = vmatprep.subr.mxu0 0.0
    %277 = vmatpush1.msra.mxu0 0.0
    %278 = vmatprep.subr.mxu0 0.0
    %279 = vmatpush1.msra.mxu0 0.0
    %280 = vmatprep.subr.mxu0 0.0
    %281 = vmatpush1.msra.mxu0 0.0
    %282 = vmatprep.subr.mxu0 0.0
    %283 = vmatpush1.msra.mxu0 0.0
    %284 = vmatprep.subr.mxu0 0.0
    %285 = vmatpush1.msra.mxu0 0.0
    %286 = vmatprep.subr.mxu0 0.0
    %287 = vmatpush1.msra.mxu0 0.0
    %288 = vmatprep.subr.mxu0 0.0
    %289 = vmatpush1.msra.mxu0 0.0
    %290 = vmatprep.subr.mxu0 0.0
    %291 = vmatpush1.msra.mxu0 0.0
    %292 = vmatprep.mubr.f32.mxu0 %v208
    %293 = vmatmul.mubr.f32.gmra.mrb[0].mxu0 %v193
    %v294 = vpop.f32.mrb[0].mxu0
    %v295 = vadd.f32 0.0, %v294
    %v296 = vpop.f32.mrb[0].mxu0
    %297 = vmatprep.mubr.f32.mxu0 %v211
    %298 = vmatmul.mubr.f32.gmra.mrb[0].mxu0 %v195
    %v299 = vpop.f32.mrb[0].mxu0
    %v300 = vadd.f32 0.0, %v299
    %v301 = vpop.f32.mrb[0].mxu0
    %302 = vmatprep.mubr.f32.mxu0 %v214
    %303 = vmatmul.mubr.f32.gmra.mrb[0].mxu0 %v197
    %v304 = vpop.f32.mrb[0].mxu0
    %v305 = vadd.f32 0.0, %v304
    %v306 = vpop.f32.mrb[0].mxu0
    %307 = vmatprep.mubr.f32.mxu0 %v217
    %308 = vmatmul.mubr.f32.gmra.mrb[0].mxu0 %v199
    %v309 = vpop.f32.mrb[0].mxu0
    %v310 = vadd.f32 0.0, %v309
    %v311 = vpop.f32.mrb[0].mxu0
    %312 = vmatprep.mubr.f32.mxu0 %v220
    %313 = vmatmul.mubr.f32.gmra.mrb[0].mxu0 %v201
    %v314 = vpop.f32.mrb[0].mxu0
    %v315 = vadd.f32 0.0, %v314
    %v316 = vpop.f32.mrb[0].mxu0
    %317 = vmatprep.mubr.f32.mxu0 %v223
    %318 = vmatmul.mubr.f32.gmra.mrb[0].mxu0 %v203
    %v319 = vpop.f32.mrb[0].mxu0
    %v320 = vadd.f32 0.0, %v319
    %v321 = vpop.f32.mrb[0].mxu0
    %322 = vmatprep.mubr.f32.mxu0 %v226
    %323 = vmatmul.mubr.f32.gmra.mrb[0].mxu0 %v205
    %v324 = vpop.f32.mrb[0].mxu0
    %v325 = vadd.f32 0.0, %v324
    %v326 = vpop.f32.mrb[0].mxu0
    %327 = vdwg.mxu0
    %v328 = vmax.f32 %v159, %v295
    %v329 = vmax.f32 %v164, %v300
    %v330 = vmax.f32 %v169, %v305
    %v331 = vmax.f32 %v174, %v310
    %v332 = vmax.f32 %v179, %v315
    %v333 = vmax.f32 %v184, %v320
    %v334 = vmax.f32 %v189, %v325
    %s335 = scalar_lea.vmem %s0, 224
    %v336 = vld [vmem:[%s335] sm:$0xff]
    %v337 = vld [vmem:[%s335 + $0x8] sm:$0xff]
    %v338 = vld [vmem:[%s335 + $0x10] sm:$0xff]
    %v339 = vld [vmem:[%s335 + $0x18] sm:$0xff]
    %v340 = vld [vmem:[%s335 + $0x20] sm:$0xff]
    %v341 = vld [vmem:[%s335 + $0x28] sm:$0xff]
    %v342 = vld [vmem:[%s335 + $0x30] sm:$0xff]
    %v343 = vld [vmem:[%s335 + $0x38] sm:$0xff]
    %v344 = vld [vmem:[%s335 + $0x40] sm:$0xff]
    %v345 = vld [vmem:[%s335 + $0x48] sm:$0xff]
    %v346 = vld [vmem:[%s335 + $0x50] sm:$0xff]
    %v347 = vld [vmem:[%s335 + $0x58] sm:$0xff]
    %v348 = vld [vmem:[%s335 + $0x60] sm:$0x3]
    %v349 = vld [vmem:[%s335 + $0x68] sm:$0x3]
    %v351 = vsel %vm66, %v337, 0
    %v354 = vsel %vm66, %v339, 0
    %v357 = vsel %vm66, %v341, 0
    %v360 = vsel %vm66, %v343, 0
    %v363 = vsel %vm66, %v345, 0
    %v366 = vsel %vm66, %v347, 0
    %v369 = vsel %vm66, %v349, 0
    %371 = vmatprep.subr.mxu0 0.0
    %372 = vmatpush1.msra.mxu0 %v33
    %373 = vmatprep.subr.mxu0 0.0
    %374 = vmatpush1.msra.mxu0 %v34
    %375 = vmatprep.subr.mxu0 0.0
    %376 = vmatpush1.msra.mxu0 %v35
    %377 = vmatprep.subr.mxu0 0.0
    %378 = vmatpush1.msra.mxu0 %v36
    %379 = vmatprep.subr.mxu0 0.0
    %380 = vmatpush1.msra.mxu0 %v37
    %381 = vmatprep.subr.mxu0 0.0
    %382 = vmatpush1.msra.mxu0 %v38
    %383 = vmatprep.subr.mxu0 0.0
    %384 = vmatpush1.msra.mxu0 %v39
    %385 = vmatprep.subr.mxu0 0.0
    %386 = vmatpush1.msra.mxu0 %v40
    %387 = vmatprep.subr.mxu0 0.0
    %388 = vmatpush1.msra.mxu0 %v41
    %389 = vmatprep.subr.mxu0 0.0
    %390 = vmatpush1.msra.mxu0 %v42
    %391 = vmatprep.subr.mxu0 0.0
    %392 = vmatpush1.msra.mxu0 %v43
    %393 = vmatprep.subr.mxu0 0.0
    %394 = vmatpush1.msra.mxu0 %v44
    %395 = vmatprep.subr.mxu0 0.0
    %396 = vmatpush1.msra.mxu0 %v45
    %397 = vmatprep.subr.mxu0 0.0
    %398 = vmatpush1.msra.mxu0 %v46
    %399 = vmatprep.subr.mxu0 0.0
    %400 = vmatpush1.msra.mxu0 %v47
    %401 = vmatprep.subr.mxu0 0.0
    %402 = vmatpush1.msra.mxu0 %v48
    %403 = vmatprep.subr.mxu0 0.0
    %404 = vmatpush1.msra.mxu0 %v49
    %405 = vmatprep.subr.mxu0 0.0
    %406 = vmatpush1.msra.mxu0 %v50
    %407 = vmatprep.subr.mxu0 0.0
    %408 = vmatpush1.msra.mxu0 %v90
    %409 = vmatprep.subr.mxu0 0.0
    %410 = vmatpush1.msra.mxu0 0.0
    %411 = vmatprep.subr.mxu0 0.0
    %412 = vmatpush1.msra.mxu0 0.0
    %413 = vmatprep.subr.mxu0 0.0
    %414 = vmatpush1.msra.mxu0 0.0
    %415 = vmatprep.subr.mxu0 0.0
    %416 = vmatpush1.msra.mxu0 0.0
    %417 = vmatprep.subr.mxu0 0.0
    %418 = vmatpush1.msra.mxu0 0.0
    %419 = vmatprep.subr.mxu0 0.0
    %420 = vmatpush1.msra.mxu0 0.0
    %421 = vmatprep.subr.mxu0 0.0
    %422 = vmatpush1.msra.mxu0 0.0
    %423 = vmatprep.subr.mxu0 0.0
    %424 = vmatpush1.msra.mxu0 0.0
    %425 = vmatprep.subr.mxu0 0.0
    %426 = vmatpush1.msra.mxu0 0.0
    %427 = vmatprep.subr.mxu0 0.0
    %428 = vmatpush1.msra.mxu0 0.0
    %429 = vmatprep.subr.mxu0 0.0
    %430 = vmatpush1.msra.mxu0 0.0
    %431 = vmatprep.subr.mxu0 0.0
    %432 = vmatpush1.msra.mxu0 0.0
    %433 = vmatprep.subr.mxu0 0.0
    %434 = vmatpush1.msra.mxu0 0.0
    %435 = vmatprep.mubr.f32.mxu0 %v351
    %436 = vmatmul.mubr.f32.gmra.mrb[0].mxu0 %v336
    %v437 = vpop.f32.mrb[0].mxu0
    %v438 = vadd.f32 0.0, %v437
    %v439 = vpop.f32.mrb[0].mxu0
    %440 = vmatprep.mubr.f32.mxu0 %v354
    %441 = vmatmul.mubr.f32.gmra.mrb[0].mxu0 %v338
    %v442 = vpop.f32.mrb[0].mxu0
    %v443 = vadd.f32 0.0, %v442
    %v444 = vpop.f32.mrb[0].mxu0
    %445 = vmatprep.mubr.f32.mxu0 %v357
    %446 = vmatmul.mubr.f32.gmra.mrb[0].mxu0 %v340
    %v447 = vpop.f32.mrb[0].mxu0
    %v448 = vadd.f32 0.0, %v447
    %v449 = vpop.f32.mrb[0].mxu0
    %450 = vmatprep.mubr.f32.mxu0 %v360
    %451 = vmatmul.mubr.f32.gmra.mrb[0].mxu0 %v342
    %v452 = vpop.f32.mrb[0].mxu0
    %v453 = vadd.f32 0.0, %v452
    %v454 = vpop.f32.mrb[0].mxu0
    %455 = vmatprep.mubr.f32.mxu0 %v363
    %456 = vmatmul.mubr.f32.gmra.mrb[0].mxu0 %v344
    %v457 = vpop.f32.mrb[0].mxu0
    %v458 = vadd.f32 0.0, %v457
    %v459 = vpop.f32.mrb[0].mxu0
    %460 = vmatprep.mubr.f32.mxu0 %v366
    %461 = vmatmul.mubr.f32.gmra.mrb[0].mxu0 %v346
    %v462 = vpop.f32.mrb[0].mxu0
    %v463 = vadd.f32 0.0, %v462
    %v464 = vpop.f32.mrb[0].mxu0
    %465 = vmatprep.mubr.f32.mxu0 %v369
    %466 = vmatmul.mubr.f32.gmra.mrb[0].mxu0 %v348
    %v467 = vpop.f32.mrb[0].mxu0
    %v468 = vadd.f32 0.0, %v467
    %v469 = vpop.f32.mrb[0].mxu0
    %470 = vdwg.mxu0
    %v471 = vmax.f32 %v328, %v438
    %v472 = vmax.f32 %v329, %v443
    %v473 = vmax.f32 %v330, %v448
    %v474 = vmax.f32 %v331, %v453
    %v475 = vmax.f32 %v332, %v458
    %v476 = vmax.f32 %v333, %v463
    %v477 = vmax.f32 %v334, %v468
    %s478 = scalar_lea.vmem %s0, 336
    %v479 = vld [vmem:[%s478] sm:$0xff]
    %v480 = vld [vmem:[%s478 + $0x8] sm:$0xff]
    %v481 = vld [vmem:[%s478 + $0x10] sm:$0xff]
    %v482 = vld [vmem:[%s478 + $0x18] sm:$0xff]
    %v483 = vld [vmem:[%s478 + $0x20] sm:$0xff]
    %v484 = vld [vmem:[%s478 + $0x28] sm:$0xff]
    %v485 = vld [vmem:[%s478 + $0x30] sm:$0xff]
    %v486 = vld [vmem:[%s478 + $0x38] sm:$0xff]
    %v487 = vld [vmem:[%s478 + $0x40] sm:$0xff]
    %v488 = vld [vmem:[%s478 + $0x48] sm:$0xff]
    %v489 = vld [vmem:[%s478 + $0x50] sm:$0xff]
    %v490 = vld [vmem:[%s478 + $0x58] sm:$0xff]
    %v491 = vld [vmem:[%s478 + $0x60] sm:$0x3]
    %v492 = vld [vmem:[%s478 + $0x68] sm:$0x3]
    %v494 = vsel %vm66, %v480, 0
    %v497 = vsel %vm66, %v482, 0
    %v500 = vsel %vm66, %v484, 0
    %v503 = vsel %vm66, %v486, 0
    %v506 = vsel %vm66, %v488, 0
    %v509 = vsel %vm66, %v490, 0
    %v512 = vsel %vm66, %v492, 0
    %514 = vmatprep.subr.mxu0 0.0
    %515 = vmatpush1.msra.mxu0 %v33
    %516 = vmatprep.subr.mxu0 0.0
    %517 = vmatpush1.msra.mxu0 %v34
    %518 = vmatprep.subr.mxu0 0.0
    %519 = vmatpush1.msra.mxu0 %v35
    %520 = vmatprep.subr.mxu0 0.0
    %521 = vmatpush1.msra.mxu0 %v36
    %522 = vmatprep.subr.mxu0 0.0
    %523 = vmatpush1.msra.mxu0 %v37
    %524 = vmatprep.subr.mxu0 0.0
    %525 = vmatpush1.msra.mxu0 %v38
    %526 = vmatprep.subr.mxu0 0.0
    %527 = vmatpush1.msra.mxu0 %v39
    %528 = vmatprep.subr.mxu0 0.0
    %529 = vmatpush1.msra.mxu0 %v40
    %530 = vmatprep.subr.mxu0 0.0
    %531 = vmatpush1.msra.mxu0 %v41
    %532 = vmatprep.subr.mxu0 0.0
    %533 = vmatpush1.msra.mxu0 %v42
    %534 = vmatprep.subr.mxu0 0.0
    %535 = vmatpush1.msra.mxu0 %v43
    %536 = vmatprep.subr.mxu0 0.0
    %537 = vmatpush1.msra.mxu0 %v44
    %538 = vmatprep.subr.mxu0 0.0
    %539 = vmatpush1.msra.mxu0 %v45
    %540 = vmatprep.subr.mxu0 0.0
    %541 = vmatpush1.msra.mxu0 %v46
    %542 = vmatprep.subr.mxu0 0.0
    %543 = vmatpush1.msra.mxu0 %v47
    %544 = vmatprep.subr.mxu0 0.0
    %545 = vmatpush1.msra.mxu0 %v48
    %546 = vmatprep.subr.mxu0 0.0
    %547 = vmatpush1.msra.mxu0 %v49
    %548 = vmatprep.subr.mxu0 0.0
    %549 = vmatpush1.msra.mxu0 %v50
    %550 = vmatprep.subr.mxu0 0.0
    %551 = vmatpush1.msra.mxu0 %v90
    %552 = vmatprep.subr.mxu0 0.0
    %553 = vmatpush1.msra.mxu0 0.0
    %554 = vmatprep.subr.mxu0 0.0
    %555 = vmatpush1.msra.mxu0 0.0
    %556 = vmatprep.subr.mxu0 0.0
    %557 = vmatpush1.msra.mxu0 0.0
    %558 = vmatprep.subr.mxu0 0.0
    %559 = vmatpush1.msra.mxu0 0.0
    %560 = vmatprep.subr.mxu0 0.0
    %561 = vmatpush1.msra.mxu0 0.0
    %562 = vmatprep.subr.mxu0 0.0
    %563 = vmatpush1.msra.mxu0 0.0
    %564 = vmatprep.subr.mxu0 0.0
    %565 = vmatpush1.msra.mxu0 0.0
    %566 = vmatprep.subr.mxu0 0.0
    %567 = vmatpush1.msra.mxu0 0.0
    %568 = vmatprep.subr.mxu0 0.0
    %569 = vmatpush1.msra.mxu0 0.0
    %570 = vmatprep.subr.mxu0 0.0
    %571 = vmatpush1.msra.mxu0 0.0
    %572 = vmatprep.subr.mxu0 0.0
    %573 = vmatpush1.msra.mxu0 0.0
    %574 = vmatprep.subr.mxu0 0.0
    %575 = vmatpush1.msra.mxu0 0.0
    %576 = vmatprep.subr.mxu0 0.0
    %577 = vmatpush1.msra.mxu0 0.0
    %578 = vmatprep.mubr.f32.mxu0 %v494
    %579 = vmatmul.mubr.f32.gmra.mrb[0].mxu0 %v479
    %v580 = vpop.f32.mrb[0].mxu0
    %v581 = vadd.f32 0.0, %v580
    %v582 = vpop.f32.mrb[0].mxu0
    %583 = vmatprep.mubr.f32.mxu0 %v497
    %584 = vmatmul.mubr.f32.gmra.mrb[0].mxu0 %v481
    %v585 = vpop.f32.mrb[0].mxu0
    %v586 = vadd.f32 0.0, %v585
    %v587 = vpop.f32.mrb[0].mxu0
    %588 = vmatprep.mubr.f32.mxu0 %v500
    %589 = vmatmul.mubr.f32.gmra.mrb[0].mxu0 %v483
    %v590 = vpop.f32.mrb[0].mxu0
    %v591 = vadd.f32 0.0, %v590
    %v592 = vpop.f32.mrb[0].mxu0
    %593 = vmatprep.mubr.f32.mxu0 %v503
    %594 = vmatmul.mubr.f32.gmra.mrb[0].mxu0 %v485
    %v595 = vpop.f32.mrb[0].mxu0
    %v596 = vadd.f32 0.0, %v595
    %v597 = vpop.f32.mrb[0].mxu0
    %598 = vmatprep.mubr.f32.mxu0 %v506
    %599 = vmatmul.mubr.f32.gmra.mrb[0].mxu0 %v487
    %v600 = vpop.f32.mrb[0].mxu0
    %v601 = vadd.f32 0.0, %v600
    %v602 = vpop.f32.mrb[0].mxu0
    %603 = vmatprep.mubr.f32.mxu0 %v509
    %604 = vmatmul.mubr.f32.gmra.mrb[0].mxu0 %v489
    %v605 = vpop.f32.mrb[0].mxu0
    %v606 = vadd.f32 0.0, %v605
    %v607 = vpop.f32.mrb[0].mxu0
    %608 = vmatprep.mubr.f32.mxu0 %v512
    %609 = vmatmul.mubr.f32.gmra.mrb[0].mxu0 %v491
    %v610 = vpop.f32.mrb[0].mxu0
    %v611 = vadd.f32 0.0, %v610
    %v612 = vpop.f32.mrb[0].mxu0
    %613 = vdwg.mxu0
    %v614 = vmax.f32 %v471, %v581
    %v615 = vmax.f32 %v472, %v586
    %v616 = vmax.f32 %v473, %v591
    %v617 = vmax.f32 %v474, %v596
    %v618 = vmax.f32 %v475, %v601
    %v619 = vmax.f32 %v476, %v606
    %v620 = vmax.f32 %v477, %v611
    %v621 = vld [vmem:[%s2] sm:$0x1]
    %v623 = vlaneseq
    %v624 = vshrl.u32 %v623, 7
    %v625 = vsub.s32 0, %v624
    %v626 = vrot.slane %v621, %v625
    %v628 = vadd.f32 %v614, %v626
    %v629 = vadd.f32 %v615, %v626
    %v630 = vadd.f32 %v616, %v626
    %v631 = vadd.f32 %v617, %v626
    %v632 = vadd.f32 %v618, %v626
    %v633 = vadd.f32 %v619, %v626
    %v634 = vadd.f32 %v620, %v626
    %v635 = vmax.f32 %v628, 0.0
    %v636 = vmax.f32 %v629, 0.0
    %v637 = vmax.f32 %v630, 0.0
    %v638 = vmax.f32 %v631, 0.0
    %v639 = vmax.f32 %v632, 0.0
    %v640 = vmax.f32 %v633, 0.0
    %v641 = vmax.f32 %v634, 0.0
    %vm642 = vcmask 130048
    %643 = vst.msk [vmem:[#allocation2] sm:$0xff] %vm642, %v635
    %644 = vst.msk [vmem:[#allocation2 + $0x8] sm:$0xff] %vm642, %v636
    %645 = vst.msk [vmem:[#allocation2 + $0x10] sm:$0xff] %vm642, %v637
    %646 = vst.msk [vmem:[#allocation2 + $0x18] sm:$0xff] %vm642, %v638
    %647 = vst.msk [vmem:[#allocation2 + $0x20] sm:$0xff] %vm642, %v639
    %648 = vst.msk [vmem:[#allocation2 + $0x28] sm:$0xff] %vm642, %v640
    %vm649 = vcmask 123904
    %650 = vst.msk [vmem:[#allocation2 + $0x30] sm:$0x3] %vm649, %v641
    %v651 = vld [vmem:[#allocation2] sm:$0x3]
    %v652 = vld [vmem:[%s3] sm:$0xff]
    %v653 = vld [vmem:[%s3 + $0x8] sm:$0xff]
    %v654 = vld [vmem:[#allocation2 + $0x2] sm:$0x3]
    %s655 = scalar_lea.vmem %s3, 16
    %v656 = vld [vmem:[%s655] sm:$0xff]
    %v657 = vld [vmem:[%s655 + $0x8] sm:$0xff]
    %v659 = vsel %vm642, %v654, 0
    %661 = vmatprep.subr.mxu0 0.0
    %662 = vmatpush1.msra.mxu0 %v656
    %663 = vmatprep.subr.mxu0 0.0
    %664 = vmatpush1.msra.mxu0 %v657
    %665 = vmatprep.subr.mxu0 0.0
    %666 = vmatpush1.msra.mxu0 0.0
    %667 = vmatprep.subr.mxu0 0.0
    %668 = vmatpush1.msra.mxu0 0.0
    %669 = vmatprep.subr.mxu0 0.0
    %670 = vmatpush1.msra.mxu0 0.0
    %671 = vmatprep.subr.mxu0 0.0
    %672 = vmatpush1.msra.mxu0 0.0
    %673 = vmatprep.subr.mxu0 0.0
    %674 = vmatpush1.msra.mxu0 0.0
    %675 = vmatprep.subr.mxu0 0.0
    %676 = vmatpush1.msra.mxu0 0.0
    %677 = vmatprep.subr.mxu0 0.0
    %678 = vmatpush1.msra.mxu0 0.0
    %679 = vmatprep.subr.mxu0 0.0
    %680 = vmatpush1.msra.mxu0 0.0
    %681 = vmatprep.subr.mxu0 0.0
    %682 = vmatpush1.msra.mxu0 0.0
    %683 = vmatprep.subr.mxu0 0.0
    %684 = vmatpush1.msra.mxu0 0.0
    %685 = vmatprep.subr.mxu0 0.0
    %686 = vmatpush1.msra.mxu0 0.0
    %687 = vmatprep.subr.mxu0 0.0
    %688 = vmatpush1.msra.mxu0 0.0
    %689 = vmatprep.subr.mxu0 0.0
    %690 = vmatpush1.msra.mxu0 0.0
    %691 = vmatprep.subr.mxu0 0.0
    %692 = vmatpush1.msra.mxu0 0.0
    %693 = vmatprep.subr.mxu0 0.0
    %694 = vmatpush1.msra.mxu0 0.0
    %695 = vmatprep.subr.mxu0 0.0
    %696 = vmatpush1.msra.mxu0 0.0
    %697 = vmatprep.subr.mxu0 0.0
    %698 = vmatpush1.msra.mxu0 0.0
    %699 = vmatprep.subr.mxu0 0.0
    %700 = vmatpush1.msra.mxu0 0.0
    %701 = vmatprep.subr.mxu0 0.0
    %702 = vmatpush1.msra.mxu0 0.0
    %703 = vmatprep.subr.mxu0 0.0
    %704 = vmatpush1.msra.mxu0 0.0
    %705 = vmatprep.subr.mxu0 0.0
    %706 = vmatpush1.msra.mxu0 0.0
    %707 = vmatprep.subr.mxu0 0.0
    %708 = vmatpush1.msra.mxu0 0.0
    %709 = vmatprep.subr.mxu0 0.0
    %710 = vmatpush1.msra.mxu0 0.0
    %711 = vmatprep.subr.mxu0 0.0
    %712 = vmatpush1.msra.mxu0 0.0
    %713 = vmatprep.subr.mxu0 0.0
    %714 = vmatpush1.msra.mxu0 0.0
    %715 = vmatprep.subr.mxu0 0.0
    %716 = vmatpush1.msra.mxu0 0.0
    %717 = vmatprep.subr.mxu0 0.0
    %718 = vmatpush1.msra.mxu0 0.0
    %719 = vmatprep.subr.mxu0 0.0
    %720 = vmatpush1.msra.mxu0 0.0
    %721 = vmatprep.subr.mxu0 0.0
    %722 = vmatpush1.msra.mxu0 0.0
    %723 = vmatprep.subr.mxu0 0.0
    %724 = vmatpush1.msra.mxu0 0.0
    %725 = vmatprep.mubr.f32.mxu0 0.0
    %726 = vmatmul.mubr.f32.gmra.mrb[0].mxu0 %v659
    %v727 = vpop.f32.mrb[0].mxu0
    %v728 = vadd.f32 0.0, %v727
    %v729 = vpop.f32.mrb[0].mxu0
    %730 = vdwg.mxu0
    %v732 = vsel %vm642, %v651, 0
    %734 = vmatprep.subr.mxu0 0.0
    %735 = vmatpush1.msra.mxu0 %v652
    %736 = vmatprep.subr.mxu0 0.0
    %737 = vmatpush1.msra.mxu0 %v653
    %738 = vmatprep.subr.mxu0 0.0
    %739 = vmatpush1.msra.mxu0 0.0
    %740 = vmatprep.subr.mxu0 0.0
    %741 = vmatpush1.msra.mxu0 0.0
    %742 = vmatprep.subr.mxu0 0.0
    %743 = vmatpush1.msra.mxu0 0.0
    %744 = vmatprep.subr.mxu0 0.0
    %745 = vmatpush1.msra.mxu0 0.0
    %746 = vmatprep.subr.mxu0 0.0
    %747 = vmatpush1.msra.mxu0 0.0
    %748 = vmatprep.subr.mxu0 0.0
    %749 = vmatpush1.msra.mxu0 0.0
    %750 = vmatprep.subr.mxu0 0.0
    %751 = vmatpush1.msra.mxu0 0.0
    %752 = vmatprep.subr.mxu0 0.0
    %753 = vmatpush1.msra.mxu0 0.0
    %754 = vmatprep.subr.mxu0 0.0
    %755 = vmatpush1.msra.mxu0 0.0
    %756 = vmatprep.subr.mxu0 0.0
    %757 = vmatpush1.msra.mxu0 0.0
    %758 = vmatprep.subr.mxu0 0.0
    %759 = vmatpush1.msra.mxu0 0.0
    %760 = vmatprep.subr.mxu0 0.0
    %761 = vmatpush1.msra.mxu0 0.0
    %762 = vmatprep.subr.mxu0 0.0
    %763 = vmatpush1.msra.mxu0 0.0
    %764 = vmatprep.subr.mxu0 0.0
    %765 = vmatpush1.msra.mxu0 0.0
    %766 = vmatprep.subr.mxu0 0.0
    %767 = vmatpush1.msra.mxu0 0.0
    %768 = vmatprep.subr.mxu0 0.0
    %769 = vmatpush1.msra.mxu0 0.0
    %770 = vmatprep.subr.mxu0 0.0
    %771 = vmatpush1.msra.mxu0 0.0
    %772 = vmatprep.subr.mxu0 0.0
    %773 = vmatpush1.msra.mxu0 0.0
    %774 = vmatprep.subr.mxu0 0.0
    %775 = vmatpush1.msra.mxu0 0.0
    %776 = vmatprep.subr.mxu0 0.0
    %777 = vmatpush1.msra.mxu0 0.0
    %778 = vmatprep.subr.mxu0 0.0
    %779 = vmatpush1.msra.mxu0 0.0
    %780 = vmatprep.subr.mxu0 0.0
    %781 = vmatpush1.msra.mxu0 0.0
    %782 = vmatprep.subr.mxu0 0.0
    %783 = vmatpush1.msra.mxu0 0.0
    %784 = vmatprep.subr.mxu0 0.0
    %785 = vmatpush1.msra.mxu0 0.0
    %786 = vmatprep.subr.mxu0 0.0
    %787 = vmatpush1.msra.mxu0 0.0
    %788 = vmatprep.subr.mxu0 0.0
    %789 = vmatpush1.msra.mxu0 0.0
    %790 = vmatprep.subr.mxu0 0.0
    %791 = vmatpush1.msra.mxu0 0.0
    %792 = vmatprep.subr.mxu0 0.0
    %793 = vmatpush1.msra.mxu0 0.0
    %794 = vmatprep.subr.mxu0 0.0
    %795 = vmatpush1.msra.mxu0 0.0
    %796 = vmatprep.subr.mxu0 0.0
    %797 = vmatpush1.msra.mxu0 0.0
    %798 = vmatprep.mubr.f32.mxu0 0.0
    %799 = vmatmul.mubr.f32.gmra.mrb[0].mxu0 %v732
    %v800 = vpop.f32.mrb[0].mxu0
    %v801 = vadd.f32 %v728, %v800
    %v802 = vpop.f32.mrb[0].mxu0
    %803 = vdwg.mxu0
    %v804 = vld [vmem:[#allocation2 + $0x4] sm:$0x3]
    %s805 = scalar_lea.vmem %s3, 32
    %v806 = vld [vmem:[%s805] sm:$0xff]
    %v807 = vld [vmem:[%s805 + $0x8] sm:$0xff]
    %v809 = vsel %vm642, %v804, 0
    %811 = vmatprep.subr.mxu0 0.0
    %812 = vmatpush1.msra.mxu0 %v806
    %813 = vmatprep.subr.mxu0 0.0
    %814 = vmatpush1.msra.mxu0 %v807
    %815 = vmatprep.subr.mxu0 0.0
    %816 = vmatpush1.msra.mxu0 0.0
    %817 = vmatprep.subr.mxu0 0.0
    %818 = vmatpush1.msra.mxu0 0.0
    %819 = vmatprep.subr.mxu0 0.0
    %820 = vmatpush1.msra.mxu0 0.0
    %821 = vmatprep.subr.mxu0 0.0
    %822 = vmatpush1.msra.mxu0 0.0
    %823 = vmatprep.subr.mxu0 0.0
    %824 = vmatpush1.msra.mxu0 0.0
    %825 = vmatprep.subr.mxu0 0.0
    %826 = vmatpush1.msra.mxu0 0.0
    %827 = vmatprep.subr.mxu0 0.0
    %828 = vmatpush1.msra.mxu0 0.0
    %829 = vmatprep.subr.mxu0 0.0
    %830 = vmatpush1.msra.mxu0 0.0
    %831 = vmatprep.subr.mxu0 0.0
    %832 = vmatpush1.msra.mxu0 0.0
    %833 = vmatprep.subr.mxu0 0.0
    %834 = vmatpush1.msra.mxu0 0.0
    %835 = vmatprep.subr.mxu0 0.0
    %836 = vmatpush1.msra.mxu0 0.0
    %837 = vmatprep.subr.mxu0 0.0
    %838 = vmatpush1.msra.mxu0 0.0
    %839 = vmatprep.subr.mxu0 0.0
    %840 = vmatpush1.msra.mxu0 0.0
    %841 = vmatprep.subr.mxu0 0.0
    %842 = vmatpush1.msra.mxu0 0.0
    %843 = vmatprep.subr.mxu0 0.0
    %844 = vmatpush1.msra.mxu0 0.0
    %845 = vmatprep.subr.mxu0 0.0
    %846 = vmatpush1.msra.mxu0 0.0
    %847 = vmatprep.subr.mxu0 0.0
    %848 = vmatpush1.msra.mxu0 0.0
    %849 = vmatprep.subr.mxu0 0.0
    %850 = vmatpush1.msra.mxu0 0.0
    %851 = vmatprep.subr.mxu0 0.0
    %852 = vmatpush1.msra.mxu0 0.0
    %853 = vmatprep.subr.mxu0 0.0
    %854 = vmatpush1.msra.mxu0 0.0
    %855 = vmatprep.subr.mxu0 0.0
    %856 = vmatpush1.msra.mxu0 0.0
    %857 = vmatprep.subr.mxu0 0.0
    %858 = vmatpush1.msra.mxu0 0.0
    %859 = vmatprep.subr.mxu0 0.0
    %860 = vmatpush1.msra.mxu0 0.0
    %861 = vmatprep.subr.mxu0 0.0
    %862 = vmatpush1.msra.mxu0 0.0
    %863 = vmatprep.subr.mxu0 0.0
    %864 = vmatpush1.msra.mxu0 0.0
    %865 = vmatprep.subr.mxu0 0.0
    %866 = vmatpush1.msra.mxu0 0.0
    %867 = vmatprep.subr.mxu0 0.0
    %868 = vmatpush1.msra.mxu0 0.0
    %869 = vmatprep.subr.mxu0 0.0
    %870 = vmatpush1.msra.mxu0 0.0
    %871 = vmatprep.subr.mxu0 0.0
    %872 = vmatpush1.msra.mxu0 0.0
    %873 = vmatprep.subr.mxu0 0.0
    %874 = vmatpush1.msra.mxu0 0.0
    %875 = vmatprep.mubr.f32.mxu0 0.0
    %876 = vmatmul.mubr.f32.gmra.mrb[0].mxu0 %v809
    %v877 = vpop.f32.mrb[0].mxu0
    %v878 = vadd.f32 0.0, %v877
    %v879 = vpop.f32.mrb[0].mxu0
    %880 = vdwg.mxu0
    %v881 = vadd.f32 %v801, %v878
    %v882 = vld [vmem:[#allocation2 + $0x6] sm:$0x3]
    %s883 = scalar_lea.vmem %s3, 48
    %v884 = vld [vmem:[%s883] sm:$0xff]
    %v885 = vld [vmem:[%s883 + $0x8] sm:$0xff]
    %v887 = vsel %vm642, %v882, 0
    %889 = vmatprep.subr.mxu0 0.0
    %890 = vmatpush1.msra.mxu0 %v884
    %891 = vmatprep.subr.mxu0 0.0
    %892 = vmatpush1.msra.mxu0 %v885
    %893 = vmatprep.subr.mxu0 0.0
    %894 = vmatpush1.msra.mxu0 0.0
    %895 = vmatprep.subr.mxu0 0.0
    %896 = vmatpush1.msra.mxu0 0.0
    %897 = vmatprep.subr.mxu0 0.0
    %898 = vmatpush1.msra.mxu0 0.0
    %899 = vmatprep.subr.mxu0 0.0
    %900 = vmatpush1.msra.mxu0 0.0
    %901 = vmatprep.subr.mxu0 0.0
    %902 = vmatpush1.msra.mxu0 0.0
    %903 = vmatprep.subr.mxu0 0.0
    %904 = vmatpush1.msra.mxu0 0.0
    %905 = vmatprep.subr.mxu0 0.0
    %906 = vmatpush1.msra.mxu0 0.0
    %907 = vmatprep.subr.mxu0 0.0
    %908 = vmatpush1.msra.mxu0 0.0
    %909 = vmatprep.subr.mxu0 0.0
    %910 = vmatpush1.msra.mxu0 0.0
    %911 = vmatprep.subr.mxu0 0.0
    %912 = vmatpush1.msra.mxu0 0.0
    %913 = vmatprep.subr.mxu0 0.0
    %914 = vmatpush1.msra.mxu0 0.0
    %915 = vmatprep.subr.mxu0 0.0
    %916 = vmatpush1.msra.mxu0 0.0
    %917 = vmatprep.subr.mxu0 0.0
    %918 = vmatpush1.msra.mxu0 0.0
    %919 = vmatprep.subr.mxu0 0.0
    %920 = vmatpush1.msra.mxu0 0.0
    %921 = vmatprep.subr.mxu0 0.0
    %922 = vmatpush1.msra.mxu0 0.0
    %923 = vmatprep.subr.mxu0 0.0
    %924 = vmatpush1.msra.mxu0 0.0
    %925 = vmatprep.subr.mxu0 0.0
    %926 = vmatpush1.msra.mxu0 0.0
    %927 = vmatprep.subr.mxu0 0.0
    %928 = vmatpush1.msra.mxu0 0.0
    %929 = vmatprep.subr.mxu0 0.0
    %930 = vmatpush1.msra.mxu0 0.0
    %931 = vmatprep.subr.mxu0 0.0
    %932 = vmatpush1.msra.mxu0 0.0
    %933 = vmatprep.subr.mxu0 0.0
    %934 = vmatpush1.msra.mxu0 0.0
    %935 = vmatprep.subr.mxu0 0.0
    %936 = vmatpush1.msra.mxu0 0.0
    %937 = vmatprep.subr.mxu0 0.0
    %938 = vmatpush1.msra.mxu0 0.0
    %939 = vmatprep.subr.mxu0 0.0
    %940 = vmatpush1.msra.mxu0 0.0
    %941 = vmatprep.subr.mxu0 0.0
    %942 = vmatpush1.msra.mxu0 0.0
    %943 = vmatprep.subr.mxu0 0.0
    %944 = vmatpush1.msra.mxu0 0.0
    %945 = vmatprep.subr.mxu0 0.0
    %946 = vmatpush1.msra.mxu0 0.0
    %947 = vmatprep.subr.mxu0 0.0
    %948 = vmatpush1.msra.mxu0 0.0
    %949 = vmatprep.subr.mxu0 0.0
    %950 = vmatpush1.msra.mxu0 0.0
    %951 = vmatprep.subr.mxu0 0.0
    %952 = vmatpush1.msra.mxu0 0.0
    %953 = vmatprep.mubr.f32.mxu0 0.0
    %954 = vmatmul.mubr.f32.gmra.mrb[0].mxu0 %v887
    %v955 = vpop.f32.mrb[0].mxu0
    %v956 = vadd.f32 0.0, %v955
    %v957 = vpop.f32.mrb[0].mxu0
    %958 = vdwg.mxu0
    %v959 = vadd.f32 %v881, %v956
    %v960 = vld [vmem:[#allocation2 + $0x8] sm:$0x3]
    %s961 = scalar_lea.vmem %s3, 64
    %v962 = vld [vmem:[%s961] sm:$0xff]
    %v963 = vld [vmem:[%s961 + $0x8] sm:$0xff]
    %v965 = vsel %vm642, %v960, 0
    %967 = vmatprep.subr.mxu0 0.0
    %968 = vmatpush1.msra.mxu0 %v962
    %969 = vmatprep.subr.mxu0 0.0
    %970 = vmatpush1.msra.mxu0 %v963
    %971 = vmatprep.subr.mxu0 0.0
    %972 = vmatpush1.msra.mxu0 0.0
    %973 = vmatprep.subr.mxu0 0.0
    %974 = vmatpush1.msra.mxu0 0.0
    %975 = vmatprep.subr.mxu0 0.0
    %976 = vmatpush1.msra.mxu0 0.0
    %977 = vmatprep.subr.mxu0 0.0
    %978 = vmatpush1.msra.mxu0 0.0
    %979 = vmatprep.subr.mxu0 0.0
    %980 = vmatpush1.msra.mxu0 0.0
    %981 = vmatprep.subr.mxu0 0.0
    %982 = vmatpush1.msra.mxu0 0.0
    %983 = vmatprep.subr.mxu0 0.0
    %984 = vmatpush1.msra.mxu0 0.0
    %985 = vmatprep.subr.mxu0 0.0
    %986 = vmatpush1.msra.mxu0 0.0
    %987 = vmatprep.subr.mxu0 0.0
    %988 = vmatpush1.msra.mxu0 0.0
    %989 = vmatprep.subr.mxu0 0.0
    %990 = vmatpush1.msra.mxu0 0.0
    %991 = vmatprep.subr.mxu0 0.0
    %992 = vmatpush1.msra.mxu0 0.0
    %993 = vmatprep.subr.mxu0 0.0
    %994 = vmatpush1.msra.mxu0 0.0
    %995 = vmatprep.subr.mxu0 0.0
    %996 = vmatpush1.msra.mxu0 0.0
    %997 = vmatprep.subr.mxu0 0.0
    %998 = vmatpush1.msra.mxu0 0.0
    %999 = vmatprep.subr.mxu0 0.0
    %1000 = vmatpush1.msra.mxu0 0.0
    %1001 = vmatprep.subr.mxu0 0.0
    %1002 = vmatpush1.msra.mxu0 0.0
    %1003 = vmatprep.subr.mxu0 0.0
    %1004 = vmatpush1.msra.mxu0 0.0
    %1005 = vmatprep.subr.mxu0 0.0
    %1006 = vmatpush1.msra.mxu0 0.0
    %1007 = vmatprep.subr.mxu0 0.0
    %1008 = vmatpush1.msra.mxu0 0.0
    %1009 = vmatprep.subr.mxu0 0.0
    %1010 = vmatpush1.msra.mxu0 0.0
    %1011 = vmatprep.subr.mxu0 0.0
    %1012 = vmatpush1.msra.mxu0 0.0
    %1013 = vmatprep.subr.mxu0 0.0
    %1014 = vmatpush1.msra.mxu0 0.0
    %1015 = vmatprep.subr.mxu0 0.0
    %1016 = vmatpush1.msra.mxu0 0.0
    %1017 = vmatprep.subr.mxu0 0.0
    %1018 = vmatpush1.msra.mxu0 0.0
    %1019 = vmatprep.subr.mxu0 0.0
    %1020 = vmatpush1.msra.mxu0 0.0
    %1021 = vmatprep.subr.mxu0 0.0
    %1022 = vmatpush1.msra.mxu0 0.0
    %1023 = vmatprep.subr.mxu0 0.0
    %1024 = vmatpush1.msra.mxu0 0.0
    %1025 = vmatprep.subr.mxu0 0.0
    %1026 = vmatpush1.msra.mxu0 0.0
    %1027 = vmatprep.subr.mxu0 0.0
    %1028 = vmatpush1.msra.mxu0 0.0
    %1029 = vmatprep.subr.mxu0 0.0
    %1030 = vmatpush1.msra.mxu0 0.0
    %1031 = vmatprep.mubr.f32.mxu0 0.0
    %1032 = vmatmul.mubr.f32.gmra.mrb[0].mxu0 %v965
    %v1033 = vpop.f32.mrb[0].mxu0
    %v1034 = vadd.f32 0.0, %v1033
    %v1035 = vpop.f32.mrb[0].mxu0
    %1036 = vdwg.mxu0
    %v1037 = vadd.f32 %v959, %v1034
    %v1038 = vld [vmem:[#allocation2 + $0xa] sm:$0x3]
    %s1039 = scalar_lea.vmem %s3, 80
    %v1040 = vld [vmem:[%s1039] sm:$0xff]
    %v1041 = vld [vmem:[%s1039 + $0x8] sm:$0xff]
    %v1043 = vsel %vm642, %v1038, 0
    %1045 = vmatprep.subr.mxu0 0.0
    %1046 = vmatpush1.msra.mxu0 %v1040
    %1047 = vmatprep.subr.mxu0 0.0
    %1048 = vmatpush1.msra.mxu0 %v1041
    %1049 = vmatprep.subr.mxu0 0.0
    %1050 = vmatpush1.msra.mxu0 0.0
    %1051 = vmatprep.subr.mxu0 0.0
    %1052 = vmatpush1.msra.mxu0 0.0
    %1053 = vmatprep.subr.mxu0 0.0
    %1054 = vmatpush1.msra.mxu0 0.0
    %1055 = vmatprep.subr.mxu0 0.0
    %1056 = vmatpush1.msra.mxu0 0.0
    %1057 = vmatprep.subr.mxu0 0.0
    %1058 = vmatpush1.msra.mxu0 0.0
    %1059 = vmatprep.subr.mxu0 0.0
    %1060 = vmatpush1.msra.mxu0 0.0
    %1061 = vmatprep.subr.mxu0 0.0
    %1062 = vmatpush1.msra.mxu0 0.0
    %1063 = vmatprep.subr.mxu0 0.0
    %1064 = vmatpush1.msra.mxu0 0.0
    %1065 = vmatprep.subr.mxu0 0.0
    %1066 = vmatpush1.msra.mxu0 0.0
    %1067 = vmatprep.subr.mxu0 0.0
    %1068 = vmatpush1.msra.mxu0 0.0
    %1069 = vmatprep.subr.mxu0 0.0
    %1070 = vmatpush1.msra.mxu0 0.0
    %1071 = vmatprep.subr.mxu0 0.0
    %1072 = vmatpush1.msra.mxu0 0.0
    %1073 = vmatprep.subr.mxu0 0.0
    %1074 = vmatpush1.msra.mxu0 0.0
    %1075 = vmatprep.subr.mxu0 0.0
    %1076 = vmatpush1.msra.mxu0 0.0
    %1077 = vmatprep.subr.mxu0 0.0
    %1078 = vmatpush1.msra.mxu0 0.0
    %1079 = vmatprep.subr.mxu0 0.0
    %1080 = vmatpush1.msra.mxu0 0.0
    %1081 = vmatprep.subr.mxu0 0.0
    %1082 = vmatpush1.msra.mxu0 0.0
    %1083 = vmatprep.subr.mxu0 0.0
    %1084 = vmatpush1.msra.mxu0 0.0
    %1085 = vmatprep.subr.mxu0 0.0
    %1086 = vmatpush1.msra.mxu0 0.0
    %1087 = vmatprep.subr.mxu0 0.0
    %1088 = vmatpush1.msra.mxu0 0.0
    %1089 = vmatprep.subr.mxu0 0.0
    %1090 = vmatpush1.msra.mxu0 0.0
    %1091 = vmatprep.subr.mxu0 0.0
    %1092 = vmatpush1.msra.mxu0 0.0
    %1093 = vmatprep.subr.mxu0 0.0
    %1094 = vmatpush1.msra.mxu0 0.0
    %1095 = vmatprep.subr.mxu0 0.0
    %1096 = vmatpush1.msra.mxu0 0.0
    %1097 = vmatprep.subr.mxu0 0.0
    %1098 = vmatpush1.msra.mxu0 0.0
    %1099 = vmatprep.subr.mxu0 0.0
    %1100 = vmatpush1.msra.mxu0 0.0
    %1101 = vmatprep.subr.mxu0 0.0
    %1102 = vmatpush1.msra.mxu0 0.0
    %1103 = vmatprep.subr.mxu0 0.0
    %1104 = vmatpush1.msra.mxu0 0.0
    %1105 = vmatprep.subr.mxu0 0.0
    %1106 = vmatpush1.msra.mxu0 0.0
    %1107 = vmatprep.subr.mxu0 0.0
    %1108 = vmatpush1.msra.mxu0 0.0
    %1109 = vmatprep.mubr.f32.mxu0 0.0
    %1110 = vmatmul.mubr.f32.gmra.mrb[0].mxu0 %v1043
    %v1111 = vpop.f32.mrb[0].mxu0
    %v1112 = vadd.f32 0.0, %v1111
    %v1113 = vpop.f32.mrb[0].mxu0
    %1114 = vdwg.mxu0
    %v1115 = vadd.f32 %v1037, %v1112
    %v1116 = vld [vmem:[#allocation2 + $0xc] sm:$0x3]
    %s1117 = scalar_lea.vmem %s3, 96
    %v1118 = vld [vmem:[%s1117] sm:$0xff]
    %v1119 = vld [vmem:[%s1117 + $0x8] sm:$0xff]
    %v1121 = vsel %vm642, %v1116, 0
    %1123 = vmatprep.subr.mxu0 0.0
    %1124 = vmatpush1.msra.mxu0 %v1118
    %1125 = vmatprep.subr.mxu0 0.0
    %1126 = vmatpush1.msra.mxu0 %v1119
    %1127 = vmatprep.subr.mxu0 0.0
    %1128 = vmatpush1.msra.mxu0 0.0
    %1129 = vmatprep.subr.mxu0 0.0
    %1130 = vmatpush1.msra.mxu0 0.0
    %1131 = vmatprep.subr.mxu0 0.0
    %1132 = vmatpush1.msra.mxu0 0.0
    %1133 = vmatprep.subr.mxu0 0.0
    %1134 = vmatpush1.msra.mxu0 0.0
    %1135 = vmatprep.subr.mxu0 0.0
    %1136 = vmatpush1.msra.mxu0 0.0
    %1137 = vmatprep.subr.mxu0 0.0
    %1138 = vmatpush1.msra.mxu0 0.0
    %1139 = vmatprep.subr.mxu0 0.0
    %1140 = vmatpush1.msra.mxu0 0.0
    %1141 = vmatprep.subr.mxu0 0.0
    %1142 = vmatpush1.msra.mxu0 0.0
    %1143 = vmatprep.subr.mxu0 0.0
    %1144 = vmatpush1.msra.mxu0 0.0
    %1145 = vmatprep.subr.mxu0 0.0
    %1146 = vmatpush1.msra.mxu0 0.0
    %1147 = vmatprep.subr.mxu0 0.0
    %1148 = vmatpush1.msra.mxu0 0.0
    %1149 = vmatprep.subr.mxu0 0.0
    %1150 = vmatpush1.msra.mxu0 0.0
    %1151 = vmatprep.subr.mxu0 0.0
    %1152 = vmatpush1.msra.mxu0 0.0
    %1153 = vmatprep.subr.mxu0 0.0
    %1154 = vmatpush1.msra.mxu0 0.0
    %1155 = vmatprep.subr.mxu0 0.0
    %1156 = vmatpush1.msra.mxu0 0.0
    %1157 = vmatprep.subr.mxu0 0.0
    %1158 = vmatpush1.msra.mxu0 0.0
    %1159 = vmatprep.subr.mxu0 0.0
    %1160 = vmatpush1.msra.mxu0 0.0
    %1161 = vmatprep.subr.mxu0 0.0
    %1162 = vmatpush1.msra.mxu0 0.0
    %1163 = vmatprep.subr.mxu0 0.0
    %1164 = vmatpush1.msra.mxu0 0.0
    %1165 = vmatprep.subr.mxu0 0.0
    %1166 = vmatpush1.msra.mxu0 0.0
    %1167 = vmatprep.subr.mxu0 0.0
    %1168 = vmatpush1.msra.mxu0 0.0
    %1169 = vmatprep.subr.mxu0 0.0
    %1170 = vmatpush1.msra.mxu0 0.0
    %1171 = vmatprep.subr.mxu0 0.0
    %1172 = vmatpush1.msra.mxu0 0.0
    %1173 = vmatprep.subr.mxu0 0.0
    %1174 = vmatpush1.msra.mxu0 0.0
    %1175 = vmatprep.subr.mxu0 0.0
    %1176 = vmatpush1.msra.mxu0 0.0
    %1177 = vmatprep.subr.mxu0 0.0
    %1178 = vmatpush1.msra.mxu0 0.0
    %1179 = vmatprep.subr.mxu0 0.0
    %1180 = vmatpush1.msra.mxu0 0.0
    %1181 = vmatprep.subr.mxu0 0.0
    %1182 = vmatpush1.msra.mxu0 0.0
    %1183 = vmatprep.subr.mxu0 0.0
    %1184 = vmatpush1.msra.mxu0 0.0
    %1185 = vmatprep.subr.mxu0 0.0
    %1186 = vmatpush1.msra.mxu0 0.0
    %1187 = vmatprep.mubr.f32.mxu0 0.0
    %1188 = vmatmul.mubr.f32.gmra.mrb[0].mxu0 %v1121
    %v1189 = vpop.f32.mrb[0].mxu0
    %v1190 = vadd.f32 0.0, %v1189
    %v1191 = vpop.f32.mrb[0].mxu0
    %1192 = vdwg.mxu0
    %v1193 = vadd.f32 %v1115, %v1190
    %v1194 = vld [vmem:[#allocation2 + $0xe] sm:$0x3]
    %s1195 = scalar_lea.vmem %s3, 112
    %v1196 = vld [vmem:[%s1195] sm:$0xff]
    %v1197 = vld [vmem:[%s1195 + $0x8] sm:$0xff]
    %v1199 = vsel %vm642, %v1194, 0
    %1201 = vmatprep.subr.mxu0 0.0
    %1202 = vmatpush1.msra.mxu0 %v1196
    %1203 = vmatprep.subr.mxu0 0.0
    %1204 = vmatpush1.msra.mxu0 %v1197
    %1205 = vmatprep.subr.mxu0 0.0
    %1206 = vmatpush1.msra.mxu0 0.0
    %1207 = vmatprep.subr.mxu0 0.0
    %1208 = vmatpush1.msra.mxu0 0.0
    %1209 = vmatprep.subr.mxu0 0.0
    %1210 = vmatpush1.msra.mxu0 0.0
    %1211 = vmatprep.subr.mxu0 0.0
    %1212 = vmatpush1.msra.mxu0 0.0
    %1213 = vmatprep.subr.mxu0 0.0
    %1214 = vmatpush1.msra.mxu0 0.0
    %1215 = vmatprep.subr.mxu0 0.0
    %1216 = vmatpush1.msra.mxu0 0.0
    %1217 = vmatprep.subr.mxu0 0.0
    %1218 = vmatpush1.msra.mxu0 0.0
    %1219 = vmatprep.subr.mxu0 0.0
    %1220 = vmatpush1.msra.mxu0 0.0
    %1221 = vmatprep.subr.mxu0 0.0
    %1222 = vmatpush1.msra.mxu0 0.0
    %1223 = vmatprep.subr.mxu0 0.0
    %1224 = vmatpush1.msra.mxu0 0.0
    %1225 = vmatprep.subr.mxu0 0.0
    %1226 = vmatpush1.msra.mxu0 0.0
    %1227 = vmatprep.subr.mxu0 0.0
    %1228 = vmatpush1.msra.mxu0 0.0
    %1229 = vmatprep.subr.mxu0 0.0
    %1230 = vmatpush1.msra.mxu0 0.0
    %1231 = vmatprep.subr.mxu0 0.0
    %1232 = vmatpush1.msra.mxu0 0.0
    %1233 = vmatprep.subr.mxu0 0.0
    %1234 = vmatpush1.msra.mxu0 0.0
    %1235 = vmatprep.subr.mxu0 0.0
    %1236 = vmatpush1.msra.mxu0 0.0
    %1237 = vmatprep.subr.mxu0 0.0
    %1238 = vmatpush1.msra.mxu0 0.0
    %1239 = vmatprep.subr.mxu0 0.0
    %1240 = vmatpush1.msra.mxu0 0.0
    %1241 = vmatprep.subr.mxu0 0.0
    %1242 = vmatpush1.msra.mxu0 0.0
    %1243 = vmatprep.subr.mxu0 0.0
    %1244 = vmatpush1.msra.mxu0 0.0
    %1245 = vmatprep.subr.mxu0 0.0
    %1246 = vmatpush1.msra.mxu0 0.0
    %1247 = vmatprep.subr.mxu0 0.0
    %1248 = vmatpush1.msra.mxu0 0.0
    %1249 = vmatprep.subr.mxu0 0.0
    %1250 = vmatpush1.msra.mxu0 0.0
    %1251 = vmatprep.subr.mxu0 0.0
    %1252 = vmatpush1.msra.mxu0 0.0
    %1253 = vmatprep.subr.mxu0 0.0
    %1254 = vmatpush1.msra.mxu0 0.0
    %1255 = vmatprep.subr.mxu0 0.0
    %1256 = vmatpush1.msra.mxu0 0.0
    %1257 = vmatprep.subr.mxu0 0.0
    %1258 = vmatpush1.msra.mxu0 0.0
    %1259 = vmatprep.subr.mxu0 0.0
    %1260 = vmatpush1.msra.mxu0 0.0
    %1261 = vmatprep.subr.mxu0 0.0
    %1262 = vmatpush1.msra.mxu0 0.0
    %1263 = vmatprep.subr.mxu0 0.0
    %1264 = vmatpush1.msra.mxu0 0.0
    %1265 = vmatprep.mubr.f32.mxu0 0.0
    %1266 = vmatmul.mubr.f32.gmra.mrb[0].mxu0 %v1199
    %v1267 = vpop.f32.mrb[0].mxu0
    %v1268 = vadd.f32 0.0, %v1267
    %v1269 = vpop.f32.mrb[0].mxu0
    %1270 = vdwg.mxu0
    %v1271 = vadd.f32 %v1193, %v1268
    %v1272 = vld [vmem:[#allocation2 + $0x10] sm:$0x3]
    %s1273 = scalar_lea.vmem %s3, 128
    %v1274 = vld [vmem:[%s1273] sm:$0xff]
    %v1275 = vld [vmem:[%s1273 + $0x8] sm:$0xff]
    %v1277 = vsel %vm642, %v1272, 0
    %1279 = vmatprep.subr.mxu0 0.0
    %1280 = vmatpush1.msra.mxu0 %v1274
    %1281 = vmatprep.subr.mxu0 0.0
    %1282 = vmatpush1.msra.mxu0 %v1275
    %1283 = vmatprep.subr.mxu0 0.0
    %1284 = vmatpush1.msra.mxu0 0.0
    %1285 = vmatprep.subr.mxu0 0.0
    %1286 = vmatpush1.msra.mxu0 0.0
    %1287 = vmatprep.subr.mxu0 0.0
    %1288 = vmatpush1.msra.mxu0 0.0
    %1289 = vmatprep.subr.mxu0 0.0
    %1290 = vmatpush1.msra.mxu0 0.0
    %1291 = vmatprep.subr.mxu0 0.0
    %1292 = vmatpush1.msra.mxu0 0.0
    %1293 = vmatprep.subr.mxu0 0.0
    %1294 = vmatpush1.msra.mxu0 0.0
    %1295 = vmatprep.subr.mxu0 0.0
    %1296 = vmatpush1.msra.mxu0 0.0
    %1297 = vmatprep.subr.mxu0 0.0
    %1298 = vmatpush1.msra.mxu0 0.0
    %1299 = vmatprep.subr.mxu0 0.0
    %1300 = vmatpush1.msra.mxu0 0.0
    %1301 = vmatprep.subr.mxu0 0.0
    %1302 = vmatpush1.msra.mxu0 0.0
    %1303 = vmatprep.subr.mxu0 0.0
    %1304 = vmatpush1.msra.mxu0 0.0
    %1305 = vmatprep.subr.mxu0 0.0
    %1306 = vmatpush1.msra.mxu0 0.0
    %1307 = vmatprep.subr.mxu0 0.0
    %1308 = vmatpush1.msra.mxu0 0.0
    %1309 = vmatprep.subr.mxu0 0.0
    %1310 = vmatpush1.msra.mxu0 0.0
    %1311 = vmatprep.subr.mxu0 0.0
    %1312 = vmatpush1.msra.mxu0 0.0
    %1313 = vmatprep.subr.mxu0 0.0
    %1314 = vmatpush1.msra.mxu0 0.0
    %1315 = vmatprep.subr.mxu0 0.0
    %1316 = vmatpush1.msra.mxu0 0.0
    %1317 = vmatprep.subr.mxu0 0.0
    %1318 = vmatpush1.msra.mxu0 0.0
    %1319 = vmatprep.subr.mxu0 0.0
    %1320 = vmatpush1.msra.mxu0 0.0
    %1321 = vmatprep.subr.mxu0 0.0
    %1322 = vmatpush1.msra.mxu0 0.0
    %1323 = vmatprep.subr.mxu0 0.0
    %1324 = vmatpush1.msra.mxu0 0.0
    %1325 = vmatprep.subr.mxu0 0.0
    %1326 = vmatpush1.msra.mxu0 0.0
    %1327 = vmatprep.subr.mxu0 0.0
    %1328 = vmatpush1.msra.mxu0 0.0
    %1329 = vmatprep.subr.mxu0 0.0
    %1330 = vmatpush1.msra.mxu0 0.0
    %1331 = vmatprep.subr.mxu0 0.0
    %1332 = vmatpush1.msra.mxu0 0.0
    %1333 = vmatprep.subr.mxu0 0.0
    %1334 = vmatpush1.msra.mxu0 0.0
    %1335 = vmatprep.subr.mxu0 0.0
    %1336 = vmatpush1.msra.mxu0 0.0
    %1337 = vmatprep.subr.mxu0 0.0
    %1338 = vmatpush1.msra.mxu0 0.0
    %1339 = vmatprep.subr.mxu0 0.0
    %1340 = vmatpush1.msra.mxu0 0.0
    %1341 = vmatprep.subr.mxu0 0.0
    %1342 = vmatpush1.msra.mxu0 0.0
    %1343 = vmatprep.mubr.f32.mxu0 0.0
    %1344 = vmatmul.mubr.f32.gmra.mrb[0].mxu0 %v1277
    %v1345 = vpop.f32.mrb[0].mxu0
    %v1346 = vadd.f32 0.0, %v1345
    %v1347 = vpop.f32.mrb[0].mxu0
    %1348 = vdwg.mxu0
    %v1349 = vadd.f32 %v1271, %v1346
    %v1350 = vld [vmem:[#allocation2 + $0x12] sm:$0x3]
    %s1351 = scalar_lea.vmem %s3, 144
    %v1352 = vld [vmem:[%s1351] sm:$0xff]
    %v1353 = vld [vmem:[%s1351 + $0x8] sm:$0xff]
    %v1355 = vsel %vm642, %v1350, 0
    %1357 = vmatprep.subr.mxu0 0.0
    %1358 = vmatpush1.msra.mxu0 %v1352
    %1359 = vmatprep.subr.mxu0 0.0
    %1360 = vmatpush1.msra.mxu0 %v1353
    %1361 = vmatprep.subr.mxu0 0.0
    %1362 = vmatpush1.msra.mxu0 0.0
    %1363 = vmatprep.subr.mxu0 0.0
    %1364 = vmatpush1.msra.mxu0 0.0
    %1365 = vmatprep.subr.mxu0 0.0
    %1366 = vmatpush1.msra.mxu0 0.0
    %1367 = vmatprep.subr.mxu0 0.0
    %1368 = vmatpush1.msra.mxu0 0.0
    %1369 = vmatprep.subr.mxu0 0.0
    %1370 = vmatpush1.msra.mxu0 0.0
    %1371 = vmatprep.subr.mxu0 0.0
    %1372 = vmatpush1.msra.mxu0 0.0
    %1373 = vmatprep.subr.mxu0 0.0
    %1374 = vmatpush1.msra.mxu0 0.0
    %1375 = vmatprep.subr.mxu0 0.0
    %1376 = vmatpush1.msra.mxu0 0.0
    %1377 = vmatprep.subr.mxu0 0.0
    %1378 = vmatpush1.msra.mxu0 0.0
    %1379 = vmatprep.subr.mxu0 0.0
    %1380 = vmatpush1.msra.mxu0 0.0
    %1381 = vmatprep.subr.mxu0 0.0
    %1382 = vmatpush1.msra.mxu0 0.0
    %1383 = vmatprep.subr.mxu0 0.0
    %1384 = vmatpush1.msra.mxu0 0.0
    %1385 = vmatprep.subr.mxu0 0.0
    %1386 = vmatpush1.msra.mxu0 0.0
    %1387 = vmatprep.subr.mxu0 0.0
    %1388 = vmatpush1.msra.mxu0 0.0
    %1389 = vmatprep.subr.mxu0 0.0
    %1390 = vmatpush1.msra.mxu0 0.0
    %1391 = vmatprep.subr.mxu0 0.0
    %1392 = vmatpush1.msra.mxu0 0.0
    %1393 = vmatprep.subr.mxu0 0.0
    %1394 = vmatpush1.msra.mxu0 0.0
    %1395 = vmatprep.subr.mxu0 0.0
    %1396 = vmatpush1.msra.mxu0 0.0
    %1397 = vmatprep.subr.mxu0 0.0
    %1398 = vmatpush1.msra.mxu0 0.0
    %1399 = vmatprep.subr.mxu0 0.0
    %1400 = vmatpush1.msra.mxu0 0.0
    %1401 = vmatprep.subr.mxu0 0.0
    %1402 = vmatpush1.msra.mxu0 0.0
    %1403 = vmatprep.subr.mxu0 0.0
    %1404 = vmatpush1.msra.mxu0 0.0
    %1405 = vmatprep.subr.mxu0 0.0
    %1406 = vmatpush1.msra.mxu0 0.0
    %1407 = vmatprep.subr.mxu0 0.0
    %1408 = vmatpush1.msra.mxu0 0.0
    %1409 = vmatprep.subr.mxu0 0.0
    %1410 = vmatpush1.msra.mxu0 0.0
    %1411 = vmatprep.subr.mxu0 0.0
    %1412 = vmatpush1.msra.mxu0 0.0
    %1413 = vmatprep.subr.mxu0 0.0
    %1414 = vmatpush1.msra.mxu0 0.0
    %1415 = vmatprep.subr.mxu0 0.0
    %1416 = vmatpush1.msra.mxu0 0.0
    %1417 = vmatprep.subr.mxu0 0.0
    %1418 = vmatpush1.msra.mxu0 0.0
    %1419 = vmatprep.subr.mxu0 0.0
    %1420 = vmatpush1.msra.mxu0 0.0
    %1421 = vmatprep.mubr.f32.mxu0 0.0
    %1422 = vmatmul.mubr.f32.gmra.mrb[0].mxu0 %v1355
    %v1423 = vpop.f32.mrb[0].mxu0
    %v1424 = vadd.f32 0.0, %v1423
    %v1425 = vpop.f32.mrb[0].mxu0
    %1426 = vdwg.mxu0
    %v1427 = vadd.f32 %v1349, %v1424
    %v1428 = vld [vmem:[#allocation2 + $0x14] sm:$0x3]
    %s1429 = scalar_lea.vmem %s3, 160
    %v1430 = vld [vmem:[%s1429] sm:$0xff]
    %v1431 = vld [vmem:[%s1429 + $0x8] sm:$0xff]
    %v1433 = vsel %vm642, %v1428, 0
    %1435 = vmatprep.subr.mxu0 0.0
    %1436 = vmatpush1.msra.mxu0 %v1430
    %1437 = vmatprep.subr.mxu0 0.0
    %1438 = vmatpush1.msra.mxu0 %v1431
    %1439 = vmatprep.subr.mxu0 0.0
    %1440 = vmatpush1.msra.mxu0 0.0
    %1441 = vmatprep.subr.mxu0 0.0
    %1442 = vmatpush1.msra.mxu0 0.0
    %1443 = vmatprep.subr.mxu0 0.0
    %1444 = vmatpush1.msra.mxu0 0.0
    %1445 = vmatprep.subr.mxu0 0.0
    %1446 = vmatpush1.msra.mxu0 0.0
    %1447 = vmatprep.subr.mxu0 0.0
    %1448 = vmatpush1.msra.mxu0 0.0
    %1449 = vmatprep.subr.mxu0 0.0
    %1450 = vmatpush1.msra.mxu0 0.0
    %1451 = vmatprep.subr.mxu0 0.0
    %1452 = vmatpush1.msra.mxu0 0.0
    %1453 = vmatprep.subr.mxu0 0.0
    %1454 = vmatpush1.msra.mxu0 0.0
    %1455 = vmatprep.subr.mxu0 0.0
    %1456 = vmatpush1.msra.mxu0 0.0
    %1457 = vmatprep.subr.mxu0 0.0
    %1458 = vmatpush1.msra.mxu0 0.0
    %1459 = vmatprep.subr.mxu0 0.0
    %1460 = vmatpush1.msra.mxu0 0.0
    %1461 = vmatprep.subr.mxu0 0.0
    %1462 = vmatpush1.msra.mxu0 0.0
    %1463 = vmatprep.subr.mxu0 0.0
    %1464 = vmatpush1.msra.mxu0 0.0
    %1465 = vmatprep.subr.mxu0 0.0
    %1466 = vmatpush1.msra.mxu0 0.0
    %1467 = vmatprep.subr.mxu0 0.0
    %1468 = vmatpush1.msra.mxu0 0.0
    %1469 = vmatprep.subr.mxu0 0.0
    %1470 = vmatpush1.msra.mxu0 0.0
    %1471 = vmatprep.subr.mxu0 0.0
    %1472 = vmatpush1.msra.mxu0 0.0
    %1473 = vmatprep.subr.mxu0 0.0
    %1474 = vmatpush1.msra.mxu0 0.0
    %1475 = vmatprep.subr.mxu0 0.0
    %1476 = vmatpush1.msra.mxu0 0.0
    %1477 = vmatprep.subr.mxu0 0.0
    %1478 = vmatpush1.msra.mxu0 0.0
    %1479 = vmatprep.subr.mxu0 0.0
    %1480 = vmatpush1.msra.mxu0 0.0
    %1481 = vmatprep.subr.mxu0 0.0
    %1482 = vmatpush1.msra.mxu0 0.0
    %1483 = vmatprep.subr.mxu0 0.0
    %1484 = vmatpush1.msra.mxu0 0.0
    %1485 = vmatprep.subr.mxu0 0.0
    %1486 = vmatpush1.msra.mxu0 0.0
    %1487 = vmatprep.subr.mxu0 0.0
    %1488 = vmatpush1.msra.mxu0 0.0
    %1489 = vmatprep.subr.mxu0 0.0
    %1490 = vmatpush1.msra.mxu0 0.0
    %1491 = vmatprep.subr.mxu0 0.0
    %1492 = vmatpush1.msra.mxu0 0.0
    %1493 = vmatprep.subr.mxu0 0.0
    %1494 = vmatpush1.msra.mxu0 0.0
    %1495 = vmatprep.subr.mxu0 0.0
    %1496 = vmatpush1.msra.mxu0 0.0
    %1497 = vmatprep.subr.mxu0 0.0
    %1498 = vmatpush1.msra.mxu0 0.0
    %1499 = vmatprep.mubr.f32.mxu0 0.0
    %1500 = vmatmul.mubr.f32.gmra.mrb[0].mxu0 %v1433
    %v1501 = vpop.f32.mrb[0].mxu0
    %v1502 = vadd.f32 0.0, %v1501
    %v1503 = vpop.f32.mrb[0].mxu0
    %1504 = vdwg.mxu0
    %v1505 = vadd.f32 %v1427, %v1502
    %v1506 = vld [vmem:[#allocation2 + $0x16] sm:$0x3]
    %s1507 = scalar_lea.vmem %s3, 176
    %v1508 = vld [vmem:[%s1507] sm:$0xff]
    %v1509 = vld [vmem:[%s1507 + $0x8] sm:$0xff]
    %v1511 = vsel %vm642, %v1506, 0
    %1513 = vmatprep.subr.mxu0 0.0
    %1514 = vmatpush1.msra.mxu0 %v1508
    %1515 = vmatprep.subr.mxu0 0.0
    %1516 = vmatpush1.msra.mxu0 %v1509
    %1517 = vmatprep.subr.mxu0 0.0
    %1518 = vmatpush1.msra.mxu0 0.0
    %1519 = vmatprep.subr.mxu0 0.0
    %1520 = vmatpush1.msra.mxu0 0.0
    %1521 = vmatprep.subr.mxu0 0.0
    %1522 = vmatpush1.msra.mxu0 0.0
    %1523 = vmatprep.subr.mxu0 0.0
    %1524 = vmatpush1.msra.mxu0 0.0
    %1525 = vmatprep.subr.mxu0 0.0
    %1526 = vmatpush1.msra.mxu0 0.0
    %1527 = vmatprep.subr.mxu0 0.0
    %1528 = vmatpush1.msra.mxu0 0.0
    %1529 = vmatprep.subr.mxu0 0.0
    %1530 = vmatpush1.msra.mxu0 0.0
    %1531 = vmatprep.subr.mxu0 0.0
    %1532 = vmatpush1.msra.mxu0 0.0
    %1533 = vmatprep.subr.mxu0 0.0
    %1534 = vmatpush1.msra.mxu0 0.0
    %1535 = vmatprep.subr.mxu0 0.0
    %1536 = vmatpush1.msra.mxu0 0.0
    %1537 = vmatprep.subr.mxu0 0.0
    %1538 = vmatpush1.msra.mxu0 0.0
    %1539 = vmatprep.subr.mxu0 0.0
    %1540 = vmatpush1.msra.mxu0 0.0
    %1541 = vmatprep.subr.mxu0 0.0
    %1542 = vmatpush1.msra.mxu0 0.0
    %1543 = vmatprep.subr.mxu0 0.0
    %1544 = vmatpush1.msra.mxu0 0.0
    %1545 = vmatprep.subr.mxu0 0.0
    %1546 = vmatpush1.msra.mxu0 0.0
    %1547 = vmatprep.subr.mxu0 0.0
    %1548 = vmatpush1.msra.mxu0 0.0
    %1549 = vmatprep.subr.mxu0 0.0
    %1550 = vmatpush1.msra.mxu0 0.0
    %1551 = vmatprep.subr.mxu0 0.0
    %1552 = vmatpush1.msra.mxu0 0.0
    %1553 = vmatprep.subr.mxu0 0.0
    %1554 = vmatpush1.msra.mxu0 0.0
    %1555 = vmatprep.subr.mxu0 0.0
    %1556 = vmatpush1.msra.mxu0 0.0
    %1557 = vmatprep.subr.mxu0 0.0
    %1558 = vmatpush1.msra.mxu0 0.0
    %1559 = vmatprep.subr.mxu0 0.0
    %1560 = vmatpush1.msra.mxu0 0.0
    %1561 = vmatprep.subr.mxu0 0.0
    %1562 = vmatpush1.msra.mxu0 0.0
    %1563 = vmatprep.subr.mxu0 0.0
    %1564 = vmatpush1.msra.mxu0 0.0
    %1565 = vmatprep.subr.mxu0 0.0
    %1566 = vmatpush1.msra.mxu0 0.0
    %1567 = vmatprep.subr.mxu0 0.0
    %1568 = vmatpush1.msra.mxu0 0.0
    %1569 = vmatprep.subr.mxu0 0.0
    %1570 = vmatpush1.msra.mxu0 0.0
    %1571 = vmatprep.subr.mxu0 0.0
    %1572 = vmatpush1.msra.mxu0 0.0
    %1573 = vmatprep.subr.mxu0 0.0
    %1574 = vmatpush1.msra.mxu0 0.0
    %1575 = vmatprep.subr.mxu0 0.0
    %1576 = vmatpush1.msra.mxu0 0.0
    %1577 = vmatprep.mubr.f32.mxu0 0.0
    %1578 = vmatmul.mubr.f32.gmra.mrb[0].mxu0 %v1511
    %v1579 = vpop.f32.mrb[0].mxu0
    %v1580 = vadd.f32 0.0, %v1579
    %v1581 = vpop.f32.mrb[0].mxu0
    %1582 = vdwg.mxu0
    %v1583 = vadd.f32 %v1505, %v1580
    %v1584 = vld [vmem:[#allocation2 + $0x18] sm:$0x3]
    %s1585 = scalar_lea.vmem %s3, 192
    %v1586 = vld [vmem:[%s1585] sm:$0xff]
    %v1587 = vld [vmem:[%s1585 + $0x8] sm:$0xff]
    %v1589 = vsel %vm642, %v1584, 0
    %1591 = vmatprep.subr.mxu0 0.0
    %1592 = vmatpush1.msra.mxu0 %v1586
    %1593 = vmatprep.subr.mxu0 0.0
    %1594 = vmatpush1.msra.mxu0 %v1587
    %1595 = vmatprep.subr.mxu0 0.0
    %1596 = vmatpush1.msra.mxu0 0.0
    %1597 = vmatprep.subr.mxu0 0.0
    %1598 = vmatpush1.msra.mxu0 0.0
    %1599 = vmatprep.subr.mxu0 0.0
    %1600 = vmatpush1.msra.mxu0 0.0
    %1601 = vmatprep.subr.mxu0 0.0
    %1602 = vmatpush1.msra.mxu0 0.0
    %1603 = vmatprep.subr.mxu0 0.0
    %1604 = vmatpush1.msra.mxu0 0.0
    %1605 = vmatprep.subr.mxu0 0.0
    %1606 = vmatpush1.msra.mxu0 0.0
    %1607 = vmatprep.subr.mxu0 0.0
    %1608 = vmatpush1.msra.mxu0 0.0
    %1609 = vmatprep.subr.mxu0 0.0
    %1610 = vmatpush1.msra.mxu0 0.0
    %1611 = vmatprep.subr.mxu0 0.0
    %1612 = vmatpush1.msra.mxu0 0.0
    %1613 = vmatprep.subr.mxu0 0.0
    %1614 = vmatpush1.msra.mxu0 0.0
    %1615 = vmatprep.subr.mxu0 0.0
    %1616 = vmatpush1.msra.mxu0 0.0
    %1617 = vmatprep.subr.mxu0 0.0
    %1618 = vmatpush1.msra.mxu0 0.0
    %1619 = vmatprep.subr.mxu0 0.0
    %1620 = vmatpush1.msra.mxu0 0.0
    %1621 = vmatprep.subr.mxu0 0.0
    %1622 = vmatpush1.msra.mxu0 0.0
    %1623 = vmatprep.subr.mxu0 0.0
    %1624 = vmatpush1.msra.mxu0 0.0
    %1625 = vmatprep.subr.mxu0 0.0
    %1626 = vmatpush1.msra.mxu0 0.0
    %1627 = vmatprep.subr.mxu0 0.0
    %1628 = vmatpush1.msra.mxu0 0.0
    %1629 = vmatprep.subr.mxu0 0.0
    %1630 = vmatpush1.msra.mxu0 0.0
    %1631 = vmatprep.subr.mxu0 0.0
    %1632 = vmatpush1.msra.mxu0 0.0
    %1633 = vmatprep.subr.mxu0 0.0
    %1634 = vmatpush1.msra.mxu0 0.0
    %1635 = vmatprep.subr.mxu0 0.0
    %1636 = vmatpush1.msra.mxu0 0.0
    %1637 = vmatprep.subr.mxu0 0.0
    %1638 = vmatpush1.msra.mxu0 0.0
    %1639 = vmatprep.subr.mxu0 0.0
    %1640 = vmatpush1.msra.mxu0 0.0
    %1641 = vmatprep.subr.mxu0 0.0
    %1642 = vmatpush1.msra.mxu0 0.0
    %1643 = vmatprep.subr.mxu0 0.0
    %1644 = vmatpush1.msra.mxu0 0.0
    %1645 = vmatprep.subr.mxu0 0.0
    %1646 = vmatpush1.msra.mxu0 0.0
    %1647 = vmatprep.subr.mxu0 0.0
    %1648 = vmatpush1.msra.mxu0 0.0
    %1649 = vmatprep.subr.mxu0 0.0
    %1650 = vmatpush1.msra.mxu0 0.0
    %1651 = vmatprep.subr.mxu0 0.0
    %1652 = vmatpush1.msra.mxu0 0.0
    %1653 = vmatprep.subr.mxu0 0.0
    %1654 = vmatpush1.msra.mxu0 0.0
    %1655 = vmatprep.mubr.f32.mxu0 0.0
    %1656 = vmatmul.mubr.f32.gmra.mrb[0].mxu0 %v1589
    %v1657 = vpop.f32.mrb[0].mxu0
    %v1658 = vadd.f32 0.0, %v1657
    %v1659 = vpop.f32.mrb[0].mxu0
    %1660 = vdwg.mxu0
    %v1661 = vadd.f32 %v1583, %v1658
    %v1662 = vld [vmem:[#allocation2 + $0x1a] sm:$0x3]
    %s1663 = scalar_lea.vmem %s3, 208
    %v1664 = vld [vmem:[%s1663] sm:$0xff]
    %v1665 = vld [vmem:[%s1663 + $0x8] sm:$0xff]
    %v1667 = vsel %vm642, %v1662, 0
    %1669 = vmatprep.subr.mxu0 0.0
    %1670 = vmatpush1.msra.mxu0 %v1664
    %1671 = vmatprep.subr.mxu0 0.0
    %1672 = vmatpush1.msra.mxu0 %v1665
    %1673 = vmatprep.subr.mxu0 0.0
    %1674 = vmatpush1.msra.mxu0 0.0
    %1675 = vmatprep.subr.mxu0 0.0
    %1676 = vmatpush1.msra.mxu0 0.0
    %1677 = vmatprep.subr.mxu0 0.0
    %1678 = vmatpush1.msra.mxu0 0.0
    %1679 = vmatprep.subr.mxu0 0.0
    %1680 = vmatpush1.msra.mxu0 0.0
    %1681 = vmatprep.subr.mxu0 0.0
    %1682 = vmatpush1.msra.mxu0 0.0
    %1683 = vmatprep.subr.mxu0 0.0
    %1684 = vmatpush1.msra.mxu0 0.0
    %1685 = vmatprep.subr.mxu0 0.0
    %1686 = vmatpush1.msra.mxu0 0.0
    %1687 = vmatprep.subr.mxu0 0.0
    %1688 = vmatpush1.msra.mxu0 0.0
    %1689 = vmatprep.subr.mxu0 0.0
    %1690 = vmatpush1.msra.mxu0 0.0
    %1691 = vmatprep.subr.mxu0 0.0
    %1692 = vmatpush1.msra.mxu0 0.0
    %1693 = vmatprep.subr.mxu0 0.0
    %1694 = vmatpush1.msra.mxu0 0.0
    %1695 = vmatprep.subr.mxu0 0.0
    %1696 = vmatpush1.msra.mxu0 0.0
    %1697 = vmatprep.subr.mxu0 0.0
    %1698 = vmatpush1.msra.mxu0 0.0
    %1699 = vmatprep.subr.mxu0 0.0
    %1700 = vmatpush1.msra.mxu0 0.0
    %1701 = vmatprep.subr.mxu0 0.0
    %1702 = vmatpush1.msra.mxu0 0.0
    %1703 = vmatprep.subr.mxu0 0.0
    %1704 = vmatpush1.msra.mxu0 0.0
    %1705 = vmatprep.subr.mxu0 0.0
    %1706 = vmatpush1.msra.mxu0 0.0
    %1707 = vmatprep.subr.mxu0 0.0
    %1708 = vmatpush1.msra.mxu0 0.0
    %1709 = vmatprep.subr.mxu0 0.0
    %1710 = vmatpush1.msra.mxu0 0.0
    %1711 = vmatprep.subr.mxu0 0.0
    %1712 = vmatpush1.msra.mxu0 0.0
    %1713 = vmatprep.subr.mxu0 0.0
    %1714 = vmatpush1.msra.mxu0 0.0
    %1715 = vmatprep.subr.mxu0 0.0
    %1716 = vmatpush1.msra.mxu0 0.0
    %1717 = vmatprep.subr.mxu0 0.0
    %1718 = vmatpush1.msra.mxu0 0.0
    %1719 = vmatprep.subr.mxu0 0.0
    %1720 = vmatpush1.msra.mxu0 0.0
    %1721 = vmatprep.subr.mxu0 0.0
    %1722 = vmatpush1.msra.mxu0 0.0
    %1723 = vmatprep.subr.mxu0 0.0
    %1724 = vmatpush1.msra.mxu0 0.0
    %1725 = vmatprep.subr.mxu0 0.0
    %1726 = vmatpush1.msra.mxu0 0.0
    %1727 = vmatprep.subr.mxu0 0.0
    %1728 = vmatpush1.msra.mxu0 0.0
    %1729 = vmatprep.subr.mxu0 0.0
    %1730 = vmatpush1.msra.mxu0 0.0
    %1731 = vmatprep.subr.mxu0 0.0
    %1732 = vmatpush1.msra.mxu0 0.0
    %1733 = vmatprep.mubr.f32.mxu0 0.0
    %1734 = vmatmul.mubr.f32.gmra.mrb[0].mxu0 %v1667
    %v1735 = vpop.f32.mrb[0].mxu0
    %v1736 = vadd.f32 0.0, %v1735
    %v1737 = vpop.f32.mrb[0].mxu0
    %1738 = vdwg.mxu0
    %v1739 = vadd.f32 %v1661, %v1736
    %v1740 = vld [vmem:[#allocation2 + $0x1c] sm:$0x3]
    %s1741 = scalar_lea.vmem %s3, 224
    %v1742 = vld [vmem:[%s1741] sm:$0xff]
    %v1743 = vld [vmem:[%s1741 + $0x8] sm:$0xff]
    %v1745 = vsel %vm642, %v1740, 0
    %1747 = vmatprep.subr.mxu0 0.0
    %1748 = vmatpush1.msra.mxu0 %v1742
    %1749 = vmatprep.subr.mxu0 0.0
    %1750 = vmatpush1.msra.mxu0 %v1743
    %1751 = vmatprep.subr.mxu0 0.0
    %1752 = vmatpush1.msra.mxu0 0.0
    %1753 = vmatprep.subr.mxu0 0.0
    %1754 = vmatpush1.msra.mxu0 0.0
    %1755 = vmatprep.subr.mxu0 0.0
    %1756 = vmatpush1.msra.mxu0 0.0
    %1757 = vmatprep.subr.mxu0 0.0
    %1758 = vmatpush1.msra.mxu0 0.0
    %1759 = vmatprep.subr.mxu0 0.0
    %1760 = vmatpush1.msra.mxu0 0.0
    %1761 = vmatprep.subr.mxu0 0.0
    %1762 = vmatpush1.msra.mxu0 0.0
    %1763 = vmatprep.subr.mxu0 0.0
    %1764 = vmatpush1.msra.mxu0 0.0
    %1765 = vmatprep.subr.mxu0 0.0
    %1766 = vmatpush1.msra.mxu0 0.0
    %1767 = vmatprep.subr.mxu0 0.0
    %1768 = vmatpush1.msra.mxu0 0.0
    %1769 = vmatprep.subr.mxu0 0.0
    %1770 = vmatpush1.msra.mxu0 0.0
    %1771 = vmatprep.subr.mxu0 0.0
    %1772 = vmatpush1.msra.mxu0 0.0
    %1773 = vmatprep.subr.mxu0 0.0
    %1774 = vmatpush1.msra.mxu0 0.0
    %1775 = vmatprep.subr.mxu0 0.0
    %1776 = vmatpush1.msra.mxu0 0.0
    %1777 = vmatprep.subr.mxu0 0.0
    %1778 = vmatpush1.msra.mxu0 0.0
    %1779 = vmatprep.subr.mxu0 0.0
    %1780 = vmatpush1.msra.mxu0 0.0
    %1781 = vmatprep.subr.mxu0 0.0
    %1782 = vmatpush1.msra.mxu0 0.0
    %1783 = vmatprep.subr.mxu0 0.0
    %1784 = vmatpush1.msra.mxu0 0.0
    %1785 = vmatprep.subr.mxu0 0.0
    %1786 = vmatpush1.msra.mxu0 0.0
    %1787 = vmatprep.subr.mxu0 0.0
    %1788 = vmatpush1.msra.mxu0 0.0
    %1789 = vmatprep.subr.mxu0 0.0
    %1790 = vmatpush1.msra.mxu0 0.0
    %1791 = vmatprep.subr.mxu0 0.0
    %1792 = vmatpush1.msra.mxu0 0.0
    %1793 = vmatprep.subr.mxu0 0.0
    %1794 = vmatpush1.msra.mxu0 0.0
    %1795 = vmatprep.subr.mxu0 0.0
    %1796 = vmatpush1.msra.mxu0 0.0
    %1797 = vmatprep.subr.mxu0 0.0
    %1798 = vmatpush1.msra.mxu0 0.0
    %1799 = vmatprep.subr.mxu0 0.0
    %1800 = vmatpush1.msra.mxu0 0.0
    %1801 = vmatprep.subr.mxu0 0.0
    %1802 = vmatpush1.msra.mxu0 0.0
    %1803 = vmatprep.subr.mxu0 0.0
    %1804 = vmatpush1.msra.mxu0 0.0
    %1805 = vmatprep.subr.mxu0 0.0
    %1806 = vmatpush1.msra.mxu0 0.0
    %1807 = vmatprep.subr.mxu0 0.0
    %1808 = vmatpush1.msra.mxu0 0.0
    %1809 = vmatprep.subr.mxu0 0.0
    %1810 = vmatpush1.msra.mxu0 0.0
    %1811 = vmatprep.mubr.f32.mxu0 0.0
    %1812 = vmatmul.mubr.f32.gmra.mrb[0].mxu0 %v1745
    %v1813 = vpop.f32.mrb[0].mxu0
    %v1814 = vadd.f32 0.0, %v1813
    %v1815 = vpop.f32.mrb[0].mxu0
    %1816 = vdwg.mxu0
    %v1817 = vadd.f32 %v1739, %v1814
    %v1818 = vld [vmem:[#allocation2 + $0x1e] sm:$0x3]
    %s1819 = scalar_lea.vmem %s3, 240
    %v1820 = vld [vmem:[%s1819] sm:$0xff]
    %v1821 = vld [vmem:[%s1819 + $0x8] sm:$0xff]
    %v1823 = vsel %vm642, %v1818, 0
    %1825 = vmatprep.subr.mxu0 0.0
    %1826 = vmatpush1.msra.mxu0 %v1820
    %1827 = vmatprep.subr.mxu0 0.0
    %1828 = vmatpush1.msra.mxu0 %v1821
    %1829 = vmatprep.subr.mxu0 0.0
    %1830 = vmatpush1.msra.mxu0 0.0
    %1831 = vmatprep.subr.mxu0 0.0
    %1832 = vmatpush1.msra.mxu0 0.0
    %1833 = vmatprep.subr.mxu0 0.0
    %1834 = vmatpush1.msra.mxu0 0.0
    %1835 = vmatprep.subr.mxu0 0.0
    %1836 = vmatpush1.msra.mxu0 0.0
    %1837 = vmatprep.subr.mxu0 0.0
    %1838 = vmatpush1.msra.mxu0 0.0
    %1839 = vmatprep.subr.mxu0 0.0
    %1840 = vmatpush1.msra.mxu0 0.0
    %1841 = vmatprep.subr.mxu0 0.0
    %1842 = vmatpush1.msra.mxu0 0.0
    %1843 = vmatprep.subr.mxu0 0.0
    %1844 = vmatpush1.msra.mxu0 0.0
    %1845 = vmatprep.subr.mxu0 0.0
    %1846 = vmatpush1.msra.mxu0 0.0
    %1847 = vmatprep.subr.mxu0 0.0
    %1848 = vmatpush1.msra.mxu0 0.0
    %1849 = vmatprep.subr.mxu0 0.0
    %1850 = vmatpush1.msra.mxu0 0.0
    %1851 = vmatprep.subr.mxu0 0.0
    %1852 = vmatpush1.msra.mxu0 0.0
    %1853 = vmatprep.subr.mxu0 0.0
    %1854 = vmatpush1.msra.mxu0 0.0
    %1855 = vmatprep.subr.mxu0 0.0
    %1856 = vmatpush1.msra.mxu0 0.0
    %1857 = vmatprep.subr.mxu0 0.0
    %1858 = vmatpush1.msra.mxu0 0.0
    %1859 = vmatprep.subr.mxu0 0.0
    %1860 = vmatpush1.msra.mxu0 0.0
    %1861 = vmatprep.subr.mxu0 0.0
    %1862 = vmatpush1.msra.mxu0 0.0
    %1863 = vmatprep.subr.mxu0 0.0
    %1864 = vmatpush1.msra.mxu0 0.0
    %1865 = vmatprep.subr.mxu0 0.0
    %1866 = vmatpush1.msra.mxu0 0.0
    %1867 = vmatprep.subr.mxu0 0.0
    %1868 = vmatpush1.msra.mxu0 0.0
    %1869 = vmatprep.subr.mxu0 0.0
    %1870 = vmatpush1.msra.mxu0 0.0
    %1871 = vmatprep.subr.mxu0 0.0
    %1872 = vmatpush1.msra.mxu0 0.0
    %1873 = vmatprep.subr.mxu0 0.0
    %1874 = vmatpush1.msra.mxu0 0.0
    %1875 = vmatprep.subr.mxu0 0.0
    %1876 = vmatpush1.msra.mxu0 0.0
    %1877 = vmatprep.subr.mxu0 0.0
    %1878 = vmatpush1.msra.mxu0 0.0
    %1879 = vmatprep.subr.mxu0 0.0
    %1880 = vmatpush1.msra.mxu0 0.0
    %1881 = vmatprep.subr.mxu0 0.0
    %1882 = vmatpush1.msra.mxu0 0.0
    %1883 = vmatprep.subr.mxu0 0.0
    %1884 = vmatpush1.msra.mxu0 0.0
    %1885 = vmatprep.subr.mxu0 0.0
    %1886 = vmatpush1.msra.mxu0 0.0
    %1887 = vmatprep.subr.mxu0 0.0
    %1888 = vmatpush1.msra.mxu0 0.0
    %1889 = vmatprep.mubr.f32.mxu0 0.0
    %1890 = vmatmul.mubr.f32.gmra.mrb[0].mxu0 %v1823
    %v1891 = vpop.f32.mrb[0].mxu0
    %v1892 = vadd.f32 0.0, %v1891
    %v1893 = vpop.f32.mrb[0].mxu0
    %1894 = vdwg.mxu0
    %v1895 = vadd.f32 %v1817, %v1892
    %v1896 = vld [vmem:[#allocation2 + $0x20] sm:$0x3]
    %s1897 = scalar_lea.vmem %s3, 256
    %v1898 = vld [vmem:[%s1897] sm:$0xff]
    %v1899 = vld [vmem:[%s1897 + $0x8] sm:$0xff]
    %v1901 = vsel %vm642, %v1896, 0
    %1903 = vmatprep.subr.mxu0 0.0
    %1904 = vmatpush1.msra.mxu0 %v1898
    %1905 = vmatprep.subr.mxu0 0.0
    %1906 = vmatpush1.msra.mxu0 %v1899
    %1907 = vmatprep.subr.mxu0 0.0
    %1908 = vmatpush1.msra.mxu0 0.0
    %1909 = vmatprep.subr.mxu0 0.0
    %1910 = vmatpush1.msra.mxu0 0.0
    %1911 = vmatprep.subr.mxu0 0.0
    %1912 = vmatpush1.msra.mxu0 0.0
    %1913 = vmatprep.subr.mxu0 0.0
    %1914 = vmatpush1.msra.mxu0 0.0
    %1915 = vmatprep.subr.mxu0 0.0
    %1916 = vmatpush1.msra.mxu0 0.0
    %1917 = vmatprep.subr.mxu0 0.0
    %1918 = vmatpush1.msra.mxu0 0.0
    %1919 = vmatprep.subr.mxu0 0.0
    %1920 = vmatpush1.msra.mxu0 0.0
    %1921 = vmatprep.subr.mxu0 0.0
    %1922 = vmatpush1.msra.mxu0 0.0
    %1923 = vmatprep.subr.mxu0 0.0
    %1924 = vmatpush1.msra.mxu0 0.0
    %1925 = vmatprep.subr.mxu0 0.0
    %1926 = vmatpush1.msra.mxu0 0.0
    %1927 = vmatprep.subr.mxu0 0.0
    %1928 = vmatpush1.msra.mxu0 0.0
    %1929 = vmatprep.subr.mxu0 0.0
    %1930 = vmatpush1.msra.mxu0 0.0
    %1931 = vmatprep.subr.mxu0 0.0
    %1932 = vmatpush1.msra.mxu0 0.0
    %1933 = vmatprep.subr.mxu0 0.0
    %1934 = vmatpush1.msra.mxu0 0.0
    %1935 = vmatprep.subr.mxu0 0.0
    %1936 = vmatpush1.msra.mxu0 0.0
    %1937 = vmatprep.subr.mxu0 0.0
    %1938 = vmatpush1.msra.mxu0 0.0
    %1939 = vmatprep.subr.mxu0 0.0
    %1940 = vmatpush1.msra.mxu0 0.0
    %1941 = vmatprep.subr.mxu0 0.0
    %1942 = vmatpush1.msra.mxu0 0.0
    %1943 = vmatprep.subr.mxu0 0.0
    %1944 = vmatpush1.msra.mxu0 0.0
    %1945 = vmatprep.subr.mxu0 0.0
    %1946 = vmatpush1.msra.mxu0 0.0
    %1947 = vmatprep.subr.mxu0 0.0
    %1948 = vmatpush1.msra.mxu0 0.0
    %1949 = vmatprep.subr.mxu0 0.0
    %1950 = vmatpush1.msra.mxu0 0.0
    %1951 = vmatprep.subr.mxu0 0.0
    %1952 = vmatpush1.msra.mxu0 0.0
    %1953 = vmatprep.subr.mxu0 0.0
    %1954 = vmatpush1.msra.mxu0 0.0
    %1955 = vmatprep.subr.mxu0 0.0
    %1956 = vmatpush1.msra.mxu0 0.0
    %1957 = vmatprep.subr.mxu0 0.0
    %1958 = vmatpush1.msra.mxu0 0.0
    %1959 = vmatprep.subr.mxu0 0.0
    %1960 = vmatpush1.msra.mxu0 0.0
    %1961 = vmatprep.subr.mxu0 0.0
    %1962 = vmatpush1.msra.mxu0 0.0
    %1963 = vmatprep.subr.mxu0 0.0
    %1964 = vmatpush1.msra.mxu0 0.0
    %1965 = vmatprep.subr.mxu0 0.0
    %1966 = vmatpush1.msra.mxu0 0.0
    %1967 = vmatprep.mubr.f32.mxu0 0.0
    %1968 = vmatmul.mubr.f32.gmra.mrb[0].mxu0 %v1901
    %v1969 = vpop.f32.mrb[0].mxu0
    %v1970 = vadd.f32 0.0, %v1969
    %v1971 = vpop.f32.mrb[0].mxu0
    %1972 = vdwg.mxu0
    %v1973 = vadd.f32 %v1895, %v1970
    %v1974 = vld [vmem:[#allocation2 + $0x22] sm:$0x3]
    %s1975 = scalar_lea.vmem %s3, 272
    %v1976 = vld [vmem:[%s1975] sm:$0xff]
    %v1977 = vld [vmem:[%s1975 + $0x8] sm:$0xff]
    %v1979 = vsel %vm642, %v1974, 0
    %1981 = vmatprep.subr.mxu0 0.0
    %1982 = vmatpush1.msra.mxu0 %v1976
    %1983 = vmatprep.subr.mxu0 0.0
    %1984 = vmatpush1.msra.mxu0 %v1977
    %1985 = vmatprep.subr.mxu0 0.0
    %1986 = vmatpush1.msra.mxu0 0.0
    %1987 = vmatprep.subr.mxu0 0.0
    %1988 = vmatpush1.msra.mxu0 0.0
    %1989 = vmatprep.subr.mxu0 0.0
    %1990 = vmatpush1.msra.mxu0 0.0
    %1991 = vmatprep.subr.mxu0 0.0
    %1992 = vmatpush1.msra.mxu0 0.0
    %1993 = vmatprep.subr.mxu0 0.0
    %1994 = vmatpush1.msra.mxu0 0.0
    %1995 = vmatprep.subr.mxu0 0.0
    %1996 = vmatpush1.msra.mxu0 0.0
    %1997 = vmatprep.subr.mxu0 0.0
    %1998 = vmatpush1.msra.mxu0 0.0
    %1999 = vmatprep.subr.mxu0 0.0
    %2000 = vmatpush1.msra.mxu0 0.0
    %2001 = vmatprep.subr.mxu0 0.0
    %2002 = vmatpush1.msra.mxu0 0.0
    %2003 = vmatprep.subr.mxu0 0.0
    %2004 = vmatpush1.msra.mxu0 0.0
    %2005 = vmatprep.subr.mxu0 0.0
    %2006 = vmatpush1.msra.mxu0 0.0
    %2007 = vmatprep.subr.mxu0 0.0
    %2008 = vmatpush1.msra.mxu0 0.0
    %2009 = vmatprep.subr.mxu0 0.0
    %2010 = vmatpush1.msra.mxu0 0.0
    %2011 = vmatprep.subr.mxu0 0.0
    %2012 = vmatpush1.msra.mxu0 0.0
    %2013 = vmatprep.subr.mxu0 0.0
    %2014 = vmatpush1.msra.mxu0 0.0
    %2015 = vmatprep.subr.mxu0 0.0
    %2016 = vmatpush1.msra.mxu0 0.0
    %2017 = vmatprep.subr.mxu0 0.0
    %2018 = vmatpush1.msra.mxu0 0.0
    %2019 = vmatprep.subr.mxu0 0.0
    %2020 = vmatpush1.msra.mxu0 0.0
    %2021 = vmatprep.subr.mxu0 0.0
    %2022 = vmatpush1.msra.mxu0 0.0
    %2023 = vmatprep.subr.mxu0 0.0
    %2024 = vmatpush1.msra.mxu0 0.0
    %2025 = vmatprep.subr.mxu0 0.0
    %2026 = vmatpush1.msra.mxu0 0.0
    %2027 = vmatprep.subr.mxu0 0.0
    %2028 = vmatpush1.msra.mxu0 0.0
    %2029 = vmatprep.subr.mxu0 0.0
    %2030 = vmatpush1.msra.mxu0 0.0
    %2031 = vmatprep.subr.mxu0 0.0
    %2032 = vmatpush1.msra.mxu0 0.0
    %2033 = vmatprep.subr.mxu0 0.0
    %2034 = vmatpush1.msra.mxu0 0.0
    %2035 = vmatprep.subr.mxu0 0.0
    %2036 = vmatpush1.msra.mxu0 0.0
    %2037 = vmatprep.subr.mxu0 0.0
    %2038 = vmatpush1.msra.mxu0 0.0
    %2039 = vmatprep.subr.mxu0 0.0
    %2040 = vmatpush1.msra.mxu0 0.0
    %2041 = vmatprep.subr.mxu0 0.0
    %2042 = vmatpush1.msra.mxu0 0.0
    %2043 = vmatprep.subr.mxu0 0.0
    %2044 = vmatpush1.msra.mxu0 0.0
    %2045 = vmatprep.mubr.f32.mxu0 0.0
    %2046 = vmatmul.mubr.f32.gmra.mrb[0].mxu0 %v1979
    %v2047 = vpop.f32.mrb[0].mxu0
    %v2048 = vadd.f32 0.0, %v2047
    %v2049 = vpop.f32.mrb[0].mxu0
    %2050 = vdwg.mxu0
    %v2051 = vadd.f32 %v1973, %v2048
    %v2052 = vld [vmem:[#allocation2 + $0x24] sm:$0x3]
    %s2053 = scalar_lea.vmem %s3, 288
    %v2054 = vld [vmem:[%s2053] sm:$0xff]
    %v2055 = vld [vmem:[%s2053 + $0x8] sm:$0xff]
    %v2057 = vsel %vm642, %v2052, 0
    %2059 = vmatprep.subr.mxu0 0.0
    %2060 = vmatpush1.msra.mxu0 %v2054
    %2061 = vmatprep.subr.mxu0 0.0
    %2062 = vmatpush1.msra.mxu0 %v2055
    %2063 = vmatprep.subr.mxu0 0.0
    %2064 = vmatpush1.msra.mxu0 0.0
    %2065 = vmatprep.subr.mxu0 0.0
    %2066 = vmatpush1.msra.mxu0 0.0
    %2067 = vmatprep.subr.mxu0 0.0
    %2068 = vmatpush1.msra.mxu0 0.0
    %2069 = vmatprep.subr.mxu0 0.0
    %2070 = vmatpush1.msra.mxu0 0.0
    %2071 = vmatprep.subr.mxu0 0.0
    %2072 = vmatpush1.msra.mxu0 0.0
    %2073 = vmatprep.subr.mxu0 0.0
    %2074 = vmatpush1.msra.mxu0 0.0
    %2075 = vmatprep.subr.mxu0 0.0
    %2076 = vmatpush1.msra.mxu0 0.0
    %2077 = vmatprep.subr.mxu0 0.0
    %2078 = vmatpush1.msra.mxu0 0.0
    %2079 = vmatprep.subr.mxu0 0.0
    %2080 = vmatpush1.msra.mxu0 0.0
    %2081 = vmatprep.subr.mxu0 0.0
    %2082 = vmatpush1.msra.mxu0 0.0
    %2083 = vmatprep.subr.mxu0 0.0
    %2084 = vmatpush1.msra.mxu0 0.0
    %2085 = vmatprep.subr.mxu0 0.0
    %2086 = vmatpush1.msra.mxu0 0.0
    %2087 = vmatprep.subr.mxu0 0.0
    %2088 = vmatpush1.msra.mxu0 0.0
    %2089 = vmatprep.subr.mxu0 0.0
    %2090 = vmatpush1.msra.mxu0 0.0
    %2091 = vmatprep.subr.mxu0 0.0
    %2092 = vmatpush1.msra.mxu0 0.0
    %2093 = vmatprep.subr.mxu0 0.0
    %2094 = vmatpush1.msra.mxu0 0.0
    %2095 = vmatprep.subr.mxu0 0.0
    %2096 = vmatpush1.msra.mxu0 0.0
    %2097 = vmatprep.subr.mxu0 0.0
    %2098 = vmatpush1.msra.mxu0 0.0
    %2099 = vmatprep.subr.mxu0 0.0
    %2100 = vmatpush1.msra.mxu0 0.0
    %2101 = vmatprep.subr.mxu0 0.0
    %2102 = vmatpush1.msra.mxu0 0.0
    %2103 = vmatprep.subr.mxu0 0.0
    %2104 = vmatpush1.msra.mxu0 0.0
    %2105 = vmatprep.subr.mxu0 0.0
    %2106 = vmatpush1.msra.mxu0 0.0
    %2107 = vmatprep.subr.mxu0 0.0
    %2108 = vmatpush1.msra.mxu0 0.0
    %2109 = vmatprep.subr.mxu0 0.0
    %2110 = vmatpush1.msra.mxu0 0.0
    %2111 = vmatprep.subr.mxu0 0.0
    %2112 = vmatpush1.msra.mxu0 0.0
    %2113 = vmatprep.subr.mxu0 0.0
    %2114 = vmatpush1.msra.mxu0 0.0
    %2115 = vmatprep.subr.mxu0 0.0
    %2116 = vmatpush1.msra.mxu0 0.0
    %2117 = vmatprep.subr.mxu0 0.0
    %2118 = vmatpush1.msra.mxu0 0.0
    %2119 = vmatprep.subr.mxu0 0.0
    %2120 = vmatpush1.msra.mxu0 0.0
    %2121 = vmatprep.subr.mxu0 0.0
    %2122 = vmatpush1.msra.mxu0 0.0
    %2123 = vmatprep.mubr.f32.mxu0 0.0
    %2124 = vmatmul.mubr.f32.gmra.mrb[0].mxu0 %v2057
    %v2125 = vpop.f32.mrb[0].mxu0
    %v2126 = vadd.f32 0.0, %v2125
    %v2127 = vpop.f32.mrb[0].mxu0
    %2128 = vdwg.mxu0
    %v2129 = vadd.f32 %v2051, %v2126
    %v2130 = vld [vmem:[#allocation2 + $0x26] sm:$0x3]
    %s2131 = scalar_lea.vmem %s3, 304
    %v2132 = vld [vmem:[%s2131] sm:$0xff]
    %v2133 = vld [vmem:[%s2131 + $0x8] sm:$0xff]
    %v2135 = vsel %vm642, %v2130, 0
    %2137 = vmatprep.subr.mxu0 0.0
    %2138 = vmatpush1.msra.mxu0 %v2132
    %2139 = vmatprep.subr.mxu0 0.0
    %2140 = vmatpush1.msra.mxu0 %v2133
    %2141 = vmatprep.subr.mxu0 0.0
    %2142 = vmatpush1.msra.mxu0 0.0
    %2143 = vmatprep.subr.mxu0 0.0
    %2144 = vmatpush1.msra.mxu0 0.0
    %2145 = vmatprep.subr.mxu0 0.0
    %2146 = vmatpush1.msra.mxu0 0.0
    %2147 = vmatprep.subr.mxu0 0.0
    %2148 = vmatpush1.msra.mxu0 0.0
    %2149 = vmatprep.subr.mxu0 0.0
    %2150 = vmatpush1.msra.mxu0 0.0
    %2151 = vmatprep.subr.mxu0 0.0
    %2152 = vmatpush1.msra.mxu0 0.0
    %2153 = vmatprep.subr.mxu0 0.0
    %2154 = vmatpush1.msra.mxu0 0.0
    %2155 = vmatprep.subr.mxu0 0.0
    %2156 = vmatpush1.msra.mxu0 0.0
    %2157 = vmatprep.subr.mxu0 0.0
    %2158 = vmatpush1.msra.mxu0 0.0
    %2159 = vmatprep.subr.mxu0 0.0
    %2160 = vmatpush1.msra.mxu0 0.0
    %2161 = vmatprep.subr.mxu0 0.0
    %2162 = vmatpush1.msra.mxu0 0.0
    %2163 = vmatprep.subr.mxu0 0.0
    %2164 = vmatpush1.msra.mxu0 0.0
    %2165 = vmatprep.subr.mxu0 0.0
    %2166 = vmatpush1.msra.mxu0 0.0
    %2167 = vmatprep.subr.mxu0 0.0
    %2168 = vmatpush1.msra.mxu0 0.0
    %2169 = vmatprep.subr.mxu0 0.0
    %2170 = vmatpush1.msra.mxu0 0.0
    %2171 = vmatprep.subr.mxu0 0.0
    %2172 = vmatpush1.msra.mxu0 0.0
    %2173 = vmatprep.subr.mxu0 0.0
    %2174 = vmatpush1.msra.mxu0 0.0
    %2175 = vmatprep.subr.mxu0 0.0
    %2176 = vmatpush1.msra.mxu0 0.0
    %2177 = vmatprep.subr.mxu0 0.0
    %2178 = vmatpush1.msra.mxu0 0.0
    %2179 = vmatprep.subr.mxu0 0.0
    %2180 = vmatpush1.msra.mxu0 0.0
    %2181 = vmatprep.subr.mxu0 0.0
    %2182 = vmatpush1.msra.mxu0 0.0
    %2183 = vmatprep.subr.mxu0 0.0
    %2184 = vmatpush1.msra.mxu0 0.0
    %2185 = vmatprep.subr.mxu0 0.0
    %2186 = vmatpush1.msra.mxu0 0.0
    %2187 = vmatprep.subr.mxu0 0.0
    %2188 = vmatpush1.msra.mxu0 0.0
    %2189 = vmatprep.subr.mxu0 0.0
    %2190 = vmatpush1.msra.mxu0 0.0
    %2191 = vmatprep.subr.mxu0 0.0
    %2192 = vmatpush1.msra.mxu0 0.0
    %2193 = vmatprep.subr.mxu0 0.0
    %2194 = vmatpush1.msra.mxu0 0.0
    %2195 = vmatprep.subr.mxu0 0.0
    %2196 = vmatpush1.msra.mxu0 0.0
    %2197 = vmatprep.subr.mxu0 0.0
    %2198 = vmatpush1.msra.mxu0 0.0
    %2199 = vmatprep.subr.mxu0 0.0
    %2200 = vmatpush1.msra.mxu0 0.0
    %2201 = vmatprep.mubr.f32.mxu0 0.0
    %2202 = vmatmul.mubr.f32.gmra.mrb[0].mxu0 %v2135
    %v2203 = vpop.f32.mrb[0].mxu0
    %v2204 = vadd.f32 0.0, %v2203
    %v2205 = vpop.f32.mrb[0].mxu0
    %2206 = vdwg.mxu0
    %v2207 = vadd.f32 %v2129, %v2204
    %v2208 = vld [vmem:[#allocation2 + $0x28] sm:$0x3]
    %s2209 = scalar_lea.vmem %s3, 320
    %v2210 = vld [vmem:[%s2209] sm:$0xff]
    %v2211 = vld [vmem:[%s2209 + $0x8] sm:$0xff]
    %v2213 = vsel %vm642, %v2208, 0
    %2215 = vmatprep.subr.mxu0 0.0
    %2216 = vmatpush1.msra.mxu0 %v2210
    %2217 = vmatprep.subr.mxu0 0.0
    %2218 = vmatpush1.msra.mxu0 %v2211
    %2219 = vmatprep.subr.mxu0 0.0
    %2220 = vmatpush1.msra.mxu0 0.0
    %2221 = vmatprep.subr.mxu0 0.0
    %2222 = vmatpush1.msra.mxu0 0.0
    %2223 = vmatprep.subr.mxu0 0.0
    %2224 = vmatpush1.msra.mxu0 0.0
    %2225 = vmatprep.subr.mxu0 0.0
    %2226 = vmatpush1.msra.mxu0 0.0
    %2227 = vmatprep.subr.mxu0 0.0
    %2228 = vmatpush1.msra.mxu0 0.0
    %2229 = vmatprep.subr.mxu0 0.0
    %2230 = vmatpush1.msra.mxu0 0.0
    %2231 = vmatprep.subr.mxu0 0.0
    %2232 = vmatpush1.msra.mxu0 0.0
    %2233 = vmatprep.subr.mxu0 0.0
    %2234 = vmatpush1.msra.mxu0 0.0
    %2235 = vmatprep.subr.mxu0 0.0
    %2236 = vmatpush1.msra.mxu0 0.0
    %2237 = vmatprep.subr.mxu0 0.0
    %2238 = vmatpush1.msra.mxu0 0.0
    %2239 = vmatprep.subr.mxu0 0.0
    %2240 = vmatpush1.msra.mxu0 0.0
    %2241 = vmatprep.subr.mxu0 0.0
    %2242 = vmatpush1.msra.mxu0 0.0
    %2243 = vmatprep.subr.mxu0 0.0
    %2244 = vmatpush1.msra.mxu0 0.0
    %2245 = vmatprep.subr.mxu0 0.0
    %2246 = vmatpush1.msra.mxu0 0.0
    %2247 = vmatprep.subr.mxu0 0.0
    %2248 = vmatpush1.msra.mxu0 0.0
    %2249 = vmatprep.subr.mxu0 0.0
    %2250 = vmatpush1.msra.mxu0 0.0
    %2251 = vmatprep.subr.mxu0 0.0
    %2252 = vmatpush1.msra.mxu0 0.0
    %2253 = vmatprep.subr.mxu0 0.0
    %2254 = vmatpush1.msra.mxu0 0.0
    %2255 = vmatprep.subr.mxu0 0.0
    %2256 = vmatpush1.msra.mxu0 0.0
    %2257 = vmatprep.subr.mxu0 0.0
    %2258 = vmatpush1.msra.mxu0 0.0
    %2259 = vmatprep.subr.mxu0 0.0
    %2260 = vmatpush1.msra.mxu0 0.0
    %2261 = vmatprep.subr.mxu0 0.0
    %2262 = vmatpush1.msra.mxu0 0.0
    %2263 = vmatprep.subr.mxu0 0.0
    %2264 = vmatpush1.msra.mxu0 0.0
    %2265 = vmatprep.subr.mxu0 0.0
    %2266 = vmatpush1.msra.mxu0 0.0
    %2267 = vmatprep.subr.mxu0 0.0
    %2268 = vmatpush1.msra.mxu0 0.0
    %2269 = vmatprep.subr.mxu0 0.0
    %2270 = vmatpush1.msra.mxu0 0.0
    %2271 = vmatprep.subr.mxu0 0.0
    %2272 = vmatpush1.msra.mxu0 0.0
    %2273 = vmatprep.subr.mxu0 0.0
    %2274 = vmatpush1.msra.mxu0 0.0
    %2275 = vmatprep.subr.mxu0 0.0
    %2276 = vmatpush1.msra.mxu0 0.0
    %2277 = vmatprep.subr.mxu0 0.0
    %2278 = vmatpush1.msra.mxu0 0.0
    %2279 = vmatprep.mubr.f32.mxu0 0.0
    %2280 = vmatmul.mubr.f32.gmra.mrb[0].mxu0 %v2213
    %v2281 = vpop.f32.mrb[0].mxu0
    %v2282 = vadd.f32 0.0, %v2281
    %v2283 = vpop.f32.mrb[0].mxu0
    %2284 = vdwg.mxu0
    %v2285 = vadd.f32 %v2207, %v2282
    %v2286 = vld [vmem:[#allocation2 + $0x2a] sm:$0x3]
    %s2287 = scalar_lea.vmem %s3, 336
    %v2288 = vld [vmem:[%s2287] sm:$0xff]
    %v2289 = vld [vmem:[%s2287 + $0x8] sm:$0xff]
    %v2291 = vsel %vm642, %v2286, 0
    %2293 = vmatprep.subr.mxu0 0.0
    %2294 = vmatpush1.msra.mxu0 %v2288
    %2295 = vmatprep.subr.mxu0 0.0
    %2296 = vmatpush1.msra.mxu0 %v2289
    %2297 = vmatprep.subr.mxu0 0.0
    %2298 = vmatpush1.msra.mxu0 0.0
    %2299 = vmatprep.subr.mxu0 0.0
    %2300 = vmatpush1.msra.mxu0 0.0
    %2301 = vmatprep.subr.mxu0 0.0
    %2302 = vmatpush1.msra.mxu0 0.0
    %2303 = vmatprep.subr.mxu0 0.0
    %2304 = vmatpush1.msra.mxu0 0.0
    %2305 = vmatprep.subr.mxu0 0.0
    %2306 = vmatpush1.msra.mxu0 0.0
    %2307 = vmatprep.subr.mxu0 0.0
    %2308 = vmatpush1.msra.mxu0 0.0
    %2309 = vmatprep.subr.mxu0 0.0
    %2310 = vmatpush1.msra.mxu0 0.0
    %2311 = vmatprep.subr.mxu0 0.0
    %2312 = vmatpush1.msra.mxu0 0.0
    %2313 = vmatprep.subr.mxu0 0.0
    %2314 = vmatpush1.msra.mxu0 0.0
    %2315 = vmatprep.subr.mxu0 0.0
    %2316 = vmatpush1.msra.mxu0 0.0
    %2317 = vmatprep.subr.mxu0 0.0
    %2318 = vmatpush1.msra.mxu0 0.0
    %2319 = vmatprep.subr.mxu0 0.0
    %2320 = vmatpush1.msra.mxu0 0.0
    %2321 = vmatprep.subr.mxu0 0.0
    %2322 = vmatpush1.msra.mxu0 0.0
    %2323 = vmatprep.subr.mxu0 0.0
    %2324 = vmatpush1.msra.mxu0 0.0
    %2325 = vmatprep.subr.mxu0 0.0
    %2326 = vmatpush1.msra.mxu0 0.0
    %2327 = vmatprep.subr.mxu0 0.0
    %2328 = vmatpush1.msra.mxu0 0.0
    %2329 = vmatprep.subr.mxu0 0.0
    %2330 = vmatpush1.msra.mxu0 0.0
    %2331 = vmatprep.subr.mxu0 0.0
    %2332 = vmatpush1.msra.mxu0 0.0
    %2333 = vmatprep.subr.mxu0 0.0
    %2334 = vmatpush1.msra.mxu0 0.0
    %2335 = vmatprep.subr.mxu0 0.0
    %2336 = vmatpush1.msra.mxu0 0.0
    %2337 = vmatprep.subr.mxu0 0.0
    %2338 = vmatpush1.msra.mxu0 0.0
    %2339 = vmatprep.subr.mxu0 0.0
    %2340 = vmatpush1.msra.mxu0 0.0
    %2341 = vmatprep.subr.mxu0 0.0
    %2342 = vmatpush1.msra.mxu0 0.0
    %2343 = vmatprep.subr.mxu0 0.0
    %2344 = vmatpush1.msra.mxu0 0.0
    %2345 = vmatprep.subr.mxu0 0.0
    %2346 = vmatpush1.msra.mxu0 0.0
    %2347 = vmatprep.subr.mxu0 0.0
    %2348 = vmatpush1.msra.mxu0 0.0
    %2349 = vmatprep.subr.mxu0 0.0
    %2350 = vmatpush1.msra.mxu0 0.0
    %2351 = vmatprep.subr.mxu0 0.0
    %2352 = vmatpush1.msra.mxu0 0.0
    %2353 = vmatprep.subr.mxu0 0.0
    %2354 = vmatpush1.msra.mxu0 0.0
    %2355 = vmatprep.subr.mxu0 0.0
    %2356 = vmatpush1.msra.mxu0 0.0
    %2357 = vmatprep.mubr.f32.mxu0 0.0
    %2358 = vmatmul.mubr.f32.gmra.mrb[0].mxu0 %v2291
    %v2359 = vpop.f32.mrb[0].mxu0
    %v2360 = vadd.f32 0.0, %v2359
    %v2361 = vpop.f32.mrb[0].mxu0
    %2362 = vdwg.mxu0
    %v2363 = vadd.f32 %v2285, %v2360
    %v2364 = vld [vmem:[#allocation2 + $0x2c] sm:$0x3]
    %s2365 = scalar_lea.vmem %s3, 352
    %v2366 = vld [vmem:[%s2365] sm:$0xff]
    %v2367 = vld [vmem:[%s2365 + $0x8] sm:$0xff]
    %v2369 = vsel %vm642, %v2364, 0
    %2371 = vmatprep.subr.mxu0 0.0
    %2372 = vmatpush1.msra.mxu0 %v2366
    %2373 = vmatprep.subr.mxu0 0.0
    %2374 = vmatpush1.msra.mxu0 %v2367
    %2375 = vmatprep.subr.mxu0 0.0
    %2376 = vmatpush1.msra.mxu0 0.0
    %2377 = vmatprep.subr.mxu0 0.0
    %2378 = vmatpush1.msra.mxu0 0.0
    %2379 = vmatprep.subr.mxu0 0.0
    %2380 = vmatpush1.msra.mxu0 0.0
    %2381 = vmatprep.subr.mxu0 0.0
    %2382 = vmatpush1.msra.mxu0 0.0
    %2383 = vmatprep.subr.mxu0 0.0
    %2384 = vmatpush1.msra.mxu0 0.0
    %2385 = vmatprep.subr.mxu0 0.0
    %2386 = vmatpush1.msra.mxu0 0.0
    %2387 = vmatprep.subr.mxu0 0.0
    %2388 = vmatpush1.msra.mxu0 0.0
    %2389 = vmatprep.subr.mxu0 0.0
    %2390 = vmatpush1.msra.mxu0 0.0
    %2391 = vmatprep.subr.mxu0 0.0
    %2392 = vmatpush1.msra.mxu0 0.0
    %2393 = vmatprep.subr.mxu0 0.0
    %2394 = vmatpush1.msra.mxu0 0.0
    %2395 = vmatprep.subr.mxu0 0.0
    %2396 = vmatpush1.msra.mxu0 0.0
    %2397 = vmatprep.subr.mxu0 0.0
    %2398 = vmatpush1.msra.mxu0 0.0
    %2399 = vmatprep.subr.mxu0 0.0
    %2400 = vmatpush1.msra.mxu0 0.0
    %2401 = vmatprep.subr.mxu0 0.0
    %2402 = vmatpush1.msra.mxu0 0.0
    %2403 = vmatprep.subr.mxu0 0.0
    %2404 = vmatpush1.msra.mxu0 0.0
    %2405 = vmatprep.subr.mxu0 0.0
    %2406 = vmatpush1.msra.mxu0 0.0
    %2407 = vmatprep.subr.mxu0 0.0
    %2408 = vmatpush1.msra.mxu0 0.0
    %2409 = vmatprep.subr.mxu0 0.0
    %2410 = vmatpush1.msra.mxu0 0.0
    %2411 = vmatprep.subr.mxu0 0.0
    %2412 = vmatpush1.msra.mxu0 0.0
    %2413 = vmatprep.subr.mxu0 0.0
    %2414 = vmatpush1.msra.mxu0 0.0
    %2415 = vmatprep.subr.mxu0 0.0
    %2416 = vmatpush1.msra.mxu0 0.0
    %2417 = vmatprep.subr.mxu0 0.0
    %2418 = vmatpush1.msra.mxu0 0.0
    %2419 = vmatprep.subr.mxu0 0.0
    %2420 = vmatpush1.msra.mxu0 0.0
    %2421 = vmatprep.subr.mxu0 0.0
    %2422 = vmatpush1.msra.mxu0 0.0
    %2423 = vmatprep.subr.mxu0 0.0
    %2424 = vmatpush1.msra.mxu0 0.0
    %2425 = vmatprep.subr.mxu0 0.0
    %2426 = vmatpush1.msra.mxu0 0.0
    %2427 = vmatprep.subr.mxu0 0.0
    %2428 = vmatpush1.msra.mxu0 0.0
    %2429 = vmatprep.subr.mxu0 0.0
    %2430 = vmatpush1.msra.mxu0 0.0
    %2431 = vmatprep.subr.mxu0 0.0
    %2432 = vmatpush1.msra.mxu0 0.0
    %2433 = vmatprep.subr.mxu0 0.0
    %2434 = vmatpush1.msra.mxu0 0.0
    %2435 = vmatprep.mubr.f32.mxu0 0.0
    %2436 = vmatmul.mubr.f32.gmra.mrb[0].mxu0 %v2369
    %v2437 = vpop.f32.mrb[0].mxu0
    %v2438 = vadd.f32 0.0, %v2437
    %v2439 = vpop.f32.mrb[0].mxu0
    %2440 = vdwg.mxu0
    %v2441 = vadd.f32 %v2363, %v2438
    %v2442 = vld [vmem:[#allocation2 + $0x2e] sm:$0x3]
    %s2443 = scalar_lea.vmem %s3, 368
    %v2444 = vld [vmem:[%s2443] sm:$0xff]
    %v2445 = vld [vmem:[%s2443 + $0x8] sm:$0xff]
    %v2447 = vsel %vm642, %v2442, 0
    %2449 = vmatprep.subr.mxu0 0.0
    %2450 = vmatpush1.msra.mxu0 %v2444
    %2451 = vmatprep.subr.mxu0 0.0
    %2452 = vmatpush1.msra.mxu0 %v2445
    %2453 = vmatprep.subr.mxu0 0.0
    %2454 = vmatpush1.msra.mxu0 0.0
    %2455 = vmatprep.subr.mxu0 0.0
    %2456 = vmatpush1.msra.mxu0 0.0
    %2457 = vmatprep.subr.mxu0 0.0
    %2458 = vmatpush1.msra.mxu0 0.0
    %2459 = vmatprep.subr.mxu0 0.0
    %2460 = vmatpush1.msra.mxu0 0.0
    %2461 = vmatprep.subr.mxu0 0.0
    %2462 = vmatpush1.msra.mxu0 0.0
    %2463 = vmatprep.subr.mxu0 0.0
    %2464 = vmatpush1.msra.mxu0 0.0
    %2465 = vmatprep.subr.mxu0 0.0
    %2466 = vmatpush1.msra.mxu0 0.0
    %2467 = vmatprep.subr.mxu0 0.0
    %2468 = vmatpush1.msra.mxu0 0.0
    %2469 = vmatprep.subr.mxu0 0.0
    %2470 = vmatpush1.msra.mxu0 0.0
    %2471 = vmatprep.subr.mxu0 0.0
    %2472 = vmatpush1.msra.mxu0 0.0
    %2473 = vmatprep.subr.mxu0 0.0
    %2474 = vmatpush1.msra.mxu0 0.0
    %2475 = vmatprep.subr.mxu0 0.0
    %2476 = vmatpush1.msra.mxu0 0.0
    %2477 = vmatprep.subr.mxu0 0.0
    %2478 = vmatpush1.msra.mxu0 0.0
    %2479 = vmatprep.subr.mxu0 0.0
    %2480 = vmatpush1.msra.mxu0 0.0
    %2481 = vmatprep.subr.mxu0 0.0
    %2482 = vmatpush1.msra.mxu0 0.0
    %2483 = vmatprep.subr.mxu0 0.0
    %2484 = vmatpush1.msra.mxu0 0.0
    %2485 = vmatprep.subr.mxu0 0.0
    %2486 = vmatpush1.msra.mxu0 0.0
    %2487 = vmatprep.subr.mxu0 0.0
    %2488 = vmatpush1.msra.mxu0 0.0
    %2489 = vmatprep.subr.mxu0 0.0
    %2490 = vmatpush1.msra.mxu0 0.0
    %2491 = vmatprep.subr.mxu0 0.0
    %2492 = vmatpush1.msra.mxu0 0.0
    %2493 = vmatprep.subr.mxu0 0.0
    %2494 = vmatpush1.msra.mxu0 0.0
    %2495 = vmatprep.subr.mxu0 0.0
    %2496 = vmatpush1.msra.mxu0 0.0
    %2497 = vmatprep.subr.mxu0 0.0
    %2498 = vmatpush1.msra.mxu0 0.0
    %2499 = vmatprep.subr.mxu0 0.0
    %2500 = vmatpush1.msra.mxu0 0.0
    %2501 = vmatprep.subr.mxu0 0.0
    %2502 = vmatpush1.msra.mxu0 0.0
    %2503 = vmatprep.subr.mxu0 0.0
    %2504 = vmatpush1.msra.mxu0 0.0
    %2505 = vmatprep.subr.mxu0 0.0
    %2506 = vmatpush1.msra.mxu0 0.0
    %2507 = vmatprep.subr.mxu0 0.0
    %2508 = vmatpush1.msra.mxu0 0.0
    %2509 = vmatprep.subr.mxu0 0.0
    %2510 = vmatpush1.msra.mxu0 0.0
    %2511 = vmatprep.subr.mxu0 0.0
    %2512 = vmatpush1.msra.mxu0 0.0
    %2513 = vmatprep.mubr.f32.mxu0 0.0
    %2514 = vmatmul.mubr.f32.gmra.mrb[0].mxu0 %v2447
    %v2515 = vpop.f32.mrb[0].mxu0
    %v2516 = vadd.f32 0.0, %v2515
    %v2517 = vpop.f32.mrb[0].mxu0
    %2518 = vdwg.mxu0
    %v2519 = vadd.f32 %v2441, %v2516
    %v2520 = vld [vmem:[#allocation2 + $0x30] sm:$0x3]
    %s2521 = scalar_lea.vmem %s3, 384
    %v2522 = vld [vmem:[%s2521] sm:$0xff]
    %v2523 = vld [vmem:[%s2521 + $0x8] sm:$0xff]
    %v2525 = vsel %vm642, %v2520, 0
    %2527 = vmatprep.subr.mxu0 0.0
    %2528 = vmatpush1.msra.mxu0 %v2522
    %2529 = vmatprep.subr.mxu0 0.0
    %2530 = vmatpush1.msra.mxu0 %v2523
    %2531 = vmatprep.subr.mxu0 0.0
    %2532 = vmatpush1.msra.mxu0 0.0
    %2533 = vmatprep.subr.mxu0 0.0
    %2534 = vmatpush1.msra.mxu0 0.0
    %2535 = vmatprep.subr.mxu0 0.0
    %2536 = vmatpush1.msra.mxu0 0.0
    %2537 = vmatprep.subr.mxu0 0.0
    %2538 = vmatpush1.msra.mxu0 0.0
    %2539 = vmatprep.subr.mxu0 0.0
    %2540 = vmatpush1.msra.mxu0 0.0
    %2541 = vmatprep.subr.mxu0 0.0
    %2542 = vmatpush1.msra.mxu0 0.0
    %2543 = vmatprep.subr.mxu0 0.0
    %2544 = vmatpush1.msra.mxu0 0.0
    %2545 = vmatprep.subr.mxu0 0.0
    %2546 = vmatpush1.msra.mxu0 0.0
    %2547 = vmatprep.subr.mxu0 0.0
    %2548 = vmatpush1.msra.mxu0 0.0
    %2549 = vmatprep.subr.mxu0 0.0
    %2550 = vmatpush1.msra.mxu0 0.0
    %2551 = vmatprep.subr.mxu0 0.0
    %2552 = vmatpush1.msra.mxu0 0.0
    %2553 = vmatprep.subr.mxu0 0.0
    %2554 = vmatpush1.msra.mxu0 0.0
    %2555 = vmatprep.subr.mxu0 0.0
    %2556 = vmatpush1.msra.mxu0 0.0
    %2557 = vmatprep.subr.mxu0 0.0
    %2558 = vmatpush1.msra.mxu0 0.0
    %2559 = vmatprep.subr.mxu0 0.0
    %2560 = vmatpush1.msra.mxu0 0.0
    %2561 = vmatprep.subr.mxu0 0.0
    %2562 = vmatpush1.msra.mxu0 0.0
    %2563 = vmatprep.subr.mxu0 0.0
    %2564 = vmatpush1.msra.mxu0 0.0
    %2565 = vmatprep.subr.mxu0 0.0
    %2566 = vmatpush1.msra.mxu0 0.0
    %2567 = vmatprep.subr.mxu0 0.0
    %2568 = vmatpush1.msra.mxu0 0.0
    %2569 = vmatprep.subr.mxu0 0.0
    %2570 = vmatpush1.msra.mxu0 0.0
    %2571 = vmatprep.subr.mxu0 0.0
    %2572 = vmatpush1.msra.mxu0 0.0
    %2573 = vmatprep.subr.mxu0 0.0
    %2574 = vmatpush1.msra.mxu0 0.0
    %2575 = vmatprep.subr.mxu0 0.0
    %2576 = vmatpush1.msra.mxu0 0.0
    %2577 = vmatprep.subr.mxu0 0.0
    %2578 = vmatpush1.msra.mxu0 0.0
    %2579 = vmatprep.subr.mxu0 0.0
    %2580 = vmatpush1.msra.mxu0 0.0
    %2581 = vmatprep.subr.mxu0 0.0
    %2582 = vmatpush1.msra.mxu0 0.0
    %2583 = vmatprep.subr.mxu0 0.0
    %2584 = vmatpush1.msra.mxu0 0.0
    %2585 = vmatprep.subr.mxu0 0.0
    %2586 = vmatpush1.msra.mxu0 0.0
    %2587 = vmatprep.subr.mxu0 0.0
    %2588 = vmatpush1.msra.mxu0 0.0
    %2589 = vmatprep.subr.mxu0 0.0
    %2590 = vmatpush1.msra.mxu0 0.0
    %2591 = vmatprep.mubr.f32.mxu0 0.0
    %2592 = vmatmul.mubr.f32.gmra.mrb[0].mxu0 %v2525
    %v2593 = vpop.f32.mrb[0].mxu0
    %v2594 = vadd.f32 0.0, %v2593
    %v2595 = vpop.f32.mrb[0].mxu0
    %2596 = vdwg.mxu0
    %v2597 = vadd.f32 %v2519, %v2594
    %v2598 = vld [vmem:[%s4] sm:$0x1]
    %v2600 = vlaneseq
    %v2601 = vshrl.u32 %v2600, 7
    %v2602 = vsub.s32 0, %v2601
    %v2603 = vrot.slane %v2598, %v2602
    %v2605 = vadd.f32 %v2597, %v2603
    %v2606 = vmax.f32 %v2605, 0.0
    %v2607 = vld [vmem:[%s5] sm:$0xff]
    %v2608 = vld [vmem:[%s5 + $0x8] sm:$0xff]
    %v2609 = vld [vmem:[%s5 + $0x10] sm:$0xff]
    %v2610 = vld [vmem:[%s5 + $0x18] sm:$0xff]
    %v2611 = vld [vmem:[%s5 + $0x20] sm:$0xff]
    %v2612 = vld [vmem:[%s5 + $0x28] sm:$0xff]
    %v2613 = vld [vmem:[%s5 + $0x30] sm:$0xff]
    %v2614 = vld [vmem:[%s5 + $0x38] sm:$0xff]
    %v2615 = vld [vmem:[%s5 + $0x40] sm:$0xff]
    %v2616 = vld [vmem:[%s5 + $0x48] sm:$0xff]
    %v2617 = vld [vmem:[%s5 + $0x50] sm:$0xff]
    %v2618 = vld [vmem:[%s5 + $0x58] sm:$0xff]
    %v2619 = vld [vmem:[%s5 + $0x60] sm:$0xff]
    %v2620 = vld [vmem:[%s5 + $0x68] sm:$0xff]
    %v2621 = vld [vmem:[%s5 + $0x70] sm:$0xff]
    %v2622 = vld [vmem:[%s6] sm:$0x1]
    %v2624 = vlaneseq
    %v2625 = vshrl.u32 %v2624, 7
    %v2626 = vsub.s32 0, %v2625
    %v2627 = vrot.slane %v2622, %v2626
    %vm2629 = vcmask 982016
    %v2631 = vsel %vm2629, %v2606, 0
    %2633 = vmatprep.subr.mxu0 0.0
    %2634 = vmatpush1.msra.mxu0 %v2607
    %2635 = vmatprep.subr.mxu0 0.0
    %2636 = vmatpush1.msra.mxu0 %v2608
    %2637 = vmatprep.subr.mxu0 0.0
    %2638 = vmatpush1.msra.mxu0 %v2609
    %2639 = vmatprep.subr.mxu0 0.0
    %2640 = vmatpush1.msra.mxu0 %v2610
    %2641 = vmatprep.subr.mxu0 0.0
    %2642 = vmatpush1.msra.mxu0 %v2611
    %2643 = vmatprep.subr.mxu0 0.0
    %2644 = vmatpush1.msra.mxu0 %v2612
    %2645 = vmatprep.subr.mxu0 0.0
    %2646 = vmatpush1.msra.mxu0 %v2613
    %2647 = vmatprep.subr.mxu0 0.0
    %2648 = vmatpush1.msra.mxu0 %v2614
    %2649 = vmatprep.subr.mxu0 0.0
    %2650 = vmatpush1.msra.mxu0 %v2615
    %2651 = vmatprep.subr.mxu0 0.0
    %2652 = vmatpush1.msra.mxu0 %v2616
    %2653 = vmatprep.subr.mxu0 0.0
    %2654 = vmatpush1.msra.mxu0 %v2617
    %2655 = vmatprep.subr.mxu0 0.0
    %2656 = vmatpush1.msra.mxu0 %v2618
    %2657 = vmatprep.subr.mxu0 0.0
    %2658 = vmatpush1.msra.mxu0 %v2619
    %2659 = vmatprep.subr.mxu0 0.0
    %2660 = vmatpush1.msra.mxu0 %v2620
    %2661 = vmatprep.subr.mxu0 0.0
    %2662 = vmatpush1.msra.mxu0 %v2621
    %2663 = vmatprep.subr.mxu0 0.0
    %2664 = vmatpush1.msra.mxu0 0.0
    %2665 = vmatprep.subr.mxu0 0.0
    %2666 = vmatpush1.msra.mxu0 0.0
    %2667 = vmatprep.subr.mxu0 0.0
    %2668 = vmatpush1.msra.mxu0 0.0
    %2669 = vmatprep.subr.mxu0 0.0
    %2670 = vmatpush1.msra.mxu0 0.0
    %2671 = vmatprep.subr.mxu0 0.0
    %2672 = vmatpush1.msra.mxu0 0.0
    %2673 = vmatprep.subr.mxu0 0.0
    %2674 = vmatpush1.msra.mxu0 0.0
    %2675 = vmatprep.subr.mxu0 0.0
    %2676 = vmatpush1.msra.mxu0 0.0
    %2677 = vmatprep.subr.mxu0 0.0
    %2678 = vmatpush1.msra.mxu0 0.0
    %2679 = vmatprep.subr.mxu0 0.0
    %2680 = vmatpush1.msra.mxu0 0.0
    %2681 = vmatprep.subr.mxu0 0.0
    %2682 = vmatpush1.msra.mxu0 0.0
    %2683 = vmatprep.subr.mxu0 0.0
    %2684 = vmatpush1.msra.mxu0 0.0
    %2685 = vmatprep.subr.mxu0 0.0
    %2686 = vmatpush1.msra.mxu0 0.0
    %2687 = vmatprep.subr.mxu0 0.0
    %2688 = vmatpush1.msra.mxu0 0.0
    %2689 = vmatprep.subr.mxu0 0.0
    %2690 = vmatpush1.msra.mxu0 0.0
    %2691 = vmatprep.subr.mxu0 0.0
    %2692 = vmatpush1.msra.mxu0 0.0
    %2693 = vmatprep.subr.mxu0 0.0
    %2694 = vmatpush1.msra.mxu0 0.0
    %2695 = vmatprep.subr.mxu0 0.0
    %2696 = vmatpush1.msra.mxu0 0.0
    %2697 = vmatprep.mubr.f32.mxu0 0.0
    %2698 = vmatmul.mubr.f32.gmra.mrb[0].mxu0 %v2631
    %v2699 = vpop.f32.mrb[0].mxu0
    %v2700 = vadd.f32 %v2627, %v2699
    %v2701 = vpop.f32.mrb[0].mxu0
    %2702 = vdwg.mxu0
    %v2703 = vmax.f32 %v2700, 0.0
    %v2704 = vld [vmem:[%s7] sm:$0xff]
    %v2705 = vld [vmem:[%s7 + $0x8] sm:$0xff]
    %v2706 = vld [vmem:[%s7 + $0x10] sm:$0xff]
    %v2707 = vld [vmem:[%s7 + $0x18] sm:$0xff]
    %v2708 = vld [vmem:[%s7 + $0x20] sm:$0xff]
    %v2709 = vld [vmem:[%s7 + $0x28] sm:$0xff]
    %v2710 = vld [vmem:[%s7 + $0x30] sm:$0xff]
    %v2711 = vld [vmem:[%s7 + $0x38] sm:$0xff]
    %v2712 = vld [vmem:[%s7 + $0x40] sm:$0xff]
    %v2713 = vld [vmem:[%s7 + $0x48] sm:$0xff]
    %v2714 = vld [vmem:[%s7 + $0x50] sm:$0xf]
    %v2715 = vld [vmem:[%s8] sm:$0x1]
    %v2717 = vlaneseq
    %v2718 = vshrl.u32 %v2717, 7
    %v2719 = vsub.s32 0, %v2718
    %v2720 = vrot.slane %v2715, %v2719
    %vm2722 = vcmask 687104
    %v2724 = vsel %vm2722, %v2703, 0
    %vm2726 = vcmask 1043456
    %v2728 = vsel %vm2726, %v2714, 0
    %2730 = vmatprep.subr.mxu0 0.0
    %2731 = vmatpush1.msra.mxu0 %v2704
    %2732 = vmatprep.subr.mxu0 0.0
    %2733 = vmatpush1.msra.mxu0 %v2705
    %2734 = vmatprep.subr.mxu0 0.0
    %2735 = vmatpush1.msra.mxu0 %v2706
    %2736 = vmatprep.subr.mxu0 0.0
    %2737 = vmatpush1.msra.mxu0 %v2707
    %2738 = vmatprep.subr.mxu0 0.0
    %2739 = vmatpush1.msra.mxu0 %v2708
    %2740 = vmatprep.subr.mxu0 0.0
    %2741 = vmatpush1.msra.mxu0 %v2709
    %2742 = vmatprep.subr.mxu0 0.0
    %2743 = vmatpush1.msra.mxu0 %v2710
    %2744 = vmatprep.subr.mxu0 0.0
    %2745 = vmatpush1.msra.mxu0 %v2711
    %2746 = vmatprep.subr.mxu0 0.0
    %2747 = vmatpush1.msra.mxu0 %v2712
    %2748 = vmatprep.subr.mxu0 0.0
    %2749 = vmatpush1.msra.mxu0 %v2713
    %2750 = vmatprep.subr.mxu0 0.0
    %2751 = vmatpush1.msra.mxu0 %v2728
    %2752 = vmatprep.subr.mxu0 0.0
    %2753 = vmatpush1.msra.mxu0 0.0
    %2754 = vmatprep.subr.mxu0 0.0
    %2755 = vmatpush1.msra.mxu0 0.0
    %2756 = vmatprep.subr.mxu0 0.0
    %2757 = vmatpush1.msra.mxu0 0.0
    %2758 = vmatprep.subr.mxu0 0.0
    %2759 = vmatpush1.msra.mxu0 0.0
    %2760 = vmatprep.subr.mxu0 0.0
    %2761 = vmatpush1.msra.mxu0 0.0
    %2762 = vmatprep.subr.mxu0 0.0
    %2763 = vmatpush1.msra.mxu0 0.0
    %2764 = vmatprep.subr.mxu0 0.0
    %2765 = vmatpush1.msra.mxu0 0.0
    %2766 = vmatprep.subr.mxu0 0.0
    %2767 = vmatpush1.msra.mxu0 0.0
    %2768 = vmatprep.subr.mxu0 0.0
    %2769 = vmatpush1.msra.mxu0 0.0
    %2770 = vmatprep.subr.mxu0 0.0
    %2771 = vmatpush1.msra.mxu0 0.0
    %2772 = vmatprep.subr.mxu0 0.0
    %2773 = vmatpush1.msra.mxu0 0.0
    %2774 = vmatprep.subr.mxu0 0.0
    %2775 = vmatpush1.msra.mxu0 0.0
    %2776 = vmatprep.subr.mxu0 0.0
    %2777 = vmatpush1.msra.mxu0 0.0
    %2778 = vmatprep.subr.mxu0 0.0
    %2779 = vmatpush1.msra.mxu0 0.0
    %2780 = vmatprep.subr.mxu0 0.0
    %2781 = vmatpush1.msra.mxu0 0.0
    %2782 = vmatprep.subr.mxu0 0.0
    %2783 = vmatpush1.msra.mxu0 0.0
    %2784 = vmatprep.subr.mxu0 0.0
    %2785 = vmatpush1.msra.mxu0 0.0
    %2786 = vmatprep.subr.mxu0 0.0
    %2787 = vmatpush1.msra.mxu0 0.0
    %2788 = vmatprep.subr.mxu0 0.0
    %2789 = vmatpush1.msra.mxu0 0.0
    %2790 = vmatprep.subr.mxu0 0.0
    %2791 = vmatpush1.msra.mxu0 0.0
    %2792 = vmatprep.subr.mxu0 0.0
    %2793 = vmatpush1.msra.mxu0 0.0
    %2794 = vmatprep.mubr.f32.mxu0 0.0
    %2795 = vmatmul.mubr.f32.gmra.mrb[0].mxu0 %v2724
    %v2796 = vpop.f32.mrb[0].mxu0
    %v2797 = vadd.f32 %v2720, %v2796
    %v2798 = vpop.f32.mrb[0].mxu0
    %2799 = vdwg.mxu0
    %vm2800 = vcmask 74752
    %2801 = vst.msk [vmem:[#allocation3] sm:$0x3] %vm2800, %v2797
    // Predicated region
    $region38: #{conv_model_forward.3} parent=1 // pred_check
      _
    $region39: #{conv_model_forward.3} parent=1 // pred_check_branch
      %2803 = sbr.rel (0) target = $region41
    $region40: #{conv_model_forward.3} parent=1 // pred_region
      %s2805 = ssub.s32 32, 32
      %2806 = vsyncadd [#allocation4], %s2805
      %s2808 = sshll.u32 [#allocation3], 4
      %s2809 = int_to_ptr.vmem [resolvable:$true] %s2808
      %2811 = dma.vmem_to_hbm [thread:$0]  %s2809, 32, %s9, [#allocation4]
    $region41: #{conv_model_forward.3} parent=1 // pred_fallthru
      _
    // Predicated region
    $region42: #{conv_model_forward.3} parent=1 // pred_check
      _
    $region43: #{conv_model_forward.3} parent=1 // pred_check_branch
      %2813 = sbr.rel (0) target = $region45
    $region44: #{conv_model_forward.3} parent=1 // pred_region
      %2814 = dma.done [#allocation4], 32
    $region45: #{conv_model_forward.3} parent=1 // pred_fallthru
      _
    %2815 = vsyncpa [#allocation4], 1

</llo_original>
